<compile_context>
chip_gen: v5e
topology: v5e:2x2
jax: 0.10.0
libtpu: 0.0.40
codegen_flags: <defaults>
</compile_context>

<pallas_src>
import functools

import jax
import jax.numpy as jnp
from jax import lax
from jax.experimental import pallas as pl
from jax.experimental.pallas import tpu as pltpu

LANE = 128


def _round_up(x, m):
    return (x + m - 1) // m * m


# ----------------------------------------------------------------------------
# Fused kernel: per grid step = one image.  For every feature level:
#   in-kernel im2col (VMEM scratch slab)  ->  one bf16 MXU matmul (cls+reg)
#   ->  per-box softmax over classes  ->  prior decode to corner boxes
# ----------------------------------------------------------------------------
def _ssd_head_kernel(*refs, level_meta, num_classes, cv, sv):
    """refs = [feat_0, w_0, b_0, ..., feat_{L-1}, w_{L-1}, b_{L-1}, priors,
               scores_out, boxes_out, slab_scratch]

    feat_l : ((H+2)*(W+2), Cin)  f32   zero-padded feature map, rows = (hp, wp)
    w_l    : (9*Cin, COUTP)      bf16  fused [cls | reg] conv weights
    b_l    : (1, COUTP)          f32   fused bias
    priors : (Ppad, 4)           f32   center-form priors, order (level, box, h, w)
    scores : (Ppad, C)           f32   softmax class scores
    boxes  : (Ppad, 4)           f32   corner-form boxes
    slab   : (max_HW, 9*max_Cin) f32   im2col scratch
    """
    num_levels = len(level_meta)
    priors_ref = refs[3 * num_levels]
    scores_ref = refs[3 * num_levels + 1]
    boxes_ref = refs[3 * num_levels + 2]
    slab_ref = refs[3 * num_levels + 3]
    C = num_classes

    p0 = 0  # static running offset into the prior axis
    for lvl in range(num_levels):
        H, W, Cin, nboxes = level_meta[lvl]
        feat_ref = refs[3 * lvl]
        w_ref = refs[3 * lvl + 1]
        bias_ref = refs[3 * lvl + 2]
        HW = H * W
        Wp = W + 2
        K9 = 9 * Cin

        # ---- in-kernel im2col: build the (HW, 9*Cin) slab in VMEM ----------
        # TODO(synk): at real SSD feature-map sizes this should become a
        # row-tiled grid with halo DMA (+ pl.Buffered(3) on v5e) instead of the
        # per-output-row copies used for this tiny workload.
        for kh in range(3):
            for h in range(H):
                row = feat_ref[(h + kh) * Wp:(h + kh) * Wp + Wp, :]    # (W+2, Cin)
                for kw in range(3):
                    t = kh * 3 + kw
                    slab_ref[h * W:(h + 1) * W,
                             t * Cin:(t + 1) * Cin] = row[kw:kw + W, :]

        # ---- one fused cls+reg matmul (bf16 MXU, f32 accumulate) -----------
        # TODO(synk): on v6e/v7x concatenate the levels along Cout (pad to 256
        # lanes) for a single full-width matmul; on v7x the MRB makes 9
        # accumulating K=Cin matmuls equally good and skips the slab entirely.
        lhs = slab_ref[0:HW, 0:K9].astype(jnp.bfloat16)
        acc = jnp.dot(lhs, w_ref[...], preferred_element_type=jnp.float32)
        acc = acc + bias_ref[...]
        # acc cols: [b*C, (b+1)*C)                = cls logits of box b
        #           [nboxes*C + 4*b, +4)          = (dx, dy, dw, dh) of box b

        # ---- softmax over classes + prior decode, one contiguous chunk/box --
        for b in range(nboxes):
            logits = acc[:, b * C:(b + 1) * C]                         # (HW, C)
            m = jnp.max(logits, axis=-1, keepdims=True)
            e = jnp.exp(logits - m)
            denom = jnp.sum(e, axis=-1, keepdims=True)
            scores_ref[p0:p0 + HW, :] = e * pl.reciprocal(denom, approx=False)

            loc = acc[:, nboxes * C + 4 * b:nboxes * C + 4 * b + 4]    # (HW, 4)
            pr = priors_ref[p0:p0 + HW, :]                             # (HW, 4)
            ctr = loc[:, 0:2] * cv * pr[:, 2:4] + pr[:, 0:2]           # cx', cy'
            size = jnp.exp(loc[:, 2:4] * sv) * pr[:, 2:4]              # w', h'
            boxes_ref[p0:p0 + HW, :] = jnp.concatenate(
                [ctr - 0.5 * size, ctr + 0.5 * size], axis=-1)         # corners
            p0 += HW


# ----------------------------------------------------------------------------
# Head wrapper.  Wrapper-side work is layout plumbing only (halo pad + flatten
# of the features; one-time weight/bias fusion + padding; prior padding).
# ----------------------------------------------------------------------------
def ssd_head_forward(features_nhwc, params, priors, num_classes, cv, sv):
    N = features_nhwc[0].shape[0]
    C = num_classes
    P = priors.shape[0]
    Ppad = _round_up(P, 8)

    flat_in, in_specs, level_meta = [], [], []
    max_hw, max_k9 = 0, 0
    for x, (wc, bc, wr, br) in zip(features_nhwc, params):
        _, H, W, Cin = x.shape
        nboxes = wr.shape[-1] // 4
        cout = nboxes * (C + 4)
        coutp = _round_up(cout, LANE)
        rows2 = (H + 2) * (W + 2)

        # Zero-pad the 3x3 halo and flatten (H+2, W+2) into rows (contiguous).
        xpad = jnp.pad(x, ((0, 0), (1, 1), (1, 1), (0, 0)))
        xpad = xpad.reshape(N, rows2, Cin).astype(jnp.float32)
        # Fuse cls+reg weights along Cout, zero-pad Cout to a full lane group.
        wf = jnp.concatenate([wc, wr], axis=-1).reshape(9 * Cin, cout)
        wf = jnp.pad(wf, ((0, 0), (0, coutp - cout))).astype(jnp.bfloat16)
        bf = jnp.pad(jnp.concatenate([bc, br]), (0, coutp - cout))
        bf = bf.reshape(1, coutp).astype(jnp.float32)

        flat_in += [xpad, wf, bf]
        in_specs += [
            pl.BlockSpec((None, rows2, Cin), lambda n: (n, 0, 0)),
            pl.BlockSpec((9 * Cin, coutp), lambda n: (0, 0)),
            pl.BlockSpec((1, coutp), lambda n: (0, 0)),
        ]
        level_meta.append((H, W, Cin, nboxes))
        max_hw = max(max_hw, H * W)
        max_k9 = max(max_k9, 9 * Cin)

    priors_pad = jnp.pad(priors.astype(jnp.float32), ((0, Ppad - P), (0, 0)))
    flat_in.append(priors_pad)
    in_specs.append(pl.BlockSpec((Ppad, 4), lambda n: (0, 0)))

    kernel = functools.partial(
        _ssd_head_kernel, level_meta=tuple(level_meta), num_classes=C,
        cv=float(cv), sv=float(sv))

    scores, boxes = pl.pallas_call(
        kernel,
        out_shape=(jax.ShapeDtypeStruct((N, Ppad, C), jnp.float32),
                   jax.ShapeDtypeStruct((N, Ppad, 4), jnp.float32)),
        grid=(N,),
        in_specs=in_specs,
        out_specs=(pl.BlockSpec((None, Ppad, C), lambda n: (n, 0, 0)),
                   pl.BlockSpec((None, Ppad, 4), lambda n: (n, 0, 0))),
        scratch_shapes=[pltpu.VMEM((_round_up(max_hw, 8), max_k9), jnp.float32)],
        compiler_params=pltpu.CompilerParams(
            dimension_semantics=("parallel",),   # batch across v7x's 2 TCs
            vmem_limit_bytes=32 * 1024 * 1024),
    )(*flat_in)

    if Ppad != P:
        scores, boxes = scores[:, :P, :], boxes[:, :P, :]
    # TODO(synk): PostProcessor (per-class score threshold + NMS) has no clean
    # Pallas equivalent; detections are returned pre-NMS as (scores, boxes).
    # TODO(synk): training branch (MultiBoxLoss with hard-negative mining) not ported.
    return scores, boxes


# ----------------------------------------------------------------------------
# Deterministic priors (center form, clipped to [0,1]).  Enumeration order is
# (level, box, h, w) to match the kernel's contiguous per-(level, box) chunks.
# ----------------------------------------------------------------------------
def make_level_priors(H, W, boxes):
    ys = (jnp.arange(H, dtype=jnp.float32) + 0.5) / H
    xs = (jnp.arange(W, dtype=jnp.float32) + 0.5) / W
    cy, cx = jnp.meshgrid(ys, xs, indexing="ij")
    per_box = []
    for b in range(boxes):
        s = 0.15 + 0.04 * b
        ar = 1.0 + 0.5 * b
        w = s * (ar ** 0.5)
        h = s / (ar ** 0.5)
        per_box.append(jnp.stack(
            [cx, cy, jnp.full_like(cx, w), jnp.full_like(cx, h)], axis=-1))
    p = jnp.stack(per_box, axis=0)                     # (boxes, H, W, 4)
    return jnp.clip(p.reshape(-1, 4), 0.0, 1.0)


# ----------------------------------------------------------------------------
# Pure-JAX f32 reference of the same forward (sanity check), using the same
# (level, box, h, w) prior enumeration.
# ----------------------------------------------------------------------------
def ref_forward(features_nhwc, params, priors, num_classes, cv, sv):
    cls_list, reg_list = [], []
    for x, (wc, bc, wr, br) in zip(features_nhwc, params):
        N, H, W, _ = x.shape
        nboxes = wr.shape[-1] // 4
        c = lax.conv_general_dilated(
            x, wc, (1, 1), "SAME", dimension_numbers=("NHWC", "HWIO", "NHWC"),
            precision=lax.Precision.HIGHEST) + bc
        r = lax.conv_general_dilated(
            x, wr, (1, 1), "SAME", dimension_numbers=("NHWC", "HWIO", "NHWC"),
            precision=lax.Precision.HIGHEST) + br
        c = c.reshape(N, H, W, nboxes, num_classes).transpose(0, 3, 1, 2, 4)
        r = r.reshape(N, H, W, nboxes, 4).transpose(0, 3, 1, 2, 4)
        cls_list.append(c.reshape(N, -1, num_classes))
        reg_list.append(r.reshape(N, -1, 4))
    cls_logits = jnp.concatenate(cls_list, axis=1)
    bbox = jnp.concatenate(reg_list, axis=1)
    scores = jax.nn.softmax(cls_logits, axis=2)
    c_xy = bbox[..., :2] * cv * priors[None, :, 2:] + priors[None, :, :2]
    wh = jnp.exp(bbox[..., 2:] * sv) * priors[None, :, 2:]
    boxes = jnp.concatenate([c_xy - wh / 2.0, c_xy + wh / 2.0], axis=-1)
    return scores, boxes


if __name__ == "__main__":
    num_classes = 6
    center_variance, size_variance = 0.1, 0.2
    # (C_in, H, W, boxes_per_location) per feature level
    level_cfg = [(32, 8, 8, 4), (32, 4, 4, 6)]
    N = 2

    key = jax.random.PRNGKey(0)
    features_nhwc, params, prior_chunks = [], [], []
    for (cin, H, W, boxes_pl) in level_cfg:
        key, kf, kwc, kbc, kwr, kbr = jax.random.split(key, 6)
        # layout: generate NCHW (PyTorch conv convention), transpose to NHWC.
        feat_nchw = jax.random.normal(kf, (N, cin, H, W), jnp.float32)
        features_nhwc.append(jnp.transpose(feat_nchw, (0, 2, 3, 1)))
        wc = 0.05 * jax.random.normal(kwc, (3, 3, cin, boxes_pl * num_classes), jnp.float32)
        bc = 0.01 * jax.random.normal(kbc, (boxes_pl * num_classes,), jnp.float32)
        wr = 0.05 * jax.random.normal(kwr, (3, 3, cin, boxes_pl * 4), jnp.float32)
        br = 0.01 * jax.random.normal(kbr, (boxes_pl * 4,), jnp.float32)
        params.append((wc, bc, wr, br))
        prior_chunks.append(make_level_priors(H, W, boxes_pl))
    priors = jnp.concatenate(prior_chunks, axis=0)     # (P, 4), P = 256 + 96 = 352

    fwd = jax.jit(ssd_head_forward, static_argnums=(3, 4, 5))
    scores, boxes = fwd(features_nhwc, params, priors,
                        num_classes, center_variance, size_variance)
    scores = jax.block_until_ready(scores)
    boxes = jax.block_until_ready(boxes)

    # Sanity check against a pure-JAX f32 reference (bf16 MXU stays well inside
    # the 5e-2 tolerance at these magnitudes).
    ref_scores, ref_boxes = ref_forward(
        features_nhwc, params, priors, num_classes, center_variance, size_variance)
    assert scores.shape == (N, priors.shape[0], num_classes)
    assert boxes.shape == (N, priors.shape[0], 4)
    assert bool(jnp.all(jnp.isfinite(scores))) and bool(jnp.all(jnp.isfinite(boxes)))
    assert float(jnp.max(jnp.abs(scores - ref_scores))) < 5e-2
    assert float(jnp.max(jnp.abs(boxes - ref_boxes))) < 5e-2

    print("KERNEL_OK")
</pallas_src>

<mosaic_0001>
module attributes {stable_mosaic.version = 11 : i64} {
  func.func @_ssd_head_kernel(%arg0: i32, %arg1: memref<1x100x32xf32, #tpu.memory_space<vmem>>, %arg2: memref<288x128xbf16, #tpu.memory_space<vmem>>, %arg3: memref<1x128xf32, #tpu.memory_space<vmem>>, %arg4: memref<1x36x32xf32, #tpu.memory_space<vmem>>, %arg5: memref<288x128xbf16, #tpu.memory_space<vmem>>, %arg6: memref<1x128xf32, #tpu.memory_space<vmem>>, %arg7: memref<352x4xf32, #tpu.memory_space<vmem>>, %arg8: memref<1x352x6xf32, #tpu.memory_space<vmem>>, %arg9: memref<1x352x4xf32, #tpu.memory_space<vmem>>, %arg10: memref<64x288xf32, #tpu.memory_space<vmem>>) attributes {dimension_semantics = [#tpu.dimension_semantics<parallel>], iteration_bounds = array<i64: 2>, scalar_prefetch = 0 : i64, scratch_operands = 1 : i64, tpu.core_type = #tpu.core_type<tc>, window_params = [{transform_indices = @transform_0, window_bounds = array<i64: 1, 100, 32>}, {pipeline_mode = #tpu.pipeline_mode<synchronous>, transform_indices = @transform_1, window_bounds = array<i64: 288, 128>}, {pipeline_mode = #tpu.pipeline_mode<synchronous>, transform_indices = @transform_2, window_bounds = array<i64: 1, 128>}, {transform_indices = @transform_3, window_bounds = array<i64: 1, 36, 32>}, {pipeline_mode = #tpu.pipeline_mode<synchronous>, transform_indices = @transform_4, window_bounds = array<i64: 288, 128>}, {pipeline_mode = #tpu.pipeline_mode<synchronous>, transform_indices = @transform_5, window_bounds = array<i64: 1, 128>}, {pipeline_mode = #tpu.pipeline_mode<synchronous>, transform_indices = @transform_6, window_bounds = array<i64: 352, 4>}, {transform_indices = @transform_7, window_bounds = array<i64: 1, 352, 6>}, {transform_indices = @transform_8, window_bounds = array<i64: 1, 352, 4>}]} {
    %c0 = arith.constant 0 : index
    %c0_0 = arith.constant 0 : index
    %c0_1 = arith.constant 0 : index
    %0 = vector.load %arg1[%c0, %c0_0, %c0_1] : memref<1x100x32xf32, #tpu.memory_space<vmem>>, vector<1x10x32xf32>
    %1 = vector.shape_cast %0 : vector<1x10x32xf32> to vector<10x32xf32>
    %2 = vector.extract_strided_slice %1 {offsets = [0, 0], sizes = [8, 32], strides = [1, 1]} : vector<10x32xf32> to vector<8x32xf32>
    %c0_2 = arith.constant 0 : index
    %c0_3 = arith.constant 0 : index
    %3 = vector.load %arg10[%c0_2, %c0_3] : memref<64x288xf32, #tpu.memory_space<vmem>>, vector<8x32xf32>
    tpu.vector_store %arg10[%c0_2, %c0_3], %2 {strides = array<i32>} : memref<64x288xf32, #tpu.memory_space<vmem>>, vector<8x32xf32>,
    %4 = vector.extract_strided_slice %1 {offsets = [1, 0], sizes = [8, 32], strides = [1, 1]} : vector<10x32xf32> to vector<8x32xf32>
    %c0_4 = arith.constant 0 : index
    %c32 = arith.constant 32 : index
    %5 = vector.load %arg10[%c0_4, %c32] : memref<64x288xf32, #tpu.memory_space<vmem>>, vector<8x32xf32>
    tpu.vector_store %arg10[%c0_4, %c32], %4 {strides = array<i32>} : memref<64x288xf32, #tpu.memory_space<vmem>>, vector<8x32xf32>,
    %6 = vector.extract_strided_slice %1 {offsets = [2, 0], sizes = [8, 32], strides = [1, 1]} : vector<10x32xf32> to vector<8x32xf32>
    %c0_5 = arith.constant 0 : index
    %c64 = arith.constant 64 : index
    %7 = vector.load %arg10[%c0_5, %c64] : memref<64x288xf32, #tpu.memory_space<vmem>>, vector<8x32xf32>
    tpu.vector_store %arg10[%c0_5, %c64], %6 {strides = array<i32>} : memref<64x288xf32, #tpu.memory_space<vmem>>, vector<8x32xf32>,
    %c0_6 = arith.constant 0 : index
    %c10 = arith.constant 10 : index
    %c0_7 = arith.constant 0 : index
    %8 = vector.load %arg1[%c0_6, %c10, %c0_7] : memref<1x100x32xf32, #tpu.memory_space<vmem>>, vector<1x10x32xf32>
    %9 = vector.shape_cast %8 : vector<1x10x32xf32> to vector<10x32xf32>
    %10 = vector.extract_strided_slice %9 {offsets = [0, 0], sizes = [8, 32], strides = [1, 1]} : vector<10x32xf32> to vector<8x32xf32>
    %c8 = arith.constant 8 : index
    %c0_8 = arith.constant 0 : index
    %11 = vector.load %arg10[%c8, %c0_8] : memref<64x288xf32, #tpu.memory_space<vmem>>, vector<8x32xf32>
    tpu.vector_store %arg10[%c8, %c0_8], %10 {strides = array<i32>} : memref<64x288xf32, #tpu.memory_space<vmem>>, vector<8x32xf32>,
    %12 = vector.extract_strided_slice %9 {offsets = [1, 0], sizes = [8, 32], strides = [1, 1]} : vector<10x32xf32> to vector<8x32xf32>
    %c8_9 = arith.constant 8 : index
    %c32_10 = arith.constant 32 : index
    %13 = vector.load %arg10[%c8_9, %c32_10] : memref<64x288xf32, #tpu.memory_space<vmem>>, vector<8x32xf32>
    tpu.vector_store %arg10[%c8_9, %c32_10], %12 {strides = array<i32>} : memref<64x288xf32, #tpu.memory_space<vmem>>, vector<8x32xf32>,
    %14 = vector.extract_strided_slice %9 {offsets = [2, 0], sizes = [8, 32], strides = [1, 1]} : vector<10x32xf32> to vector<8x32xf32>
    %c8_11 = arith.constant 8 : index
    %c64_12 = arith.constant 64 : index
    %15 = vector.load %arg10[%c8_11, %c64_12] : memref<64x288xf32, #tpu.memory_space<vmem>>, vector<8x32xf32>
    tpu.vector_store %arg10[%c8_11, %c64_12], %14 {strides = array<i32>} : memref<64x288xf32, #tpu.memory_space<vmem>>, vector<8x32xf32>,
    %c0_13 = arith.constant 0 : index
    %c20 = arith.constant 20 : index
    %c0_14 = arith.constant 0 : index
    %16 = vector.load %arg1[%c0_13, %c20, %c0_14] : memref<1x100x32xf32, #tpu.memory_space<vmem>>, vector<1x10x32xf32>
    %17 = vector.shape_cast %16 : vector<1x10x32xf32> to vector<10x32xf32>
    %18 = vector.extract_strided_slice %17 {offsets = [0, 0], sizes = [8, 32], strides = [1, 1]} : vector<10x32xf32> to vector<8x32xf32>
    %c16 = arith.constant 16 : index
    %c0_15 = arith.constant 0 : index
    %19 = vector.load %arg10[%c16, %c0_15] : memref<64x288xf32, #tpu.memory_space<vmem>>, vector<8x32xf32>
    tpu.vector_store %arg10[%c16, %c0_15], %18 {strides = array<i32>} : memref<64x288xf32, #tpu.memory_space<vmem>>, vector<8x32xf32>,
    %20 = vector.extract_strided_slice %17 {offsets = [1, 0], sizes = [8, 32], strides = [1, 1]} : vector<10x32xf32> to vector<8x32xf32>
    %c16_16 = arith.constant 16 : index
    %c32_17 = arith.constant 32 : index
    %21 = vector.load %arg10[%c16_16, %c32_17] : memref<64x288xf32, #tpu.memory_space<vmem>>, vector<8x32xf32>
    tpu.vector_store %arg10[%c16_16, %c32_17], %20 {strides = array<i32>} : memref<64x288xf32, #tpu.memory_space<vmem>>, vector<8x32xf32>,
    %22 = vector.extract_strided_slice %17 {offsets = [2, 0], sizes = [8, 32], strides = [1, 1]} : vector<10x32xf32> to vector<8x32xf32>
    %c16_18 = arith.constant 16 : index
    %c64_19 = arith.constant 64 : index
    %23 = vector.load %arg10[%c16_18, %c64_19] : memref<64x288xf32, #tpu.memory_space<vmem>>, vector<8x32xf32>
    tpu.vector_store %arg10[%c16_18, %c64_19], %22 {strides = array<i32>} : memref<64x288xf32, #tpu.memory_space<vmem>>, vector<8x32xf32>,
    %c0_20 = arith.constant 0 : index
    %c30 = arith.constant 30 : index
    %c0_21 = arith.constant 0 : index
    %24 = vector.load %arg1[%c0_20, %c30, %c0_21] : memref<1x100x32xf32, #tpu.memory_space<vmem>>, vector<1x10x32xf32>
    %25 = vector.shape_cast %24 : vector<1x10x32xf32> to vector<10x32xf32>
    %26 = vector.extract_strided_slice %25 {offsets = [0, 0], sizes = [8, 32], strides = [1, 1]} : vector<10x32xf32> to vector<8x32xf32>
    %c24 = arith.constant 24 : index
    %c0_22 = arith.constant 0 : index
    %27 = vector.load %arg10[%c24, %c0_22] : memref<64x288xf32, #tpu.memory_space<vmem>>, vector<8x32xf32>
    tpu.vector_store %arg10[%c24, %c0_22], %26 {strides = array<i32>} : memref<64x288xf32, #tpu.memory_space<vmem>>, vector<8x32xf32>,
    %28 = vector.extract_strided_slice %25 {offsets = [1, 0], sizes = [8, 32], strides = [1, 1]} : vector<10x32xf32> to vector<8x32xf32>
    %c24_23 = arith.constant 24 : index
    %c32_24 = arith.constant 32 : index
    %29 = vector.load %arg10[%c24_23, %c32_24] : memref<64x288xf32, #tpu.memory_space<vmem>>, vector<8x32xf32>
    tpu.vector_store %arg10[%c24_23, %c32_24], %28 {strides = array<i32>} : memref<64x288xf32, #tpu.memory_space<vmem>>, vector<8x32xf32>,
    %30 = vector.extract_strided_slice %25 {offsets = [2, 0], sizes = [8, 32], strides = [1, 1]} : vector<10x32xf32> to vector<8x32xf32>
    %c24_25 = arith.constant 24 : index
    %c64_26 = arith.constant 64 : index
    %31 = vector.load %arg10[%c24_25, %c64_26] : memref<64x288xf32, #tpu.memory_space<vmem>>, vector<8x32xf32>
    tpu.vector_store %arg10[%c24_25, %c64_26], %30 {strides = array<i32>} : memref<64x288xf32, #tpu.memory_space<vmem>>, vector<8x32xf32>,
    %c0_27 = arith.constant 0 : index
    %c40 = arith.constant 40 : index
    %c0_28 = arith.constant 0 : index
    %32 = vector.load %arg1[%c0_27, %c40, %c0_28] : memref<1x100x32xf32, #tpu.memory_space<vmem>>, vector<1x10x32xf32>
    %33 = vector.shape_cast %32 : vector<1x10x32xf32> to vector<10x32xf32>
    %34 = vector.extract_strided_slice %33 {offsets = [0, 0], sizes = [8, 32], strides = [1, 1]} : vector<10x32xf32> to vector<8x32xf32>
    %c32_29 = arith.constant 32 : index
    %c0_30 = arith.constant 0 : index
    %35 = vector.load %arg10[%c32_29, %c0_30] : memref<64x288xf32, #tpu.memory_space<vmem>>, vector<8x32xf32>
    tpu.vector_store %arg10[%c32_29, %c0_30], %34 {strides = array<i32>} : memref<64x288xf32, #tpu.memory_space<vmem>>, vector<8x32xf32>,
    %36 = vector.extract_strided_slice %33 {offsets = [1, 0], sizes = [8, 32], strides = [1, 1]} : vector<10x32xf32> to vector<8x32xf32>
    %c32_31 = arith.constant 32 : index
    %c32_32 = arith.constant 32 : index
    %37 = vector.load %arg10[%c32_31, %c32_32] : memref<64x288xf32, #tpu.memory_space<vmem>>, vector<8x32xf32>
    tpu.vector_store %arg10[%c32_31, %c32_32], %36 {strides = array<i32>} : memref<64x288xf32, #tpu.memory_space<vmem>>, vector<8x32xf32>,
    %38 = vector.extract_strided_slice %33 {offsets = [2, 0], sizes = [8, 32], strides = [1, 1]} : vector<10x32xf32> to vector<8x32xf32>
    %c32_33 = arith.constant 32 : index
    %c64_34 = arith.constant 64 : index
    %39 = vector.load %arg10[%c32_33, %c64_34] : memref<64x288xf32, #tpu.memory_space<vmem>>, vector<8x32xf32>
    tpu.vector_store %arg10[%c32_33, %c64_34], %38 {strides = array<i32>} : memref<64x288xf32, #tpu.memory_space<vmem>>, vector<8x32xf32>,
    %c0_35 = arith.constant 0 : index
    %c50 = arith.constant 50 : index
    %c0_36 = arith.constant 0 : index
    %40 = vector.load %arg1[%c0_35, %c50, %c0_36] : memref<1x100x32xf32, #tpu.memory_space<vmem>>, vector<1x10x32xf32>
    %41 = vector.shape_cast %40 : vector<1x10x32xf32> to vector<10x32xf32>
    %42 = vector.extract_strided_slice %41 {offsets = [0, 0], sizes = [8, 32], strides = [1, 1]} : vector<10x32xf32> to vector<8x32xf32>
    %c40_37 = arith.constant 40 : index
    %c0_38 = arith.constant 0 : index
    %43 = vector.load %arg10[%c40_37, %c0_38] : memref<64x288xf32, #tpu.memory_space<vmem>>, vector<8x32xf32>
    tpu.vector_store %arg10[%c40_37, %c0_38], %42 {strides = array<i32>} : memref<64x288xf32, #tpu.memory_space<vmem>>, vector<8x32xf32>,
    %44 = vector.extract_strided_slice %41 {offsets = [1, 0], sizes = [8, 32], strides = [1, 1]} : vector<10x32xf32> to vector<8x32xf32>
    %c40_39 = arith.constant 40 : index
    %c32_40 = arith.constant 32 : index
    %45 = vector.load %arg10[%c40_39, %c32_40] : memref<64x288xf32, #tpu.memory_space<vmem>>, vector<8x32xf32>
    tpu.vector_store %arg10[%c40_39, %c32_40], %44 {strides = array<i32>} : memref<64x288xf32, #tpu.memory_space<vmem>>, vector<8x32xf32>,
    %46 = vector.extract_strided_slice %41 {offsets = [2, 0], sizes = [8, 32], strides = [1, 1]} : vector<10x32xf32> to vector<8x32xf32>
    %c40_41 = arith.constant 40 : index
    %c64_42 = arith.constant 64 : index
    %47 = vector.load %arg10[%c40_41, %c64_42] : memref<64x288xf32, #tpu.memory_space<vmem>>, vector<8x32xf32>
    tpu.vector_store %arg10[%c40_41, %c64_42], %46 {strides = array<i32>} : memref<64x288xf32, #tpu.memory_space<vmem>>, vector<8x32xf32>,
    %c0_43 = arith.constant 0 : index
    %c60 = arith.constant 60 : index
    %c0_44 = arith.constant 0 : index
    %48 = vector.load %arg1[%c0_43, %c60, %c0_44] : memref<1x100x32xf32, #tpu.memory_space<vmem>>, vector<1x10x32xf32>
    %49 = vector.shape_cast %48 : vector<1x10x32xf32> to vector<10x32xf32>
    %50 = vector.extract_strided_slice %49 {offsets = [0, 0], sizes = [8, 32], strides = [1, 1]} : vector<10x32xf32> to vector<8x32xf32>
    %c48 = arith.constant 48 : index
    %c0_45 = arith.constant 0 : index
    %51 = vector.load %arg10[%c48, %c0_45] : memref<64x288xf32, #tpu.memory_space<vmem>>, vector<8x32xf32>
    tpu.vector_store %arg10[%c48, %c0_45], %50 {strides = array<i32>} : memref<64x288xf32, #tpu.memory_space<vmem>>, vector<8x32xf32>,
    %52 = vector.extract_strided_slice %49 {offsets = [1, 0], sizes = [8, 32], strides = [1, 1]} : vector<10x32xf32> to vector<8x32xf32>
    %c48_46 = arith.constant 48 : index
    %c32_47 = arith.constant 32 : index
    %53 = vector.load %arg10[%c48_46, %c32_47] : memref<64x288xf32, #tpu.memory_space<vmem>>, vector<8x32xf32>
    tpu.vector_store %arg10[%c48_46, %c32_47], %52 {strides = array<i32>} : memref<64x288xf32, #tpu.memory_space<vmem>>, vector<8x32xf32>,
    %54 = vector.extract_strided_slice %49 {offsets = [2, 0], sizes = [8, 32], strides = [1, 1]} : vector<10x32xf32> to vector<8x32xf32>
    %c48_48 = arith.constant 48 : index
    %c64_49 = arith.constant 64 : index
    %55 = vector.load %arg10[%c48_48, %c64_49] : memref<64x288xf32, #tpu.memory_space<vmem>>, vector<8x32xf32>
    tpu.vector_store %arg10[%c48_48, %c64_49], %54 {strides = array<i32>} : memref<64x288xf32, #tpu.memory_space<vmem>>, vector<8x32xf32>,
    %c0_50 = arith.constant 0 : index
    %c70 = arith.constant 70 : index
    %c0_51 = arith.constant 0 : index
    %56 = vector.load %arg1[%c0_50, %c70, %c0_51] : memref<1x100x32xf32, #tpu.memory_space<vmem>>, vector<1x10x32xf32>
    %57 = vector.shape_cast %56 : vector<1x10x32xf32> to vector<10x32xf32>
    %58 = vector.extract_strided_slice %57 {offsets = [0, 0], sizes = [8, 32], strides = [1, 1]} : vector<10x32xf32> to vector<8x32xf32>
    %c56 = arith.constant 56 : index
    %c0_52 = arith.constant 0 : index
    %59 = vector.load %arg10[%c56, %c0_52] : memref<64x288xf32, #tpu.memory_space<vmem>>, vector<8x32xf32>
    tpu.vector_store %arg10[%c56, %c0_52], %58 {strides = array<i32>} : memref<64x288xf32, #tpu.memory_space<vmem>>, vector<8x32xf32>,
    %60 = vector.extract_strided_slice %57 {offsets = [1, 0], sizes = [8, 32], strides = [1, 1]} : vector<10x32xf32> to vector<8x32xf32>
    %c56_53 = arith.constant 56 : index
    %c32_54 = arith.constant 32 : index
    %61 = vector.load %arg10[%c56_53, %c32_54] : memref<64x288xf32, #tpu.memory_space<vmem>>, vector<8x32xf32>
    tpu.vector_store %arg10[%c56_53, %c32_54], %60 {strides = array<i32>} : memref<64x288xf32, #tpu.memory_space<vmem>>, vector<8x32xf32>,
    %62 = vector.extract_strided_slice %57 {offsets = [2, 0], sizes = [8, 32], strides = [1, 1]} : vector<10x32xf32> to vector<8x32xf32>
    %c56_55 = arith.constant 56 : index
    %c64_56 = arith.constant 64 : index
    %63 = vector.load %arg10[%c56_55, %c64_56] : memref<64x288xf32, #tpu.memory_space<vmem>>, vector<8x32xf32>
    tpu.vector_store %arg10[%c56_55, %c64_56], %62 {strides = array<i32>} : memref<64x288xf32, #tpu.memory_space<vmem>>, vector<8x32xf32>,
    %c0_57 = arith.constant 0 : index
    %c10_58 = arith.constant 10 : index
    %c0_59 = arith.constant 0 : index
    %64 = vector.load %arg1[%c0_57, %c10_58, %c0_59] : memref<1x100x32xf32, #tpu.memory_space<vmem>>, vector<1x10x32xf32>
    %65 = vector.shape_cast %64 : vector<1x10x32xf32> to vector<10x32xf32>
    %66 = vector.extract_strided_slice %65 {offsets = [0, 0], sizes = [8, 32], strides = [1, 1]} : vector<10x32xf32> to vector<8x32xf32>
    %c0_60 = arith.constant 0 : index
    %c96 = arith.constant 96 : index
    %67 = vector.load %arg10[%c0_60, %c96] : memref<64x288xf32, #tpu.memory_space<vmem>>, vector<8x32xf32>
    tpu.vector_store %arg10[%c0_60, %c96], %66 {strides = array<i32>} : memref<64x288xf32, #tpu.memory_space<vmem>>, vector<8x32xf32>,
    %68 = vector.extract_strided_slice %65 {offsets = [1, 0], sizes = [8, 32], strides = [1, 1]} : vector<10x32xf32> to vector<8x32xf32>
    %c0_61 = arith.constant 0 : index
    %c128 = arith.constant 128 : index
    %69 = vector.load %arg10[%c0_61, %c128] : memref<64x288xf32, #tpu.memory_space<vmem>>, vector<8x32xf32>
    tpu.vector_store %arg10[%c0_61, %c128], %68 {strides = array<i32>} : memref<64x288xf32, #tpu.memory_space<vmem>>, vector<8x32xf32>,
    %70 = vector.extract_strided_slice %65 {offsets = [2, 0], sizes = [8, 32], strides = [1, 1]} : vector<10x32xf32> to vector<8x32xf32>
    %c0_62 = arith.constant 0 : index
    %c160 = arith.constant 160 : index
    %71 = vector.load %arg10[%c0_62, %c160] : memref<64x288xf32, #tpu.memory_space<vmem>>, vector<8x32xf32>
    tpu.vector_store %arg10[%c0_62, %c160], %70 {strides = array<i32>} : memref<64x288xf32, #tpu.memory_space<vmem>>, vector<8x32xf32>,
    %c0_63 = arith.constant 0 : index
    %c20_64 = arith.constant 20 : index
    %c0_65 = arith.constant 0 : index
    %72 = vector.load %arg1[%c0_63, %c20_64, %c0_65] : memref<1x100x32xf32, #tpu.memory_space<vmem>>, vector<1x10x32xf32>
    %73 = vector.shape_cast %72 : vector<1x10x32xf32> to vector<10x32xf32>
    %74 = vector.extract_strided_slice %73 {offsets = [0, 0], sizes = [8, 32], strides = [1, 1]} : vector<10x32xf32> to vector<8x32xf32>
    %c8_66 = arith.constant 8 : index
    %c96_67 = arith.constant 96 : index
    %75 = vector.load %arg10[%c8_66, %c96_67] : memref<64x288xf32, #tpu.memory_space<vmem>>, vector<8x32xf32>
    tpu.vector_store %arg10[%c8_66, %c96_67], %74 {strides = array<i32>} : memref<64x288xf32, #tpu.memory_space<vmem>>, vector<8x32xf32>,
    %76 = vector.extract_strided_slice %73 {offsets = [1, 0], sizes = [8, 32], strides = [1, 1]} : vector<10x32xf32> to vector<8x32xf32>
    %c8_68 = arith.constant 8 : index
    %c128_69 = arith.constant 128 : index
    %77 = vector.load %arg10[%c8_68, %c128_69] : memref<64x288xf32, #tpu.memory_space<vmem>>, vector<8x32xf32>
    tpu.vector_store %arg10[%c8_68, %c128_69], %76 {strides = array<i32>} : memref<64x288xf32, #tpu.memory_space<vmem>>, vector<8x32xf32>,
    %78 = vector.extract_strided_slice %73 {offsets = [2, 0], sizes = [8, 32], strides = [1, 1]} : vector<10x32xf32> to vector<8x32xf32>
    %c8_70 = arith.constant 8 : index
    %c160_71 = arith.constant 160 : index
    %79 = vector.load %arg10[%c8_70, %c160_71] : memref<64x288xf32, #tpu.memory_space<vmem>>, vector<8x32xf32>
    tpu.vector_store %arg10[%c8_70, %c160_71], %78 {strides = array<i32>} : memref<64x288xf32, #tpu.memory_space<vmem>>, vector<8x32xf32>,
    %c0_72 = arith.constant 0 : index
    %c30_73 = arith.constant 30 : index
    %c0_74 = arith.constant 0 : index
    %80 = vector.load %arg1[%c0_72, %c30_73, %c0_74] : memref<1x100x32xf32, #tpu.memory_space<vmem>>, vector<1x10x32xf32>
    %81 = vector.shape_cast %80 : vector<1x10x32xf32> to vector<10x32xf32>
    %82 = vector.extract_strided_slice %81 {offsets = [0, 0], sizes = [8, 32], strides = [1, 1]} : vector<10x32xf32> to vector<8x32xf32>
    %c16_75 = arith.constant 16 : index
    %c96_76 = arith.constant 96 : index
    %83 = vector.load %arg10[%c16_75, %c96_76] : memref<64x288xf32, #tpu.memory_space<vmem>>, vector<8x32xf32>
    tpu.vector_store %arg10[%c16_75, %c96_76], %82 {strides = array<i32>} : memref<64x288xf32, #tpu.memory_space<vmem>>, vector<8x32xf32>,
    %84 = vector.extract_strided_slice %81 {offsets = [1, 0], sizes = [8, 32], strides = [1, 1]} : vector<10x32xf32> to vector<8x32xf32>
    %c16_77 = arith.constant 16 : index
    %c128_78 = arith.constant 128 : index
    %85 = vector.load %arg10[%c16_77, %c128_78] : memref<64x288xf32, #tpu.memory_space<vmem>>, vector<8x32xf32>
    tpu.vector_store %arg10[%c16_77, %c128_78], %84 {strides = array<i32>} : memref<64x288xf32, #tpu.memory_space<vmem>>, vector<8x32xf32>,
    %86 = vector.extract_strided_slice %81 {offsets = [2, 0], sizes = [8, 32], strides = [1, 1]} : vector<10x32xf32> to vector<8x32xf32>
    %c16_79 = arith.constant 16 : index
    %c160_80 = arith.constant 160 : index
    %87 = vector.load %arg10[%c16_79, %c160_80] : memref<64x288xf32, #tpu.memory_space<vmem>>, vector<8x32xf32>
    tpu.vector_store %arg10[%c16_79, %c160_80], %86 {strides = array<i32>} : memref<64x288xf32, #tpu.memory_space<vmem>>, vector<8x32xf32>,
    %c0_81 = arith.constant 0 : index
    %c40_82 = arith.constant 40 : index
    %c0_83 = arith.constant 0 : index
    %88 = vector.load %arg1[%c0_81, %c40_82, %c0_83] : memref<1x100x32xf32, #tpu.memory_space<vmem>>, vector<1x10x32xf32>
    %89 = vector.shape_cast %88 : vector<1x10x32xf32> to vector<10x32xf32>
    %90 = vector.extract_strided_slice %89 {offsets = [0, 0], sizes = [8, 32], strides = [1, 1]} : vector<10x32xf32> to vector<8x32xf32>
    %c24_84 = arith.constant 24 : index
    %c96_85 = arith.constant 96 : index
    %91 = vector.load %arg10[%c24_84, %c96_85] : memref<64x288xf32, #tpu.memory_space<vmem>>, vector<8x32xf32>
    tpu.vector_store %arg10[%c24_84, %c96_85], %90 {strides = array<i32>} : memref<64x288xf32, #tpu.memory_space<vmem>>, vector<8x32xf32>,
    %92 = vector.extract_strided_slice %89 {offsets = [1, 0], sizes = [8, 32], strides = [1, 1]} : vector<10x32xf32> to vector<8x32xf32>
    %c24_86 = arith.constant 24 : index
    %c128_87 = arith.constant 128 : index
    %93 = vector.load %arg10[%c24_86, %c128_87] : memref<64x288xf32, #tpu.memory_space<vmem>>, vector<8x32xf32>
    tpu.vector_store %arg10[%c24_86, %c128_87], %92 {strides = array<i32>} : memref<64x288xf32, #tpu.memory_space<vmem>>, vector<8x32xf32>,
    %94 = vector.extract_strided_slice %89 {offsets = [2, 0], sizes = [8, 32], strides = [1, 1]} : vector<10x32xf32> to vector<8x32xf32>
    %c24_88 = arith.constant 24 : index
    %c160_89 = arith.constant 160 : index
    %95 = vector.load %arg10[%c24_88, %c160_89] : memref<64x288xf32, #tpu.memory_space<vmem>>, vector<8x32xf32>
    tpu.vector_store %arg10[%c24_88, %c160_89], %94 {strides = array<i32>} : memref<64x288xf32, #tpu.memory_space<vmem>>, vector<8x32xf32>,
    %c0_90 = arith.constant 0 : index
    %c50_91 = arith.constant 50 : index
    %c0_92 = arith.constant 0 : index
    %96 = vector.load %arg1[%c0_90, %c50_91, %c0_92] : memref<1x100x32xf32, #tpu.memory_space<vmem>>, vector<1x10x32xf32>
    %97 = vector.shape_cast %96 : vector<1x10x32xf32> to vector<10x32xf32>
    %98 = vector.extract_strided_slice %97 {offsets = [0, 0], sizes = [8, 32], strides = [1, 1]} : vector<10x32xf32> to vector<8x32xf32>
    %c32_93 = arith.constant 32 : index
    %c96_94 = arith.constant 96 : index
    %99 = vector.load %arg10[%c32_93, %c96_94] : memref<64x288xf32, #tpu.memory_space<vmem>>, vector<8x32xf32>
    tpu.vector_store %arg10[%c32_93, %c96_94], %98 {strides = array<i32>} : memref<64x288xf32, #tpu.memory_space<vmem>>, vector<8x32xf32>,
    %100 = vector.extract_strided_slice %97 {offsets = [1, 0], sizes = [8, 32], strides = [1, 1]} : vector<10x32xf32> to vector<8x32xf32>
    %c32_95 = arith.constant 32 : index
    %c128_96 = arith.constant 128 : index
    %101 = vector.load %arg10[%c32_95, %c128_96] : memref<64x288xf32, #tpu.memory_space<vmem>>, vector<8x32xf32>
    tpu.vector_store %arg10[%c32_95, %c128_96], %100 {strides = array<i32>} : memref<64x288xf32, #tpu.memory_space<vmem>>, vector<8x32xf32>,
    %102 = vector.extract_strided_slice %97 {offsets = [2, 0], sizes = [8, 32], strides = [1, 1]} : vector<10x32xf32> to vector<8x32xf32>
    %c32_97 = arith.constant 32 : index
    %c160_98 = arith.constant 160 : index
    %103 = vector.load %arg10[%c32_97, %c160_98] : memref<64x288xf32, #tpu.memory_space<vmem>>, vector<8x32xf32>
    tpu.vector_store %arg10[%c32_97, %c160_98], %102 {strides = array<i32>} : memref<64x288xf32, #tpu.memory_space<vmem>>, vector<8x32xf32>,
    %c0_99 = arith.constant 0 : index
    %c60_100 = arith.constant 60 : index
    %c0_101 = arith.constant 0 : index
    %104 = vector.load %arg1[%c0_99, %c60_100, %c0_101] : memref<1x100x32xf32, #tpu.memory_space<vmem>>, vector<1x10x32xf32>
    %105 = vector.shape_cast %104 : vector<1x10x32xf32> to vector<10x32xf32>
    %106 = vector.extract_strided_slice %105 {offsets = [0, 0], sizes = [8, 32], strides = [1, 1]} : vector<10x32xf32> to vector<8x32xf32>
    %c40_102 = arith.constant 40 : index
    %c96_103 = arith.constant 96 : index
    %107 = vector.load %arg10[%c40_102, %c96_103] : memref<64x288xf32, #tpu.memory_space<vmem>>, vector<8x32xf32>
    tpu.vector_store %arg10[%c40_102, %c96_103], %106 {strides = array<i32>} : memref<64x288xf32, #tpu.memory_space<vmem>>, vector<8x32xf32>,
    %108 = vector.extract_strided_slice %105 {offsets = [1, 0], sizes = [8, 32], strides = [1, 1]} : vector<10x32xf32> to vector<8x32xf32>
    %c40_104 = arith.constant 40 : index
    %c128_105 = arith.constant 128 : index
    %109 = vector.load %arg10[%c40_104, %c128_105] : memref<64x288xf32, #tpu.memory_space<vmem>>, vector<8x32xf32>
    tpu.vector_store %arg10[%c40_104, %c128_105], %108 {strides = array<i32>} : memref<64x288xf32, #tpu.memory_space<vmem>>, vector<8x32xf32>,
    %110 = vector.extract_strided_slice %105 {offsets = [2, 0], sizes = [8, 32], strides = [1, 1]} : vector<10x32xf32> to vector<8x32xf32>
    %c40_106 = arith.constant 40 : index
    %c160_107 = arith.constant 160 : index
    %111 = vector.load %arg10[%c40_106, %c160_107] : memref<64x288xf32, #tpu.memory_space<vmem>>, vector<8x32xf32>
    tpu.vector_store %arg10[%c40_106, %c160_107], %110 {strides = array<i32>} : memref<64x288xf32, #tpu.memory_space<vmem>>, vector<8x32xf32>,
    %c0_108 = arith.constant 0 : index
    %c70_109 = arith.constant 70 : index
    %c0_110 = arith.constant 0 : index
    %112 = vector.load %arg1[%c0_108, %c70_109, %c0_110] : memref<1x100x32xf32, #tpu.memory_space<vmem>>, vector<1x10x32xf32>
    %113 = vector.shape_cast %112 : vector<1x10x32xf32> to vector<10x32xf32>
    %114 = vector.extract_strided_slice %113 {offsets = [0, 0], sizes = [8, 32], strides = [1, 1]} : vector<10x32xf32> to vector<8x32xf32>
    %c48_111 = arith.constant 48 : index
    %c96_112 = arith.constant 96 : index
    %115 = vector.load %arg10[%c48_111, %c96_112] : memref<64x288xf32, #tpu.memory_space<vmem>>, vector<8x32xf32>
    tpu.vector_store %arg10[%c48_111, %c96_112], %114 {strides = array<i32>} : memref<64x288xf32, #tpu.memory_space<vmem>>, vector<8x32xf32>,
    %116 = vector.extract_strided_slice %113 {offsets = [1, 0], sizes = [8, 32], strides = [1, 1]} : vector<10x32xf32> to vector<8x32xf32>
    %c48_113 = arith.constant 48 : index
    %c128_114 = arith.constant 128 : index
    %117 = vector.load %arg10[%c48_113, %c128_114] : memref<64x288xf32, #tpu.memory_space<vmem>>, vector<8x32xf32>
    tpu.vector_store %arg10[%c48_113, %c128_114], %116 {strides = array<i32>} : memref<64x288xf32, #tpu.memory_space<vmem>>, vector<8x32xf32>,
    %118 = vector.extract_strided_slice %113 {offsets = [2, 0], sizes = [8, 32], strides = [1, 1]} : vector<10x32xf32> to vector<8x32xf32>
    %c48_115 = arith.constant 48 : index
    %c160_116 = arith.constant 160 : index
    %119 = vector.load %arg10[%c48_115, %c160_116] : memref<64x288xf32, #tpu.memory_space<vmem>>, vector<8x32xf32>
    tpu.vector_store %arg10[%c48_115, %c160_116], %118 {strides = array<i32>} : memref<64x288xf32, #tpu.memory_space<vmem>>, vector<8x32xf32>,
    %c0_117 = arith.constant 0 : index
    %c80 = arith.constant 80 : index
    %c0_118 = arith.constant 0 : index
    %120 = vector.load %arg1[%c0_117, %c80, %c0_118] : memref<1x100x32xf32, #tpu.memory_space<vmem>>, vector<1x10x32xf32>
    %121 = vector.shape_cast %120 : vector<1x10x32xf32> to vector<10x32xf32>
    %122 = vector.extract_strided_slice %121 {offsets = [0, 0], sizes = [8, 32], strides = [1, 1]} : vector<10x32xf32> to vector<8x32xf32>
    %c56_119 = arith.constant 56 : index
    %c96_120 = arith.constant 96 : index
    %123 = vector.load %arg10[%c56_119, %c96_120] : memref<64x288xf32, #tpu.memory_space<vmem>>, vector<8x32xf32>
    tpu.vector_store %arg10[%c56_119, %c96_120], %122 {strides = array<i32>} : memref<64x288xf32, #tpu.memory_space<vmem>>, vector<8x32xf32>,
    %124 = vector.extract_strided_slice %121 {offsets = [1, 0], sizes = [8, 32], strides = [1, 1]} : vector<10x32xf32> to vector<8x32xf32>
    %c56_121 = arith.constant 56 : index
    %c128_122 = arith.constant 128 : index
    %125 = vector.load %arg10[%c56_121, %c128_122] : memref<64x288xf32, #tpu.memory_space<vmem>>, vector<8x32xf32>
    tpu.vector_store %arg10[%c56_121, %c128_122], %124 {strides = array<i32>} : memref<64x288xf32, #tpu.memory_space<vmem>>, vector<8x32xf32>,
    %126 = vector.extract_strided_slice %121 {offsets = [2, 0], sizes = [8, 32], strides = [1, 1]} : vector<10x32xf32> to vector<8x32xf32>
    %c56_123 = arith.constant 56 : index
    %c160_124 = arith.constant 160 : index
    %127 = vector.load %arg10[%c56_123, %c160_124] : memref<64x288xf32, #tpu.memory_space<vmem>>, vector<8x32xf32>
    tpu.vector_store %arg10[%c56_123, %c160_124], %126 {strides = array<i32>} : memref<64x288xf32, #tpu.memory_space<vmem>>, vector<8x32xf32>,
    %c0_125 = arith.constant 0 : index
    %c20_126 = arith.constant 20 : index
    %c0_127 = arith.constant 0 : index
    %128 = vector.load %arg1[%c0_125, %c20_126, %c0_127] : memref<1x100x32xf32, #tpu.memory_space<vmem>>, vector<1x10x32xf32>
    %129 = vector.shape_cast %128 : vector<1x10x32xf32> to vector<10x32xf32>
    %130 = vector.extract_strided_slice %129 {offsets = [0, 0], sizes = [8, 32], strides = [1, 1]} : vector<10x32xf32> to vector<8x32xf32>
    %c0_128 = arith.constant 0 : index
    %c192 = arith.constant 192 : index
    %131 = vector.load %arg10[%c0_128, %c192] : memref<64x288xf32, #tpu.memory_space<vmem>>, vector<8x32xf32>
    tpu.vector_store %arg10[%c0_128, %c192], %130 {strides = array<i32>} : memref<64x288xf32, #tpu.memory_space<vmem>>, vector<8x32xf32>,
    %132 = vector.extract_strided_slice %129 {offsets = [1, 0], sizes = [8, 32], strides = [1, 1]} : vector<10x32xf32> to vector<8x32xf32>
    %c0_129 = arith.constant 0 : index
    %c224 = arith.constant 224 : index
    %133 = vector.load %arg10[%c0_129, %c224] : memref<64x288xf32, #tpu.memory_space<vmem>>, vector<8x32xf32>
    tpu.vector_store %arg10[%c0_129, %c224], %132 {strides = array<i32>} : memref<64x288xf32, #tpu.memory_space<vmem>>, vector<8x32xf32>,
    %134 = vector.extract_strided_slice %129 {offsets = [2, 0], sizes = [8, 32], strides = [1, 1]} : vector<10x32xf32> to vector<8x32xf32>
    %c0_130 = arith.constant 0 : index
    %c256 = arith.constant 256 : index
    %135 = vector.load %arg10[%c0_130, %c256] : memref<64x288xf32, #tpu.memory_space<vmem>>, vector<8x32xf32>
    tpu.vector_store %arg10[%c0_130, %c256], %134 {strides = array<i32>} : memref<64x288xf32, #tpu.memory_space<vmem>>, vector<8x32xf32>,
    %c0_131 = arith.constant 0 : index
    %c30_132 = arith.constant 30 : index
    %c0_133 = arith.constant 0 : index
    %136 = vector.load %arg1[%c0_131, %c30_132, %c0_133] : memref<1x100x32xf32, #tpu.memory_space<vmem>>, vector<1x10x32xf32>
    %137 = vector.shape_cast %136 : vector<1x10x32xf32> to vector<10x32xf32>
    %138 = vector.extract_strided_slice %137 {offsets = [0, 0], sizes = [8, 32], strides = [1, 1]} : vector<10x32xf32> to vector<8x32xf32>
    %c8_134 = arith.constant 8 : index
    %c192_135 = arith.constant 192 : index
    %139 = vector.load %arg10[%c8_134, %c192_135] : memref<64x288xf32, #tpu.memory_space<vmem>>, vector<8x32xf32>
    tpu.vector_store %arg10[%c8_134, %c192_135], %138 {strides = array<i32>} : memref<64x288xf32, #tpu.memory_space<vmem>>, vector<8x32xf32>,
    %140 = vector.extract_strided_slice %137 {offsets = [1, 0], sizes = [8, 32], strides = [1, 1]} : vector<10x32xf32> to vector<8x32xf32>
    %c8_136 = arith.constant 8 : index
    %c224_137 = arith.constant 224 : index
    %141 = vector.load %arg10[%c8_136, %c224_137] : memref<64x288xf32, #tpu.memory_space<vmem>>, vector<8x32xf32>
    tpu.vector_store %arg10[%c8_136, %c224_137], %140 {strides = array<i32>} : memref<64x288xf32, #tpu.memory_space<vmem>>, vector<8x32xf32>,
    %142 = vector.extract_strided_slice %137 {offsets = [2, 0], sizes = [8, 32], strides = [1, 1]} : vector<10x32xf32> to vector<8x32xf32>
    %c8_138 = arith.constant 8 : index
    %c256_139 = arith.constant 256 : index
    %143 = vector.load %arg10[%c8_138, %c256_139] : memref<64x288xf32, #tpu.memory_space<vmem>>, vector<8x32xf32>
    tpu.vector_store %arg10[%c8_138, %c256_139], %142 {strides = array<i32>} : memref<64x288xf32, #tpu.memory_space<vmem>>, vector<8x32xf32>,
    %c0_140 = arith.constant 0 : index
    %c40_141 = arith.constant 40 : index
    %c0_142 = arith.constant 0 : index
    %144 = vector.load %arg1[%c0_140, %c40_141, %c0_142] : memref<1x100x32xf32, #tpu.memory_space<vmem>>, vector<1x10x32xf32>
    %145 = vector.shape_cast %144 : vector<1x10x32xf32> to vector<10x32xf32>
    %146 = vector.extract_strided_slice %145 {offsets = [0, 0], sizes = [8, 32], strides = [1, 1]} : vector<10x32xf32> to vector<8x32xf32>
    %c16_143 = arith.constant 16 : index
    %c192_144 = arith.constant 192 : index
    %147 = vector.load %arg10[%c16_143, %c192_144] : memref<64x288xf32, #tpu.memory_space<vmem>>, vector<8x32xf32>
    tpu.vector_store %arg10[%c16_143, %c192_144], %146 {strides = array<i32>} : memref<64x288xf32, #tpu.memory_space<vmem>>, vector<8x32xf32>,
    %148 = vector.extract_strided_slice %145 {offsets = [1, 0], sizes = [8, 32], strides = [1, 1]} : vector<10x32xf32> to vector<8x32xf32>
    %c16_145 = arith.constant 16 : index
    %c224_146 = arith.constant 224 : index
    %149 = vector.load %arg10[%c16_145, %c224_146] : memref<64x288xf32, #tpu.memory_space<vmem>>, vector<8x32xf32>
    tpu.vector_store %arg10[%c16_145, %c224_146], %148 {strides = array<i32>} : memref<64x288xf32, #tpu.memory_space<vmem>>, vector<8x32xf32>,
    %150 = vector.extract_strided_slice %145 {offsets = [2, 0], sizes = [8, 32], strides = [1, 1]} : vector<10x32xf32> to vector<8x32xf32>
    %c16_147 = arith.constant 16 : index
    %c256_148 = arith.constant 256 : index
    %151 = vector.load %arg10[%c16_147, %c256_148] : memref<64x288xf32, #tpu.memory_space<vmem>>, vector<8x32xf32>
    tpu.vector_store %arg10[%c16_147, %c256_148], %150 {strides = array<i32>} : memref<64x288xf32, #tpu.memory_space<vmem>>, vector<8x32xf32>,
    %c0_149 = arith.constant 0 : index
    %c50_150 = arith.constant 50 : index
    %c0_151 = arith.constant 0 : index
    %152 = vector.load %arg1[%c0_149, %c50_150, %c0_151] : memref<1x100x32xf32, #tpu.memory_space<vmem>>, vector<1x10x32xf32>
    %153 = vector.shape_cast %152 : vector<1x10x32xf32> to vector<10x32xf32>
    %154 = vector.extract_strided_slice %153 {offsets = [0, 0], sizes = [8, 32], strides = [1, 1]} : vector<10x32xf32> to vector<8x32xf32>
    %c24_152 = arith.constant 24 : index
    %c192_153 = arith.constant 192 : index
    %155 = vector.load %arg10[%c24_152, %c192_153] : memref<64x288xf32, #tpu.memory_space<vmem>>, vector<8x32xf32>
    tpu.vector_store %arg10[%c24_152, %c192_153], %154 {strides = array<i32>} : memref<64x288xf32, #tpu.memory_space<vmem>>, vector<8x32xf32>,
    %156 = vector.extract_strided_slice %153 {offsets = [1, 0], sizes = [8, 32], strides = [1, 1]} : vector<10x32xf32> to vector<8x32xf32>
    %c24_154 = arith.constant 24 : index
    %c224_155 = arith.constant 224 : index
    %157 = vector.load %arg10[%c24_154, %c224_155] : memref<64x288xf32, #tpu.memory_space<vmem>>, vector<8x32xf32>
    tpu.vector_store %arg10[%c24_154, %c224_155], %156 {strides = array<i32>} : memref<64x288xf32, #tpu.memory_space<vmem>>, vector<8x32xf32>,
    %158 = vector.extract_strided_slice %153 {offsets = [2, 0], sizes = [8, 32], strides = [1, 1]} : vector<10x32xf32> to vector<8x32xf32>
    %c24_156 = arith.constant 24 : index
    %c256_157 = arith.constant 256 : index
    %159 = vector.load %arg10[%c24_156, %c256_157] : memref<64x288xf32, #tpu.memory_space<vmem>>, vector<8x32xf32>
    tpu.vector_store %arg10[%c24_156, %c256_157], %158 {strides = array<i32>} : memref<64x288xf32, #tpu.memory_space<vmem>>, vector<8x32xf32>,
    %c0_158 = arith.constant 0 : index
    %c60_159 = arith.constant 60 : index
    %c0_160 = arith.constant 0 : index
    %160 = vector.load %arg1[%c0_158, %c60_159, %c0_160] : memref<1x100x32xf32, #tpu.memory_space<vmem>>, vector<1x10x32xf32>
    %161 = vector.shape_cast %160 : vector<1x10x32xf32> to vector<10x32xf32>
    %162 = vector.extract_strided_slice %161 {offsets = [0, 0], sizes = [8, 32], strides = [1, 1]} : vector<10x32xf32> to vector<8x32xf32>
    %c32_161 = arith.constant 32 : index
    %c192_162 = arith.constant 192 : index
    %163 = vector.load %arg10[%c32_161, %c192_162] : memref<64x288xf32, #tpu.memory_space<vmem>>, vector<8x32xf32>
    tpu.vector_store %arg10[%c32_161, %c192_162], %162 {strides = array<i32>} : memref<64x288xf32, #tpu.memory_space<vmem>>, vector<8x32xf32>,
    %164 = vector.extract_strided_slice %161 {offsets = [1, 0], sizes = [8, 32], strides = [1, 1]} : vector<10x32xf32> to vector<8x32xf32>
    %c32_163 = arith.constant 32 : index
    %c224_164 = arith.constant 224 : index
    %165 = vector.load %arg10[%c32_163, %c224_164] : memref<64x288xf32, #tpu.memory_space<vmem>>, vector<8x32xf32>
    tpu.vector_store %arg10[%c32_163, %c224_164], %164 {strides = array<i32>} : memref<64x288xf32, #tpu.memory_space<vmem>>, vector<8x32xf32>,
    %166 = vector.extract_strided_slice %161 {offsets = [2, 0], sizes = [8, 32], strides = [1, 1]} : vector<10x32xf32> to vector<8x32xf32>
    %c32_165 = arith.constant 32 : index
    %c256_166 = arith.constant 256 : index
    %167 = vector.load %arg10[%c32_165, %c256_166] : memref<64x288xf32, #tpu.memory_space<vmem>>, vector<8x32xf32>
    tpu.vector_store %arg10[%c32_165, %c256_166], %166 {strides = array<i32>} : memref<64x288xf32, #tpu.memory_space<vmem>>, vector<8x32xf32>,
    %c0_167 = arith.constant 0 : index
    %c70_168 = arith.constant 70 : index
    %c0_169 = arith.constant 0 : index
    %168 = vector.load %arg1[%c0_167, %c70_168, %c0_169] : memref<1x100x32xf32, #tpu.memory_space<vmem>>, vector<1x10x32xf32>
    %169 = vector.shape_cast %168 : vector<1x10x32xf32> to vector<10x32xf32>
    %170 = vector.extract_strided_slice %169 {offsets = [0, 0], sizes = [8, 32], strides = [1, 1]} : vector<10x32xf32> to vector<8x32xf32>
    %c40_170 = arith.constant 40 : index
    %c192_171 = arith.constant 192 : index
    %171 = vector.load %arg10[%c40_170, %c192_171] : memref<64x288xf32, #tpu.memory_space<vmem>>, vector<8x32xf32>
    tpu.vector_store %arg10[%c40_170, %c192_171], %170 {strides = array<i32>} : memref<64x288xf32, #tpu.memory_space<vmem>>, vector<8x32xf32>,
    %172 = vector.extract_strided_slice %169 {offsets = [1, 0], sizes = [8, 32], strides = [1, 1]} : vector<10x32xf32> to vector<8x32xf32>
    %c40_172 = arith.constant 40 : index
    %c224_173 = arith.constant 224 : index
    %173 = vector.load %arg10[%c40_172, %c224_173] : memref<64x288xf32, #tpu.memory_space<vmem>>, vector<8x32xf32>
    tpu.vector_store %arg10[%c40_172, %c224_173], %172 {strides = array<i32>} : memref<64x288xf32, #tpu.memory_space<vmem>>, vector<8x32xf32>,
    %174 = vector.extract_strided_slice %169 {offsets = [2, 0], sizes = [8, 32], strides = [1, 1]} : vector<10x32xf32> to vector<8x32xf32>
    %c40_174 = arith.constant 40 : index
    %c256_175 = arith.constant 256 : index
    %175 = vector.load %arg10[%c40_174, %c256_175] : memref<64x288xf32, #tpu.memory_space<vmem>>, vector<8x32xf32>
    tpu.vector_store %arg10[%c40_174, %c256_175], %174 {strides = array<i32>} : memref<64x288xf32, #tpu.memory_space<vmem>>, vector<8x32xf32>,
    %c0_176 = arith.constant 0 : index
    %c80_177 = arith.constant 80 : index
    %c0_178 = arith.constant 0 : index
    %176 = vector.load %arg1[%c0_176, %c80_177, %c0_178] : memref<1x100x32xf32, #tpu.memory_space<vmem>>, vector<1x10x32xf32>
    %177 = vector.shape_cast %176 : vector<1x10x32xf32> to vector<10x32xf32>
    %178 = vector.extract_strided_slice %177 {offsets = [0, 0], sizes = [8, 32], strides = [1, 1]} : vector<10x32xf32> to vector<8x32xf32>
    %c48_179 = arith.constant 48 : index
    %c192_180 = arith.constant 192 : index
    %179 = vector.load %arg10[%c48_179, %c192_180] : memref<64x288xf32, #tpu.memory_space<vmem>>, vector<8x32xf32>
    tpu.vector_store %arg10[%c48_179, %c192_180], %178 {strides = array<i32>} : memref<64x288xf32, #tpu.memory_space<vmem>>, vector<8x32xf32>,
    %180 = vector.extract_strided_slice %177 {offsets = [1, 0], sizes = [8, 32], strides = [1, 1]} : vector<10x32xf32> to vector<8x32xf32>
    %c48_181 = arith.constant 48 : index
    %c224_182 = arith.constant 224 : index
    %181 = vector.load %arg10[%c48_181, %c224_182] : memref<64x288xf32, #tpu.memory_space<vmem>>, vector<8x32xf32>
    tpu.vector_store %arg10[%c48_181, %c224_182], %180 {strides = array<i32>} : memref<64x288xf32, #tpu.memory_space<vmem>>, vector<8x32xf32>,
    %182 = vector.extract_strided_slice %177 {offsets = [2, 0], sizes = [8, 32], strides = [1, 1]} : vector<10x32xf32> to vector<8x32xf32>
    %c48_183 = arith.constant 48 : index
    %c256_184 = arith.constant 256 : index
    %183 = vector.load %arg10[%c48_183, %c256_184] : memref<64x288xf32, #tpu.memory_space<vmem>>, vector<8x32xf32>
    tpu.vector_store %arg10[%c48_183, %c256_184], %182 {strides = array<i32>} : memref<64x288xf32, #tpu.memory_space<vmem>>, vector<8x32xf32>,
    %c0_185 = arith.constant 0 : index
    %c90 = arith.constant 90 : index
    %c0_186 = arith.constant 0 : index
    %184 = vector.load %arg1[%c0_185, %c90, %c0_186] : memref<1x100x32xf32, #tpu.memory_space<vmem>>, vector<1x10x32xf32>
    %185 = vector.shape_cast %184 : vector<1x10x32xf32> to vector<10x32xf32>
    %186 = vector.extract_strided_slice %185 {offsets = [0, 0], sizes = [8, 32], strides = [1, 1]} : vector<10x32xf32> to vector<8x32xf32>
    %c56_187 = arith.constant 56 : index
    %c192_188 = arith.constant 192 : index
    %187 = vector.load %arg10[%c56_187, %c192_188] : memref<64x288xf32, #tpu.memory_space<vmem>>, vector<8x32xf32>
    tpu.vector_store %arg10[%c56_187, %c192_188], %186 {strides = array<i32>} : memref<64x288xf32, #tpu.memory_space<vmem>>, vector<8x32xf32>,
    %188 = vector.extract_strided_slice %185 {offsets = [1, 0], sizes = [8, 32], strides = [1, 1]} : vector<10x32xf32> to vector<8x32xf32>
    %c56_189 = arith.constant 56 : index
    %c224_190 = arith.constant 224 : index
    %189 = vector.load %arg10[%c56_189, %c224_190] : memref<64x288xf32, #tpu.memory_space<vmem>>, vector<8x32xf32>
    tpu.vector_store %arg10[%c56_189, %c224_190], %188 {strides = array<i32>} : memref<64x288xf32, #tpu.memory_space<vmem>>, vector<8x32xf32>,
    %190 = vector.extract_strided_slice %185 {offsets = [2, 0], sizes = [8, 32], strides = [1, 1]} : vector<10x32xf32> to vector<8x32xf32>
    %c56_191 = arith.constant 56 : index
    %c256_192 = arith.constant 256 : index
    %191 = vector.load %arg10[%c56_191, %c256_192] : memref<64x288xf32, #tpu.memory_space<vmem>>, vector<8x32xf32>
    tpu.vector_store %arg10[%c56_191, %c256_192], %190 {strides = array<i32>} : memref<64x288xf32, #tpu.memory_space<vmem>>, vector<8x32xf32>,
    %c0_193 = arith.constant 0 : index
    %c0_194 = arith.constant 0 : index
    %192 = vector.load %arg10[%c0_193, %c0_194] : memref<64x288xf32, #tpu.memory_space<vmem>>, vector<64x288xf32>
    %193 = arith.truncf %192 : vector<64x288xf32> to vector<64x288xbf16>
    %c0_195 = arith.constant 0 : index
    %c0_196 = arith.constant 0 : index
    %194 = vector.load %arg2[%c0_195, %c0_196] : memref<288x128xbf16, #tpu.memory_space<vmem>>, vector<288x128xbf16>
    %cst = arith.constant dense<0.000000e+00> : vector<64x128xf32>
    %195 = tpu.matmul %193, %194, %cst {dimension_numbers = #tpu.dot_dimension_numbers<[1], [0], [0], [1], [0, 0, 1, 1], [], []>} : vector<64x288xbf16>, vector<288x128xbf16>, vector<64x128xf32> -> vector<64x128xf32>
    %c0_197 = arith.constant 0 : index
    %c0_198 = arith.constant 0 : index
    %196 = vector.load %arg3[%c0_197, %c0_198] : memref<1x128xf32, #tpu.memory_space<vmem>>, vector<1x128xf32>
    %197 = vector.broadcast %196 : vector<1x128xf32> to vector<64x128xf32>
    %198 = arith.addf %195, %197 : vector<64x128xf32>
    %199 = vector.extract_strided_slice %198 {offsets = [0, 0], sizes = [64, 6], strides = [1, 1]} : vector<64x128xf32> to vector<64x6xf32>
    %cst_199 = arith.constant dense<0xFF800000> : vector<64xf32>
    %200 = vector.multi_reduction <maximumf>, %199, %cst_199 [1] : vector<64x6xf32> to vector<64xf32>
    %201 = vector.shape_cast %200 : vector<64xf32> to vector<64x1xf32>
    %202 = vector.broadcast %201 : vector<64x1xf32> to vector<64x6xf32>
    %203 = arith.subf %199, %202 : vector<64x6xf32>
    %204 = math.exp %203 : vector<64x6xf32>
    %cst_200 = arith.constant dense<0.000000e+00> : vector<64xf32>
    %205 = vector.multi_reduction <add>, %204, %cst_200 [1] : vector<64x6xf32> to vector<64xf32>
    %206 = vector.shape_cast %205 : vector<64xf32> to vector<64x1xf32>
    %207 = tpu.reciprocal %206 : vector<64x1xf32> -> vector<64x1xf32>
    %208 = vector.broadcast %207 : vector<64x1xf32> to vector<64x6xf32>
    %209 = arith.mulf %204, %208 : vector<64x6xf32>
    %c0_201 = arith.constant 0 : index
    %c0_202 = arith.constant 0 : index
    %c0_203 = arith.constant 0 : index
    %210 = vector.load %arg8[%c0_201, %c0_202, %c0_203] : memref<1x352x6xf32, #tpu.memory_space<vmem>>, vector<1x64x6xf32>
    %211 = vector.shape_cast %210 : vector<1x64x6xf32> to vector<64x6xf32>
    %212 = vector.shape_cast %209 : vector<64x6xf32> to vector<1x64x6xf32>
    tpu.vector_store %arg8[%c0_201, %c0_202, %c0_203], %212 {strides = array<i32>} : memref<1x352x6xf32, #tpu.memory_space<vmem>>, vector<1x64x6xf32>,
    %213 = vector.extract_strided_slice %198 {offsets = [0, 24], sizes = [64, 4], strides = [1, 1]} : vector<64x128xf32> to vector<64x4xf32>
    %c0_204 = arith.constant 0 : index
    %c0_205 = arith.constant 0 : index
    %214 = vector.load %arg7[%c0_204, %c0_205] : memref<352x4xf32, #tpu.memory_space<vmem>>, vector<64x4xf32>
    %215 = vector.extract_strided_slice %213 {offsets = [0, 0], sizes = [64, 2], strides = [1, 1]} : vector<64x4xf32> to vector<64x2xf32>
    %cst_206 = arith.constant 1.000000e-01 : f32
    %216 = vector.broadcast %cst_206 : f32 to vector<64x2xf32>
    %217 = arith.mulf %215, %216 : vector<64x2xf32>
    %218 = vector.extract_strided_slice %214 {offsets = [0, 2], sizes = [64, 2], strides = [1, 1]} : vector<64x4xf32> to vector<64x2xf32>
    %219 = arith.mulf %217, %218 : vector<64x2xf32>
    %220 = vector.extract_strided_slice %214 {offsets = [0, 0], sizes = [64, 2], strides = [1, 1]} : vector<64x4xf32> to vector<64x2xf32>
    %221 = arith.addf %219, %220 : vector<64x2xf32>
    %222 = vector.extract_strided_slice %213 {offsets = [0, 2], sizes = [64, 2], strides = [1, 1]} : vector<64x4xf32> to vector<64x2xf32>
    %cst_207 = arith.constant 2.000000e-01 : f32
    %223 = vector.broadcast %cst_207 : f32 to vector<64x2xf32>
    %224 = arith.mulf %222, %223 : vector<64x2xf32>
    %225 = math.exp %224 : vector<64x2xf32>
    %226 = vector.extract_strided_slice %214 {offsets = [0, 2], sizes = [64, 2], strides = [1, 1]} : vector<64x4xf32> to vector<64x2xf32>
    %227 = arith.mulf %225, %226 : vector<64x2xf32>
    %cst_208 = arith.constant 5.000000e-01 : f32
    %228 = vector.broadcast %cst_208 : f32 to vector<64x2xf32>
    %229 = arith.mulf %228, %227 : vector<64x2xf32>
    %230 = arith.subf %221, %229 : vector<64x2xf32>
    %cst_209 = arith.constant 5.000000e-01 : f32
    %231 = vector.broadcast %cst_209 : f32 to vector<64x2xf32>
    %232 = arith.mulf %231, %227 : vector<64x2xf32>
    %233 = arith.addf %221, %232 : vector<64x2xf32>
    %234 = tpu.concatenate %230, %233 in 1 : vector<64x2xf32>, vector<64x2xf32> -> vector<64x4xf32>
    %c0_210 = arith.constant 0 : index
    %c0_211 = arith.constant 0 : index
    %c0_212 = arith.constant 0 : index
    %235 = vector.load %arg9[%c0_210, %c0_211, %c0_212] : memref<1x352x4xf32, #tpu.memory_space<vmem>>, vector<1x64x4xf32>
    %236 = vector.shape_cast %235 : vector<1x64x4xf32> to vector<64x4xf32>
    %237 = vector.shape_cast %234 : vector<64x4xf32> to vector<1x64x4xf32>
    tpu.vector_store %arg9[%c0_210, %c0_211, %c0_212], %237 {strides = array<i32>} : memref<1x352x4xf32, #tpu.memory_space<vmem>>, vector<1x64x4xf32>,
    %238 = vector.extract_strided_slice %198 {offsets = [0, 6], sizes = [64, 6], strides = [1, 1]} : vector<64x128xf32> to vector<64x6xf32>
    %cst_213 = arith.constant dense<0xFF800000> : vector<64xf32>
    %239 = vector.multi_reduction <maximumf>, %238, %cst_213 [1] : vector<64x6xf32> to vector<64xf32>
    %240 = vector.shape_cast %239 : vector<64xf32> to vector<64x1xf32>
    %241 = vector.broadcast %240 : vector<64x1xf32> to vector<64x6xf32>
    %242 = arith.subf %238, %241 : vector<64x6xf32>
    %243 = math.exp %242 : vector<64x6xf32>
    %cst_214 = arith.constant dense<0.000000e+00> : vector<64xf32>
    %244 = vector.multi_reduction <add>, %243, %cst_214 [1] : vector<64x6xf32> to vector<64xf32>
    %245 = vector.shape_cast %244 : vector<64xf32> to vector<64x1xf32>
    %246 = tpu.reciprocal %245 : vector<64x1xf32> -> vector<64x1xf32>
    %247 = vector.broadcast %246 : vector<64x1xf32> to vector<64x6xf32>
    %248 = arith.mulf %243, %247 : vector<64x6xf32>
    %c0_215 = arith.constant 0 : index
    %c64_216 = arith.constant 64 : index
    %c0_217 = arith.constant 0 : index
    %249 = vector.load %arg8[%c0_215, %c64_216, %c0_217] : memref<1x352x6xf32, #tpu.memory_space<vmem>>, vector<1x64x6xf32>
    %250 = vector.shape_cast %249 : vector<1x64x6xf32> to vector<64x6xf32>
    %251 = vector.shape_cast %248 : vector<64x6xf32> to vector<1x64x6xf32>
    tpu.vector_store %arg8[%c0_215, %c64_216, %c0_217], %251 {strides = array<i32>} : memref<1x352x6xf32, #tpu.memory_space<vmem>>, vector<1x64x6xf32>,
    %252 = vector.extract_strided_slice %198 {offsets = [0, 28], sizes = [64, 4], strides = [1, 1]} : vector<64x128xf32> to vector<64x4xf32>
    %c64_218 = arith.constant 64 : index
    %c0_219 = arith.constant 0 : index
    %253 = vector.load %arg7[%c64_218, %c0_219] : memref<352x4xf32, #tpu.memory_space<vmem>>, vector<64x4xf32>
    %254 = vector.extract_strided_slice %252 {offsets = [0, 0], sizes = [64, 2], strides = [1, 1]} : vector<64x4xf32> to vector<64x2xf32>
    %cst_220 = arith.constant 1.000000e-01 : f32
    %255 = vector.broadcast %cst_220 : f32 to vector<64x2xf32>
    %256 = arith.mulf %254, %255 : vector<64x2xf32>
    %257 = vector.extract_strided_slice %253 {offsets = [0, 2], sizes = [64, 2], strides = [1, 1]} : vector<64x4xf32> to vector<64x2xf32>
    %258 = arith.mulf %256, %257 : vector<64x2xf32>
    %259 = vector.extract_strided_slice %253 {offsets = [0, 0], sizes = [64, 2], strides = [1, 1]} : vector<64x4xf32> to vector<64x2xf32>
    %260 = arith.addf %258, %259 : vector<64x2xf32>
    %261 = vector.extract_strided_slice %252 {offsets = [0, 2], sizes = [64, 2], strides = [1, 1]} : vector<64x4xf32> to vector<64x2xf32>
    %cst_221 = arith.constant 2.000000e-01 : f32
    %262 = vector.broadcast %cst_221 : f32 to vector<64x2xf32>
    %263 = arith.mulf %261, %262 : vector<64x2xf32>
    %264 = math.exp %263 : vector<64x2xf32>
    %265 = vector.extract_strided_slice %253 {offsets = [0, 2], sizes = [64, 2], strides = [1, 1]} : vector<64x4xf32> to vector<64x2xf32>
    %266 = arith.mulf %264, %265 : vector<64x2xf32>
    %cst_222 = arith.constant 5.000000e-01 : f32
    %267 = vector.broadcast %cst_222 : f32 to vector<64x2xf32>
    %268 = arith.mulf %267, %266 : vector<64x2xf32>
    %269 = arith.subf %260, %268 : vector<64x2xf32>
    %cst_223 = arith.constant 5.000000e-01 : f32
    %270 = vector.broadcast %cst_223 : f32 to vector<64x2xf32>
    %271 = arith.mulf %270, %266 : vector<64x2xf32>
    %272 = arith.addf %260, %271 : vector<64x2xf32>
    %273 = tpu.concatenate %269, %272 in 1 : vector<64x2xf32>, vector<64x2xf32> -> vector<64x4xf32>
    %c0_224 = arith.constant 0 : index
    %c64_225 = arith.constant 64 : index
    %c0_226 = arith.constant 0 : index
    %274 = vector.load %arg9[%c0_224, %c64_225, %c0_226] : memref<1x352x4xf32, #tpu.memory_space<vmem>>, vector<1x64x4xf32>
    %275 = vector.shape_cast %274 : vector<1x64x4xf32> to vector<64x4xf32>
    %276 = vector.shape_cast %273 : vector<64x4xf32> to vector<1x64x4xf32>
    tpu.vector_store %arg9[%c0_224, %c64_225, %c0_226], %276 {strides = array<i32>} : memref<1x352x4xf32, #tpu.memory_space<vmem>>, vector<1x64x4xf32>,
    %277 = vector.extract_strided_slice %198 {offsets = [0, 12], sizes = [64, 6], strides = [1, 1]} : vector<64x128xf32> to vector<64x6xf32>
    %cst_227 = arith.constant dense<0xFF800000> : vector<64xf32>
    %278 = vector.multi_reduction <maximumf>, %277, %cst_227 [1] : vector<64x6xf32> to vector<64xf32>
    %279 = vector.shape_cast %278 : vector<64xf32> to vector<64x1xf32>
    %280 = vector.broadcast %279 : vector<64x1xf32> to vector<64x6xf32>
    %281 = arith.subf %277, %280 : vector<64x6xf32>
    %282 = math.exp %281 : vector<64x6xf32>
    %cst_228 = arith.constant dense<0.000000e+00> : vector<64xf32>
    %283 = vector.multi_reduction <add>, %282, %cst_228 [1] : vector<64x6xf32> to vector<64xf32>
    %284 = vector.shape_cast %283 : vector<64xf32> to vector<64x1xf32>
    %285 = tpu.reciprocal %284 : vector<64x1xf32> -> vector<64x1xf32>
    %286 = vector.broadcast %285 : vector<64x1xf32> to vector<64x6xf32>
    %287 = arith.mulf %282, %286 : vector<64x6xf32>
    %c0_229 = arith.constant 0 : index
    %c128_230 = arith.constant 128 : index
    %c0_231 = arith.constant 0 : index
    %288 = vector.load %arg8[%c0_229, %c128_230, %c0_231] : memref<1x352x6xf32, #tpu.memory_space<vmem>>, vector<1x64x6xf32>
    %289 = vector.shape_cast %288 : vector<1x64x6xf32> to vector<64x6xf32>
    %290 = vector.shape_cast %287 : vector<64x6xf32> to vector<1x64x6xf32>
    tpu.vector_store %arg8[%c0_229, %c128_230, %c0_231], %290 {strides = array<i32>} : memref<1x352x6xf32, #tpu.memory_space<vmem>>, vector<1x64x6xf32>,
    %291 = vector.extract_strided_slice %198 {offsets = [0, 32], sizes = [64, 4], strides = [1, 1]} : vector<64x128xf32> to vector<64x4xf32>
    %c128_232 = arith.constant 128 : index
    %c0_233 = arith.constant 0 : index
    %292 = vector.load %arg7[%c128_232, %c0_233] : memref<352x4xf32, #tpu.memory_space<vmem>>, vector<64x4xf32>
    %293 = vector.extract_strided_slice %291 {offsets = [0, 0], sizes = [64, 2], strides = [1, 1]} : vector<64x4xf32> to vector<64x2xf32>
    %cst_234 = arith.constant 1.000000e-01 : f32
    %294 = vector.broadcast %cst_234 : f32 to vector<64x2xf32>
    %295 = arith.mulf %293, %294 : vector<64x2xf32>
    %296 = vector.extract_strided_slice %292 {offsets = [0, 2], sizes = [64, 2], strides = [1, 1]} : vector<64x4xf32> to vector<64x2xf32>
    %297 = arith.mulf %295, %296 : vector<64x2xf32>
    %298 = vector.extract_strided_slice %292 {offsets = [0, 0], sizes = [64, 2], strides = [1, 1]} : vector<64x4xf32> to vector<64x2xf32>
    %299 = arith.addf %297, %298 : vector<64x2xf32>
    %300 = vector.extract_strided_slice %291 {offsets = [0, 2], sizes = [64, 2], strides = [1, 1]} : vector<64x4xf32> to vector<64x2xf32>
    %cst_235 = arith.constant 2.000000e-01 : f32
    %301 = vector.broadcast %cst_235 : f32 to vector<64x2xf32>
    %302 = arith.mulf %300, %301 : vector<64x2xf32>
    %303 = math.exp %302 : vector<64x2xf32>
    %304 = vector.extract_strided_slice %292 {offsets = [0, 2], sizes = [64, 2], strides = [1, 1]} : vector<64x4xf32> to vector<64x2xf32>
    %305 = arith.mulf %303, %304 : vector<64x2xf32>
    %cst_236 = arith.constant 5.000000e-01 : f32
    %306 = vector.broadcast %cst_236 : f32 to vector<64x2xf32>
    %307 = arith.mulf %306, %305 : vector<64x2xf32>
    %308 = arith.subf %299, %307 : vector<64x2xf32>
    %cst_237 = arith.constant 5.000000e-01 : f32
    %309 = vector.broadcast %cst_237 : f32 to vector<64x2xf32>
    %310 = arith.mulf %309, %305 : vector<64x2xf32>
    %311 = arith.addf %299, %310 : vector<64x2xf32>
    %312 = tpu.concatenate %308, %311 in 1 : vector<64x2xf32>, vector<64x2xf32> -> vector<64x4xf32>
    %c0_238 = arith.constant 0 : index
    %c128_239 = arith.constant 128 : index
    %c0_240 = arith.constant 0 : index
    %313 = vector.load %arg9[%c0_238, %c128_239, %c0_240] : memref<1x352x4xf32, #tpu.memory_space<vmem>>, vector<1x64x4xf32>
    %314 = vector.shape_cast %313 : vector<1x64x4xf32> to vector<64x4xf32>
    %315 = vector.shape_cast %312 : vector<64x4xf32> to vector<1x64x4xf32>
    tpu.vector_store %arg9[%c0_238, %c128_239, %c0_240], %315 {strides = array<i32>} : memref<1x352x4xf32, #tpu.memory_space<vmem>>, vector<1x64x4xf32>,
    %316 = vector.extract_strided_slice %198 {offsets = [0, 18], sizes = [64, 6], strides = [1, 1]} : vector<64x128xf32> to vector<64x6xf32>
    %cst_241 = arith.constant dense<0xFF800000> : vector<64xf32>
    %317 = vector.multi_reduction <maximumf>, %316, %cst_241 [1] : vector<64x6xf32> to vector<64xf32>
    %318 = vector.shape_cast %317 : vector<64xf32> to vector<64x1xf32>
    %319 = vector.broadcast %318 : vector<64x1xf32> to vector<64x6xf32>
    %320 = arith.subf %316, %319 : vector<64x6xf32>
    %321 = math.exp %320 : vector<64x6xf32>
    %cst_242 = arith.constant dense<0.000000e+00> : vector<64xf32>
    %322 = vector.multi_reduction <add>, %321, %cst_242 [1] : vector<64x6xf32> to vector<64xf32>
    %323 = vector.shape_cast %322 : vector<64xf32> to vector<64x1xf32>
    %324 = tpu.reciprocal %323 : vector<64x1xf32> -> vector<64x1xf32>
    %325 = vector.broadcast %324 : vector<64x1xf32> to vector<64x6xf32>
    %326 = arith.mulf %321, %325 : vector<64x6xf32>
    %c0_243 = arith.constant 0 : index
    %c192_244 = arith.constant 192 : index
    %c0_245 = arith.constant 0 : index
    %327 = vector.load %arg8[%c0_243, %c192_244, %c0_245] : memref<1x352x6xf32, #tpu.memory_space<vmem>>, vector<1x64x6xf32>
    %328 = vector.shape_cast %327 : vector<1x64x6xf32> to vector<64x6xf32>
    %329 = vector.shape_cast %326 : vector<64x6xf32> to vector<1x64x6xf32>
    tpu.vector_store %arg8[%c0_243, %c192_244, %c0_245], %329 {strides = array<i32>} : memref<1x352x6xf32, #tpu.memory_space<vmem>>, vector<1x64x6xf32>,
    %330 = vector.extract_strided_slice %198 {offsets = [0, 36], sizes = [64, 4], strides = [1, 1]} : vector<64x128xf32> to vector<64x4xf32>
    %c192_246 = arith.constant 192 : index
    %c0_247 = arith.constant 0 : index
    %331 = vector.load %arg7[%c192_246, %c0_247] : memref<352x4xf32, #tpu.memory_space<vmem>>, vector<64x4xf32>
    %332 = vector.extract_strided_slice %330 {offsets = [0, 0], sizes = [64, 2], strides = [1, 1]} : vector<64x4xf32> to vector<64x2xf32>
    %cst_248 = arith.constant 1.000000e-01 : f32
    %333 = vector.broadcast %cst_248 : f32 to vector<64x2xf32>
    %334 = arith.mulf %332, %333 : vector<64x2xf32>
    %335 = vector.extract_strided_slice %331 {offsets = [0, 2], sizes = [64, 2], strides = [1, 1]} : vector<64x4xf32> to vector<64x2xf32>
    %336 = arith.mulf %334, %335 : vector<64x2xf32>
    %337 = vector.extract_strided_slice %331 {offsets = [0, 0], sizes = [64, 2], strides = [1, 1]} : vector<64x4xf32> to vector<64x2xf32>
    %338 = arith.addf %336, %337 : vector<64x2xf32>
    %339 = vector.extract_strided_slice %330 {offsets = [0, 2], sizes = [64, 2], strides = [1, 1]} : vector<64x4xf32> to vector<64x2xf32>
    %cst_249 = arith.constant 2.000000e-01 : f32
    %340 = vector.broadcast %cst_249 : f32 to vector<64x2xf32>
    %341 = arith.mulf %339, %340 : vector<64x2xf32>
    %342 = math.exp %341 : vector<64x2xf32>
    %343 = vector.extract_strided_slice %331 {offsets = [0, 2], sizes = [64, 2], strides = [1, 1]} : vector<64x4xf32> to vector<64x2xf32>
    %344 = arith.mulf %342, %343 : vector<64x2xf32>
    %cst_250 = arith.constant 5.000000e-01 : f32
    %345 = vector.broadcast %cst_250 : f32 to vector<64x2xf32>
    %346 = arith.mulf %345, %344 : vector<64x2xf32>
    %347 = arith.subf %338, %346 : vector<64x2xf32>
    %cst_251 = arith.constant 5.000000e-01 : f32
    %348 = vector.broadcast %cst_251 : f32 to vector<64x2xf32>
    %349 = arith.mulf %348, %344 : vector<64x2xf32>
    %350 = arith.addf %338, %349 : vector<64x2xf32>
    %351 = tpu.concatenate %347, %350 in 1 : vector<64x2xf32>, vector<64x2xf32> -> vector<64x4xf32>
    %c0_252 = arith.constant 0 : index
    %c192_253 = arith.constant 192 : index
    %c0_254 = arith.constant 0 : index
    %352 = vector.load %arg9[%c0_252, %c192_253, %c0_254] : memref<1x352x4xf32, #tpu.memory_space<vmem>>, vector<1x64x4xf32>
    %353 = vector.shape_cast %352 : vector<1x64x4xf32> to vector<64x4xf32>
    %354 = vector.shape_cast %351 : vector<64x4xf32> to vector<1x64x4xf32>
    tpu.vector_store %arg9[%c0_252, %c192_253, %c0_254], %354 {strides = array<i32>} : memref<1x352x4xf32, #tpu.memory_space<vmem>>, vector<1x64x4xf32>,
    %c0_255 = arith.constant 0 : index
    %c0_256 = arith.constant 0 : index
    %c0_257 = arith.constant 0 : index
    %355 = vector.load %arg4[%c0_255, %c0_256, %c0_257] : memref<1x36x32xf32, #tpu.memory_space<vmem>>, vector<1x6x32xf32>
    %356 = vector.shape_cast %355 : vector<1x6x32xf32> to vector<6x32xf32>
    %357 = vector.extract_strided_slice %356 {offsets = [0, 0], sizes = [4, 32], strides = [1, 1]} : vector<6x32xf32> to vector<4x32xf32>
    %c0_258 = arith.constant 0 : index
    %c0_259 = arith.constant 0 : index
    %358 = vector.load %arg10[%c0_258, %c0_259] : memref<64x288xf32, #tpu.memory_space<vmem>>, vector<4x32xf32>
    tpu.vector_store %arg10[%c0_258, %c0_259], %357 {strides = array<i32>} : memref<64x288xf32, #tpu.memory_space<vmem>>, vector<4x32xf32>,
    %359 = vector.extract_strided_slice %356 {offsets = [1, 0], sizes = [4, 32], strides = [1, 1]} : vector<6x32xf32> to vector<4x32xf32>
    %c0_260 = arith.constant 0 : index
    %c32_261 = arith.constant 32 : index
    %360 = vector.load %arg10[%c0_260, %c32_261] : memref<64x288xf32, #tpu.memory_space<vmem>>, vector<4x32xf32>
    tpu.vector_store %arg10[%c0_260, %c32_261], %359 {strides = array<i32>} : memref<64x288xf32, #tpu.memory_space<vmem>>, vector<4x32xf32>,
    %361 = vector.extract_strided_slice %356 {offsets = [2, 0], sizes = [4, 32], strides = [1, 1]} : vector<6x32xf32> to vector<4x32xf32>
    %c0_262 = arith.constant 0 : index
    %c64_263 = arith.constant 64 : index
    %362 = vector.load %arg10[%c0_262, %c64_263] : memref<64x288xf32, #tpu.memory_space<vmem>>, vector<4x32xf32>
    tpu.vector_store %arg10[%c0_262, %c64_263], %361 {strides = array<i32>} : memref<64x288xf32, #tpu.memory_space<vmem>>, vector<4x32xf32>,
    %c0_264 = arith.constant 0 : index
    %c6 = arith.constant 6 : index
    %c0_265 = arith.constant 0 : index
    %363 = vector.load %arg4[%c0_264, %c6, %c0_265] : memref<1x36x32xf32, #tpu.memory_space<vmem>>, vector<1x6x32xf32>
    %364 = vector.shape_cast %363 : vector<1x6x32xf32> to vector<6x32xf32>
    %365 = vector.extract_strided_slice %364 {offsets = [0, 0], sizes = [4, 32], strides = [1, 1]} : vector<6x32xf32> to vector<4x32xf32>
    %c4 = arith.constant 4 : index
    %c0_266 = arith.constant 0 : index
    %366 = vector.load %arg10[%c4, %c0_266] : memref<64x288xf32, #tpu.memory_space<vmem>>, vector<4x32xf32>
    tpu.vector_store %arg10[%c4, %c0_266], %365 {strides = array<i32>} : memref<64x288xf32, #tpu.memory_space<vmem>>, vector<4x32xf32>,
    %367 = vector.extract_strided_slice %364 {offsets = [1, 0], sizes = [4, 32], strides = [1, 1]} : vector<6x32xf32> to vector<4x32xf32>
    %c4_267 = arith.constant 4 : index
    %c32_268 = arith.constant 32 : index
    %368 = vector.load %arg10[%c4_267, %c32_268] : memref<64x288xf32, #tpu.memory_space<vmem>>, vector<4x32xf32>
    tpu.vector_store %arg10[%c4_267, %c32_268], %367 {strides = array<i32>} : memref<64x288xf32, #tpu.memory_space<vmem>>, vector<4x32xf32>,
    %369 = vector.extract_strided_slice %364 {offsets = [2, 0], sizes = [4, 32], strides = [1, 1]} : vector<6x32xf32> to vector<4x32xf32>
    %c4_269 = arith.constant 4 : index
    %c64_270 = arith.constant 64 : index
    %370 = vector.load %arg10[%c4_269, %c64_270] : memref<64x288xf32, #tpu.memory_space<vmem>>, vector<4x32xf32>
    tpu.vector_store %arg10[%c4_269, %c64_270], %369 {strides = array<i32>} : memref<64x288xf32, #tpu.memory_space<vmem>>, vector<4x32xf32>,
    %c0_271 = arith.constant 0 : index
    %c12 = arith.constant 12 : index
    %c0_272 = arith.constant 0 : index
    %371 = vector.load %arg4[%c0_271, %c12, %c0_272] : memref<1x36x32xf32, #tpu.memory_space<vmem>>, vector<1x6x32xf32>
    %372 = vector.shape_cast %371 : vector<1x6x32xf32> to vector<6x32xf32>
    %373 = vector.extract_strided_slice %372 {offsets = [0, 0], sizes = [4, 32], strides = [1, 1]} : vector<6x32xf32> to vector<4x32xf32>
    %c8_273 = arith.constant 8 : index
    %c0_274 = arith.constant 0 : index
    %374 = vector.load %arg10[%c8_273, %c0_274] : memref<64x288xf32, #tpu.memory_space<vmem>>, vector<4x32xf32>
    tpu.vector_store %arg10[%c8_273, %c0_274], %373 {strides = array<i32>} : memref<64x288xf32, #tpu.memory_space<vmem>>, vector<4x32xf32>,
    %375 = vector.extract_strided_slice %372 {offsets = [1, 0], sizes = [4, 32], strides = [1, 1]} : vector<6x32xf32> to vector<4x32xf32>
    %c8_275 = arith.constant 8 : index
    %c32_276 = arith.constant 32 : index
    %376 = vector.load %arg10[%c8_275, %c32_276] : memref<64x288xf32, #tpu.memory_space<vmem>>, vector<4x32xf32>
    tpu.vector_store %arg10[%c8_275, %c32_276], %375 {strides = array<i32>} : memref<64x288xf32, #tpu.memory_space<vmem>>, vector<4x32xf32>,
    %377 = vector.extract_strided_slice %372 {offsets = [2, 0], sizes = [4, 32], strides = [1, 1]} : vector<6x32xf32> to vector<4x32xf32>
    %c8_277 = arith.constant 8 : index
    %c64_278 = arith.constant 64 : index
    %378 = vector.load %arg10[%c8_277, %c64_278] : memref<64x288xf32, #tpu.memory_space<vmem>>, vector<4x32xf32>
    tpu.vector_store %arg10[%c8_277, %c64_278], %377 {strides = array<i32>} : memref<64x288xf32, #tpu.memory_space<vmem>>, vector<4x32xf32>,
    %c0_279 = arith.constant 0 : index
    %c18 = arith.constant 18 : index
    %c0_280 = arith.constant 0 : index
    %379 = vector.load %arg4[%c0_279, %c18, %c0_280] : memref<1x36x32xf32, #tpu.memory_space<vmem>>, vector<1x6x32xf32>
    %380 = vector.shape_cast %379 : vector<1x6x32xf32> to vector<6x32xf32>
    %381 = vector.extract_strided_slice %380 {offsets = [0, 0], sizes = [4, 32], strides = [1, 1]} : vector<6x32xf32> to vector<4x32xf32>
    %c12_281 = arith.constant 12 : index
    %c0_282 = arith.constant 0 : index
    %382 = vector.load %arg10[%c12_281, %c0_282] : memref<64x288xf32, #tpu.memory_space<vmem>>, vector<4x32xf32>
    tpu.vector_store %arg10[%c12_281, %c0_282], %381 {strides = array<i32>} : memref<64x288xf32, #tpu.memory_space<vmem>>, vector<4x32xf32>,
    %383 = vector.extract_strided_slice %380 {offsets = [1, 0], sizes = [4, 32], strides = [1, 1]} : vector<6x32xf32> to vector<4x32xf32>
    %c12_283 = arith.constant 12 : index
    %c32_284 = arith.constant 32 : index
    %384 = vector.load %arg10[%c12_283, %c32_284] : memref<64x288xf32, #tpu.memory_space<vmem>>, vector<4x32xf32>
    tpu.vector_store %arg10[%c12_283, %c32_284], %383 {strides = array<i32>} : memref<64x288xf32, #tpu.memory_space<vmem>>, vector<4x32xf32>,
    %385 = vector.extract_strided_slice %380 {offsets = [2, 0], sizes = [4, 32], strides = [1, 1]} : vector<6x32xf32> to vector<4x32xf32>
    %c12_285 = arith.constant 12 : index
    %c64_286 = arith.constant 64 : index
    %386 = vector.load %arg10[%c12_285, %c64_286] : memref<64x288xf32, #tpu.memory_space<vmem>>, vector<4x32xf32>
    tpu.vector_store %arg10[%c12_285, %c64_286], %385 {strides = array<i32>} : memref<64x288xf32, #tpu.memory_space<vmem>>, vector<4x32xf32>,
    %c0_287 = arith.constant 0 : index
    %c6_288 = arith.constant 6 : index
    %c0_289 = arith.constant 0 : index
    %387 = vector.load %arg4[%c0_287, %c6_288, %c0_289] : memref<1x36x32xf32, #tpu.memory_space<vmem>>, vector<1x6x32xf32>
    %388 = vector.shape_cast %387 : vector<1x6x32xf32> to vector<6x32xf32>
    %389 = vector.extract_strided_slice %388 {offsets = [0, 0], sizes = [4, 32], strides = [1, 1]} : vector<6x32xf32> to vector<4x32xf32>
    %c0_290 = arith.constant 0 : index
    %c96_291 = arith.constant 96 : index
    %390 = vector.load %arg10[%c0_290, %c96_291] : memref<64x288xf32, #tpu.memory_space<vmem>>, vector<4x32xf32>
    tpu.vector_store %arg10[%c0_290, %c96_291], %389 {strides = array<i32>} : memref<64x288xf32, #tpu.memory_space<vmem>>, vector<4x32xf32>,
    %391 = vector.extract_strided_slice %388 {offsets = [1, 0], sizes = [4, 32], strides = [1, 1]} : vector<6x32xf32> to vector<4x32xf32>
    %c0_292 = arith.constant 0 : index
    %c128_293 = arith.constant 128 : index
    %392 = vector.load %arg10[%c0_292, %c128_293] : memref<64x288xf32, #tpu.memory_space<vmem>>, vector<4x32xf32>
    tpu.vector_store %arg10[%c0_292, %c128_293], %391 {strides = array<i32>} : memref<64x288xf32, #tpu.memory_space<vmem>>, vector<4x32xf32>,
    %393 = vector.extract_strided_slice %388 {offsets = [2, 0], sizes = [4, 32], strides = [1, 1]} : vector<6x32xf32> to vector<4x32xf32>
    %c0_294 = arith.constant 0 : index
    %c160_295 = arith.constant 160 : index
    %394 = vector.load %arg10[%c0_294, %c160_295] : memref<64x288xf32, #tpu.memory_space<vmem>>, vector<4x32xf32>
    tpu.vector_store %arg10[%c0_294, %c160_295], %393 {strides = array<i32>} : memref<64x288xf32, #tpu.memory_space<vmem>>, vector<4x32xf32>,
    %c0_296 = arith.constant 0 : index
    %c12_297 = arith.constant 12 : index
    %c0_298 = arith.constant 0 : index
    %395 = vector.load %arg4[%c0_296, %c12_297, %c0_298] : memref<1x36x32xf32, #tpu.memory_space<vmem>>, vector<1x6x32xf32>
    %396 = vector.shape_cast %395 : vector<1x6x32xf32> to vector<6x32xf32>
    %397 = vector.extract_strided_slice %396 {offsets = [0, 0], sizes = [4, 32], strides = [1, 1]} : vector<6x32xf32> to vector<4x32xf32>
    %c4_299 = arith.constant 4 : index
    %c96_300 = arith.constant 96 : index
    %398 = vector.load %arg10[%c4_299, %c96_300] : memref<64x288xf32, #tpu.memory_space<vmem>>, vector<4x32xf32>
    tpu.vector_store %arg10[%c4_299, %c96_300], %397 {strides = array<i32>} : memref<64x288xf32, #tpu.memory_space<vmem>>, vector<4x32xf32>,
    %399 = vector.extract_strided_slice %396 {offsets = [1, 0], sizes = [4, 32], strides = [1, 1]} : vector<6x32xf32> to vector<4x32xf32>
    %c4_301 = arith.constant 4 : index
    %c128_302 = arith.constant 128 : index
    %400 = vector.load %arg10[%c4_301, %c128_302] : memref<64x288xf32, #tpu.memory_space<vmem>>, vector<4x32xf32>
    tpu.vector_store %arg10[%c4_301, %c128_302], %399 {strides = array<i32>} : memref<64x288xf32, #tpu.memory_space<vmem>>, vector<4x32xf32>,
    %401 = vector.extract_strided_slice %396 {offsets = [2, 0], sizes = [4, 32], strides = [1, 1]} : vector<6x32xf32> to vector<4x32xf32>
    %c4_303 = arith.constant 4 : index
    %c160_304 = arith.constant 160 : index
    %402 = vector.load %arg10[%c4_303, %c160_304] : memref<64x288xf32, #tpu.memory_space<vmem>>, vector<4x32xf32>
    tpu.vector_store %arg10[%c4_303, %c160_304], %401 {strides = array<i32>} : memref<64x288xf32, #tpu.memory_space<vmem>>, vector<4x32xf32>,
    %c0_305 = arith.constant 0 : index
    %c18_306 = arith.constant 18 : index
    %c0_307 = arith.constant 0 : index
    %403 = vector.load %arg4[%c0_305, %c18_306, %c0_307] : memref<1x36x32xf32, #tpu.memory_space<vmem>>, vector<1x6x32xf32>
    %404 = vector.shape_cast %403 : vector<1x6x32xf32> to vector<6x32xf32>
    %405 = vector.extract_strided_slice %404 {offsets = [0, 0], sizes = [4, 32], strides = [1, 1]} : vector<6x32xf32> to vector<4x32xf32>
    %c8_308 = arith.constant 8 : index
    %c96_309 = arith.constant 96 : index
    %406 = vector.load %arg10[%c8_308, %c96_309] : memref<64x288xf32, #tpu.memory_space<vmem>>, vector<4x32xf32>
    tpu.vector_store %arg10[%c8_308, %c96_309], %405 {strides = array<i32>} : memref<64x288xf32, #tpu.memory_space<vmem>>, vector<4x32xf32>,
    %407 = vector.extract_strided_slice %404 {offsets = [1, 0], sizes = [4, 32], strides = [1, 1]} : vector<6x32xf32> to vector<4x32xf32>
    %c8_310 = arith.constant 8 : index
    %c128_311 = arith.constant 128 : index
    %408 = vector.load %arg10[%c8_310, %c128_311] : memref<64x288xf32, #tpu.memory_space<vmem>>, vector<4x32xf32>
    tpu.vector_store %arg10[%c8_310, %c128_311], %407 {strides = array<i32>} : memref<64x288xf32, #tpu.memory_space<vmem>>, vector<4x32xf32>,
    %409 = vector.extract_strided_slice %404 {offsets = [2, 0], sizes = [4, 32], strides = [1, 1]} : vector<6x32xf32> to vector<4x32xf32>
    %c8_312 = arith.constant 8 : index
    %c160_313 = arith.constant 160 : index
    %410 = vector.load %arg10[%c8_312, %c160_313] : memref<64x288xf32, #tpu.memory_space<vmem>>, vector<4x32xf32>
    tpu.vector_store %arg10[%c8_312, %c160_313], %409 {strides = array<i32>} : memref<64x288xf32, #tpu.memory_space<vmem>>, vector<4x32xf32>,
    %c0_314 = arith.constant 0 : index
    %c24_315 = arith.constant 24 : index
    %c0_316 = arith.constant 0 : index
    %411 = vector.load %arg4[%c0_314, %c24_315, %c0_316] : memref<1x36x32xf32, #tpu.memory_space<vmem>>, vector<1x6x32xf32>
    %412 = vector.shape_cast %411 : vector<1x6x32xf32> to vector<6x32xf32>
    %413 = vector.extract_strided_slice %412 {offsets = [0, 0], sizes = [4, 32], strides = [1, 1]} : vector<6x32xf32> to vector<4x32xf32>
    %c12_317 = arith.constant 12 : index
    %c96_318 = arith.constant 96 : index
    %414 = vector.load %arg10[%c12_317, %c96_318] : memref<64x288xf32, #tpu.memory_space<vmem>>, vector<4x32xf32>
    tpu.vector_store %arg10[%c12_317, %c96_318], %413 {strides = array<i32>} : memref<64x288xf32, #tpu.memory_space<vmem>>, vector<4x32xf32>,
    %415 = vector.extract_strided_slice %412 {offsets = [1, 0], sizes = [4, 32], strides = [1, 1]} : vector<6x32xf32> to vector<4x32xf32>
    %c12_319 = arith.constant 12 : index
    %c128_320 = arith.constant 128 : index
    %416 = vector.load %arg10[%c12_319, %c128_320] : memref<64x288xf32, #tpu.memory_space<vmem>>, vector<4x32xf32>
    tpu.vector_store %arg10[%c12_319, %c128_320], %415 {strides = array<i32>} : memref<64x288xf32, #tpu.memory_space<vmem>>, vector<4x32xf32>,
    %417 = vector.extract_strided_slice %412 {offsets = [2, 0], sizes = [4, 32], strides = [1, 1]} : vector<6x32xf32> to vector<4x32xf32>
    %c12_321 = arith.constant 12 : index
    %c160_322 = arith.constant 160 : index
    %418 = vector.load %arg10[%c12_321, %c160_322] : memref<64x288xf32, #tpu.memory_space<vmem>>, vector<4x32xf32>
    tpu.vector_store %arg10[%c12_321, %c160_322], %417 {strides = array<i32>} : memref<64x288xf32, #tpu.memory_space<vmem>>, vector<4x32xf32>,
    %c0_323 = arith.constant 0 : index
    %c12_324 = arith.constant 12 : index
    %c0_325 = arith.constant 0 : index
    %419 = vector.load %arg4[%c0_323, %c12_324, %c0_325] : memref<1x36x32xf32, #tpu.memory_space<vmem>>, vector<1x6x32xf32>
    %420 = vector.shape_cast %419 : vector<1x6x32xf32> to vector<6x32xf32>
    %421 = vector.extract_strided_slice %420 {offsets = [0, 0], sizes = [4, 32], strides = [1, 1]} : vector<6x32xf32> to vector<4x32xf32>
    %c0_326 = arith.constant 0 : index
    %c192_327 = arith.constant 192 : index
    %422 = vector.load %arg10[%c0_326, %c192_327] : memref<64x288xf32, #tpu.memory_space<vmem>>, vector<4x32xf32>
    tpu.vector_store %arg10[%c0_326, %c192_327], %421 {strides = array<i32>} : memref<64x288xf32, #tpu.memory_space<vmem>>, vector<4x32xf32>,
    %423 = vector.extract_strided_slice %420 {offsets = [1, 0], sizes = [4, 32], strides = [1, 1]} : vector<6x32xf32> to vector<4x32xf32>
    %c0_328 = arith.constant 0 : index
    %c224_329 = arith.constant 224 : index
    %424 = vector.load %arg10[%c0_328, %c224_329] : memref<64x288xf32, #tpu.memory_space<vmem>>, vector<4x32xf32>
    tpu.vector_store %arg10[%c0_328, %c224_329], %423 {strides = array<i32>} : memref<64x288xf32, #tpu.memory_space<vmem>>, vector<4x32xf32>,
    %425 = vector.extract_strided_slice %420 {offsets = [2, 0], sizes = [4, 32], strides = [1, 1]} : vector<6x32xf32> to vector<4x32xf32>
    %c0_330 = arith.constant 0 : index
    %c256_331 = arith.constant 256 : index
    %426 = vector.load %arg10[%c0_330, %c256_331] : memref<64x288xf32, #tpu.memory_space<vmem>>, vector<4x32xf32>
    tpu.vector_store %arg10[%c0_330, %c256_331], %425 {strides = array<i32>} : memref<64x288xf32, #tpu.memory_space<vmem>>, vector<4x32xf32>,
    %c0_332 = arith.constant 0 : index
    %c18_333 = arith.constant 18 : index
    %c0_334 = arith.constant 0 : index
    %427 = vector.load %arg4[%c0_332, %c18_333, %c0_334] : memref<1x36x32xf32, #tpu.memory_space<vmem>>, vector<1x6x32xf32>
    %428 = vector.shape_cast %427 : vector<1x6x32xf32> to vector<6x32xf32>
    %429 = vector.extract_strided_slice %428 {offsets = [0, 0], sizes = [4, 32], strides = [1, 1]} : vector<6x32xf32> to vector<4x32xf32>
    %c4_335 = arith.constant 4 : index
    %c192_336 = arith.constant 192 : index
    %430 = vector.load %arg10[%c4_335, %c192_336] : memref<64x288xf32, #tpu.memory_space<vmem>>, vector<4x32xf32>
    tpu.vector_store %arg10[%c4_335, %c192_336], %429 {strides = array<i32>} : memref<64x288xf32, #tpu.memory_space<vmem>>, vector<4x32xf32>,
    %431 = vector.extract_strided_slice %428 {offsets = [1, 0], sizes = [4, 32], strides = [1, 1]} : vector<6x32xf32> to vector<4x32xf32>
    %c4_337 = arith.constant 4 : index
    %c224_338 = arith.constant 224 : index
    %432 = vector.load %arg10[%c4_337, %c224_338] : memref<64x288xf32, #tpu.memory_space<vmem>>, vector<4x32xf32>
    tpu.vector_store %arg10[%c4_337, %c224_338], %431 {strides = array<i32>} : memref<64x288xf32, #tpu.memory_space<vmem>>, vector<4x32xf32>,
    %433 = vector.extract_strided_slice %428 {offsets = [2, 0], sizes = [4, 32], strides = [1, 1]} : vector<6x32xf32> to vector<4x32xf32>
    %c4_339 = arith.constant 4 : index
    %c256_340 = arith.constant 256 : index
    %434 = vector.load %arg10[%c4_339, %c256_340] : memref<64x288xf32, #tpu.memory_space<vmem>>, vector<4x32xf32>
    tpu.vector_store %arg10[%c4_339, %c256_340], %433 {strides = array<i32>} : memref<64x288xf32, #tpu.memory_space<vmem>>, vector<4x32xf32>,
    %c0_341 = arith.constant 0 : index
    %c24_342 = arith.constant 24 : index
    %c0_343 = arith.constant 0 : index
    %435 = vector.load %arg4[%c0_341, %c24_342, %c0_343] : memref<1x36x32xf32, #tpu.memory_space<vmem>>, vector<1x6x32xf32>
    %436 = vector.shape_cast %435 : vector<1x6x32xf32> to vector<6x32xf32>
    %437 = vector.extract_strided_slice %436 {offsets = [0, 0], sizes = [4, 32], strides = [1, 1]} : vector<6x32xf32> to vector<4x32xf32>
    %c8_344 = arith.constant 8 : index
    %c192_345 = arith.constant 192 : index
    %438 = vector.load %arg10[%c8_344, %c192_345] : memref<64x288xf32, #tpu.memory_space<vmem>>, vector<4x32xf32>
    tpu.vector_store %arg10[%c8_344, %c192_345], %437 {strides = array<i32>} : memref<64x288xf32, #tpu.memory_space<vmem>>, vector<4x32xf32>,
    %439 = vector.extract_strided_slice %436 {offsets = [1, 0], sizes = [4, 32], strides = [1, 1]} : vector<6x32xf32> to vector<4x32xf32>
    %c8_346 = arith.constant 8 : index
    %c224_347 = arith.constant 224 : index
    %440 = vector.load %arg10[%c8_346, %c224_347] : memref<64x288xf32, #tpu.memory_space<vmem>>, vector<4x32xf32>
    tpu.vector_store %arg10[%c8_346, %c224_347], %439 {strides = array<i32>} : memref<64x288xf32, #tpu.memory_space<vmem>>, vector<4x32xf32>,
    %441 = vector.extract_strided_slice %436 {offsets = [2, 0], sizes = [4, 32], strides = [1, 1]} : vector<6x32xf32> to vector<4x32xf32>
    %c8_348 = arith.constant 8 : index
    %c256_349 = arith.constant 256 : index
    %442 = vector.load %arg10[%c8_348, %c256_349] : memref<64x288xf32, #tpu.memory_space<vmem>>, vector<4x32xf32>
    tpu.vector_store %arg10[%c8_348, %c256_349], %441 {strides = array<i32>} : memref<64x288xf32, #tpu.memory_space<vmem>>, vector<4x32xf32>,
    %c0_350 = arith.constant 0 : index
    %c30_351 = arith.constant 30 : index
    %c0_352 = arith.constant 0 : index
    %443 = vector.load %arg4[%c0_350, %c30_351, %c0_352] : memref<1x36x32xf32, #tpu.memory_space<vmem>>, vector<1x6x32xf32>
    %444 = vector.shape_cast %443 : vector<1x6x32xf32> to vector<6x32xf32>
    %445 = vector.extract_strided_slice %444 {offsets = [0, 0], sizes = [4, 32], strides = [1, 1]} : vector<6x32xf32> to vector<4x32xf32>
    %c12_353 = arith.constant 12 : index
    %c192_354 = arith.constant 192 : index
    %446 = vector.load %arg10[%c12_353, %c192_354] : memref<64x288xf32, #tpu.memory_space<vmem>>, vector<4x32xf32>
    tpu.vector_store %arg10[%c12_353, %c192_354], %445 {strides = array<i32>} : memref<64x288xf32, #tpu.memory_space<vmem>>, vector<4x32xf32>,
    %447 = vector.extract_strided_slice %444 {offsets = [1, 0], sizes = [4, 32], strides = [1, 1]} : vector<6x32xf32> to vector<4x32xf32>
    %c12_355 = arith.constant 12 : index
    %c224_356 = arith.constant 224 : index
    %448 = vector.load %arg10[%c12_355, %c224_356] : memref<64x288xf32, #tpu.memory_space<vmem>>, vector<4x32xf32>
    tpu.vector_store %arg10[%c12_355, %c224_356], %447 {strides = array<i32>} : memref<64x288xf32, #tpu.memory_space<vmem>>, vector<4x32xf32>,
    %449 = vector.extract_strided_slice %444 {offsets = [2, 0], sizes = [4, 32], strides = [1, 1]} : vector<6x32xf32> to vector<4x32xf32>
    %c12_357 = arith.constant 12 : index
    %c256_358 = arith.constant 256 : index
    %450 = vector.load %arg10[%c12_357, %c256_358] : memref<64x288xf32, #tpu.memory_space<vmem>>, vector<4x32xf32>
    tpu.vector_store %arg10[%c12_357, %c256_358], %449 {strides = array<i32>} : memref<64x288xf32, #tpu.memory_space<vmem>>, vector<4x32xf32>,
    %c0_359 = arith.constant 0 : index
    %c0_360 = arith.constant 0 : index
    %451 = vector.load %arg10[%c0_359, %c0_360] : memref<64x288xf32, #tpu.memory_space<vmem>>, vector<16x288xf32>
    %452 = arith.truncf %451 : vector<16x288xf32> to vector<16x288xbf16>
    %c0_361 = arith.constant 0 : index
    %c0_362 = arith.constant 0 : index
    %453 = vector.load %arg5[%c0_361, %c0_362] : memref<288x128xbf16, #tpu.memory_space<vmem>>, vector<288x128xbf16>
    %cst_363 = arith.constant dense<0.000000e+00> : vector<16x128xf32>
    %454 = tpu.matmul %452, %453, %cst_363 {dimension_numbers = #tpu.dot_dimension_numbers<[1], [0], [0], [1], [0, 0, 1, 1], [], []>} : vector<16x288xbf16>, vector<288x128xbf16>, vector<16x128xf32> -> vector<16x128xf32>
    %c0_364 = arith.constant 0 : index
    %c0_365 = arith.constant 0 : index
    %455 = vector.load %arg6[%c0_364, %c0_365] : memref<1x128xf32, #tpu.memory_space<vmem>>, vector<1x128xf32>
    %456 = vector.broadcast %455 : vector<1x128xf32> to vector<16x128xf32>
    %457 = arith.addf %454, %456 : vector<16x128xf32>
    %458 = vector.extract_strided_slice %457 {offsets = [0, 0], sizes = [16, 6], strides = [1, 1]} : vector<16x128xf32> to vector<16x6xf32>
    %cst_366 = arith.constant dense<0xFF800000> : vector<16xf32>
    %459 = vector.multi_reduction <maximumf>, %458, %cst_366 [1] : vector<16x6xf32> to vector<16xf32>
    %460 = vector.shape_cast %459 : vector<16xf32> to vector<16x1xf32>
    %461 = vector.broadcast %460 : vector<16x1xf32> to vector<16x6xf32>
    %462 = arith.subf %458, %461 : vector<16x6xf32>
    %463 = math.exp %462 : vector<16x6xf32>
    %cst_367 = arith.constant dense<0.000000e+00> : vector<16xf32>
    %464 = vector.multi_reduction <add>, %463, %cst_367 [1] : vector<16x6xf32> to vector<16xf32>
    %465 = vector.shape_cast %464 : vector<16xf32> to vector<16x1xf32>
    %466 = tpu.reciprocal %465 : vector<16x1xf32> -> vector<16x1xf32>
    %467 = vector.broadcast %466 : vector<16x1xf32> to vector<16x6xf32>
    %468 = arith.mulf %463, %467 : vector<16x6xf32>
    %c0_368 = arith.constant 0 : index
    %c256_369 = arith.constant 256 : index
    %c0_370 = arith.constant 0 : index
    %469 = vector.load %arg8[%c0_368, %c256_369, %c0_370] : memref<1x352x6xf32, #tpu.memory_space<vmem>>, vector<1x16x6xf32>
    %470 = vector.shape_cast %469 : vector<1x16x6xf32> to vector<16x6xf32>
    %471 = vector.shape_cast %468 : vector<16x6xf32> to vector<1x16x6xf32>
    tpu.vector_store %arg8[%c0_368, %c256_369, %c0_370], %471 {strides = array<i32>} : memref<1x352x6xf32, #tpu.memory_space<vmem>>, vector<1x16x6xf32>,
    %472 = vector.extract_strided_slice %457 {offsets = [0, 36], sizes = [16, 4], strides = [1, 1]} : vector<16x128xf32> to vector<16x4xf32>
    %c256_371 = arith.constant 256 : index
    %c0_372 = arith.constant 0 : index
    %473 = vector.load %arg7[%c256_371, %c0_372] : memref<352x4xf32, #tpu.memory_space<vmem>>, vector<16x4xf32>
    %474 = vector.extract_strided_slice %472 {offsets = [0, 0], sizes = [16, 2], strides = [1, 1]} : vector<16x4xf32> to vector<16x2xf32>
    %cst_373 = arith.constant 1.000000e-01 : f32
    %475 = vector.broadcast %cst_373 : f32 to vector<16x2xf32>
    %476 = arith.mulf %474, %475 : vector<16x2xf32>
    %477 = vector.extract_strided_slice %473 {offsets = [0, 2], sizes = [16, 2], strides = [1, 1]} : vector<16x4xf32> to vector<16x2xf32>
    %478 = arith.mulf %476, %477 : vector<16x2xf32>
    %479 = vector.extract_strided_slice %473 {offsets = [0, 0], sizes = [16, 2], strides = [1, 1]} : vector<16x4xf32> to vector<16x2xf32>
    %480 = arith.addf %478, %479 : vector<16x2xf32>
    %481 = vector.extract_strided_slice %472 {offsets = [0, 2], sizes = [16, 2], strides = [1, 1]} : vector<16x4xf32> to vector<16x2xf32>
    %cst_374 = arith.constant 2.000000e-01 : f32
    %482 = vector.broadcast %cst_374 : f32 to vector<16x2xf32>
    %483 = arith.mulf %481, %482 : vector<16x2xf32>
    %484 = math.exp %483 : vector<16x2xf32>
    %485 = vector.extract_strided_slice %473 {offsets = [0, 2], sizes = [16, 2], strides = [1, 1]} : vector<16x4xf32> to vector<16x2xf32>
    %486 = arith.mulf %484, %485 : vector<16x2xf32>
    %cst_375 = arith.constant 5.000000e-01 : f32
    %487 = vector.broadcast %cst_375 : f32 to vector<16x2xf32>
    %488 = arith.mulf %487, %486 : vector<16x2xf32>
    %489 = arith.subf %480, %488 : vector<16x2xf32>
    %cst_376 = arith.constant 5.000000e-01 : f32
    %490 = vector.broadcast %cst_376 : f32 to vector<16x2xf32>
    %491 = arith.mulf %490, %486 : vector<16x2xf32>
    %492 = arith.addf %480, %491 : vector<16x2xf32>
    %493 = tpu.concatenate %489, %492 in 1 : vector<16x2xf32>, vector<16x2xf32> -> vector<16x4xf32>
    %c0_377 = arith.constant 0 : index
    %c256_378 = arith.constant 256 : index
    %c0_379 = arith.constant 0 : index
    %494 = vector.load %arg9[%c0_377, %c256_378, %c0_379] : memref<1x352x4xf32, #tpu.memory_space<vmem>>, vector<1x16x4xf32>
    %495 = vector.shape_cast %494 : vector<1x16x4xf32> to vector<16x4xf32>
    %496 = vector.shape_cast %493 : vector<16x4xf32> to vector<1x16x4xf32>
    tpu.vector_store %arg9[%c0_377, %c256_378, %c0_379], %496 {strides = array<i32>} : memref<1x352x4xf32, #tpu.memory_space<vmem>>, vector<1x16x4xf32>,
    %497 = vector.extract_strided_slice %457 {offsets = [0, 6], sizes = [16, 6], strides = [1, 1]} : vector<16x128xf32> to vector<16x6xf32>
    %cst_380 = arith.constant dense<0xFF800000> : vector<16xf32>
    %498 = vector.multi_reduction <maximumf>, %497, %cst_380 [1] : vector<16x6xf32> to vector<16xf32>
    %499 = vector.shape_cast %498 : vector<16xf32> to vector<16x1xf32>
    %500 = vector.broadcast %499 : vector<16x1xf32> to vector<16x6xf32>
    %501 = arith.subf %497, %500 : vector<16x6xf32>
    %502 = math.exp %501 : vector<16x6xf32>
    %cst_381 = arith.constant dense<0.000000e+00> : vector<16xf32>
    %503 = vector.multi_reduction <add>, %502, %cst_381 [1] : vector<16x6xf32> to vector<16xf32>
    %504 = vector.shape_cast %503 : vector<16xf32> to vector<16x1xf32>
    %505 = tpu.reciprocal %504 : vector<16x1xf32> -> vector<16x1xf32>
    %506 = vector.broadcast %505 : vector<16x1xf32> to vector<16x6xf32>
    %507 = arith.mulf %502, %506 : vector<16x6xf32>
    %c0_382 = arith.constant 0 : index
    %c272 = arith.constant 272 : index
    %c0_383 = arith.constant 0 : index
    %508 = vector.load %arg8[%c0_382, %c272, %c0_383] : memref<1x352x6xf32, #tpu.memory_space<vmem>>, vector<1x16x6xf32>
    %509 = vector.shape_cast %508 : vector<1x16x6xf32> to vector<16x6xf32>
    %510 = vector.shape_cast %507 : vector<16x6xf32> to vector<1x16x6xf32>
    tpu.vector_store %arg8[%c0_382, %c272, %c0_383], %510 {strides = array<i32>} : memref<1x352x6xf32, #tpu.memory_space<vmem>>, vector<1x16x6xf32>,
    %511 = vector.extract_strided_slice %457 {offsets = [0, 40], sizes = [16, 4], strides = [1, 1]} : vector<16x128xf32> to vector<16x4xf32>
    %c272_384 = arith.constant 272 : index
    %c0_385 = arith.constant 0 : index
    %512 = vector.load %arg7[%c272_384, %c0_385] : memref<352x4xf32, #tpu.memory_space<vmem>>, vector<16x4xf32>
    %513 = vector.extract_strided_slice %511 {offsets = [0, 0], sizes = [16, 2], strides = [1, 1]} : vector<16x4xf32> to vector<16x2xf32>
    %cst_386 = arith.constant 1.000000e-01 : f32
    %514 = vector.broadcast %cst_386 : f32 to vector<16x2xf32>
    %515 = arith.mulf %513, %514 : vector<16x2xf32>
    %516 = vector.extract_strided_slice %512 {offsets = [0, 2], sizes = [16, 2], strides = [1, 1]} : vector<16x4xf32> to vector<16x2xf32>
    %517 = arith.mulf %515, %516 : vector<16x2xf32>
    %518 = vector.extract_strided_slice %512 {offsets = [0, 0], sizes = [16, 2], strides = [1, 1]} : vector<16x4xf32> to vector<16x2xf32>
    %519 = arith.addf %517, %518 : vector<16x2xf32>
    %520 = vector.extract_strided_slice %511 {offsets = [0, 2], sizes = [16, 2], strides = [1, 1]} : vector<16x4xf32> to vector<16x2xf32>
    %cst_387 = arith.constant 2.000000e-01 : f32
    %521 = vector.broadcast %cst_387 : f32 to vector<16x2xf32>
    %522 = arith.mulf %520, %521 : vector<16x2xf32>
    %523 = math.exp %522 : vector<16x2xf32>
    %524 = vector.extract_strided_slice %512 {offsets = [0, 2], sizes = [16, 2], strides = [1, 1]} : vector<16x4xf32> to vector<16x2xf32>
    %525 = arith.mulf %523, %524 : vector<16x2xf32>
    %cst_388 = arith.constant 5.000000e-01 : f32
    %526 = vector.broadcast %cst_388 : f32 to vector<16x2xf32>
    %527 = arith.mulf %526, %525 : vector<16x2xf32>
    %528 = arith.subf %519, %527 : vector<16x2xf32>
    %cst_389 = arith.constant 5.000000e-01 : f32
    %529 = vector.broadcast %cst_389 : f32 to vector<16x2xf32>
    %530 = arith.mulf %529, %525 : vector<16x2xf32>
    %531 = arith.addf %519, %530 : vector<16x2xf32>
    %532 = tpu.concatenate %528, %531 in 1 : vector<16x2xf32>, vector<16x2xf32> -> vector<16x4xf32>
    %c0_390 = arith.constant 0 : index
    %c272_391 = arith.constant 272 : index
    %c0_392 = arith.constant 0 : index
    %533 = vector.load %arg9[%c0_390, %c272_391, %c0_392] : memref<1x352x4xf32, #tpu.memory_space<vmem>>, vector<1x16x4xf32>
    %534 = vector.shape_cast %533 : vector<1x16x4xf32> to vector<16x4xf32>
    %535 = vector.shape_cast %532 : vector<16x4xf32> to vector<1x16x4xf32>
    tpu.vector_store %arg9[%c0_390, %c272_391, %c0_392], %535 {strides = array<i32>} : memref<1x352x4xf32, #tpu.memory_space<vmem>>, vector<1x16x4xf32>,
    %536 = vector.extract_strided_slice %457 {offsets = [0, 12], sizes = [16, 6], strides = [1, 1]} : vector<16x128xf32> to vector<16x6xf32>
    %cst_393 = arith.constant dense<0xFF800000> : vector<16xf32>
    %537 = vector.multi_reduction <maximumf>, %536, %cst_393 [1] : vector<16x6xf32> to vector<16xf32>
    %538 = vector.shape_cast %537 : vector<16xf32> to vector<16x1xf32>
    %539 = vector.broadcast %538 : vector<16x1xf32> to vector<16x6xf32>
    %540 = arith.subf %536, %539 : vector<16x6xf32>
    %541 = math.exp %540 : vector<16x6xf32>
    %cst_394 = arith.constant dense<0.000000e+00> : vector<16xf32>
    %542 = vector.multi_reduction <add>, %541, %cst_394 [1] : vector<16x6xf32> to vector<16xf32>
    %543 = vector.shape_cast %542 : vector<16xf32> to vector<16x1xf32>
    %544 = tpu.reciprocal %543 : vector<16x1xf32> -> vector<16x1xf32>
    %545 = vector.broadcast %544 : vector<16x1xf32> to vector<16x6xf32>
    %546 = arith.mulf %541, %545 : vector<16x6xf32>
    %c0_395 = arith.constant 0 : index
    %c288 = arith.constant 288 : index
    %c0_396 = arith.constant 0 : index
    %547 = vector.load %arg8[%c0_395, %c288, %c0_396] : memref<1x352x6xf32, #tpu.memory_space<vmem>>, vector<1x16x6xf32>
    %548 = vector.shape_cast %547 : vector<1x16x6xf32> to vector<16x6xf32>
    %549 = vector.shape_cast %546 : vector<16x6xf32> to vector<1x16x6xf32>
    tpu.vector_store %arg8[%c0_395, %c288, %c0_396], %549 {strides = array<i32>} : memref<1x352x6xf32, #tpu.memory_space<vmem>>, vector<1x16x6xf32>,
    %550 = vector.extract_strided_slice %457 {offsets = [0, 44], sizes = [16, 4], strides = [1, 1]} : vector<16x128xf32> to vector<16x4xf32>
    %c288_397 = arith.constant 288 : index
    %c0_398 = arith.constant 0 : index
    %551 = vector.load %arg7[%c288_397, %c0_398] : memref<352x4xf32, #tpu.memory_space<vmem>>, vector<16x4xf32>
    %552 = vector.extract_strided_slice %550 {offsets = [0, 0], sizes = [16, 2], strides = [1, 1]} : vector<16x4xf32> to vector<16x2xf32>
    %cst_399 = arith.constant 1.000000e-01 : f32
    %553 = vector.broadcast %cst_399 : f32 to vector<16x2xf32>
    %554 = arith.mulf %552, %553 : vector<16x2xf32>
    %555 = vector.extract_strided_slice %551 {offsets = [0, 2], sizes = [16, 2], strides = [1, 1]} : vector<16x4xf32> to vector<16x2xf32>
    %556 = arith.mulf %554, %555 : vector<16x2xf32>
    %557 = vector.extract_strided_slice %551 {offsets = [0, 0], sizes = [16, 2], strides = [1, 1]} : vector<16x4xf32> to vector<16x2xf32>
    %558 = arith.addf %556, %557 : vector<16x2xf32>
    %559 = vector.extract_strided_slice %550 {offsets = [0, 2], sizes = [16, 2], strides = [1, 1]} : vector<16x4xf32> to vector<16x2xf32>
    %cst_400 = arith.constant 2.000000e-01 : f32
    %560 = vector.broadcast %cst_400 : f32 to vector<16x2xf32>
    %561 = arith.mulf %559, %560 : vector<16x2xf32>
    %562 = math.exp %561 : vector<16x2xf32>
    %563 = vector.extract_strided_slice %551 {offsets = [0, 2], sizes = [16, 2], strides = [1, 1]} : vector<16x4xf32> to vector<16x2xf32>
    %564 = arith.mulf %562, %563 : vector<16x2xf32>
    %cst_401 = arith.constant 5.000000e-01 : f32
    %565 = vector.broadcast %cst_401 : f32 to vector<16x2xf32>
    %566 = arith.mulf %565, %564 : vector<16x2xf32>
    %567 = arith.subf %558, %566 : vector<16x2xf32>
    %cst_402 = arith.constant 5.000000e-01 : f32
    %568 = vector.broadcast %cst_402 : f32 to vector<16x2xf32>
    %569 = arith.mulf %568, %564 : vector<16x2xf32>
    %570 = arith.addf %558, %569 : vector<16x2xf32>
    %571 = tpu.concatenate %567, %570 in 1 : vector<16x2xf32>, vector<16x2xf32> -> vector<16x4xf32>
    %c0_403 = arith.constant 0 : index
    %c288_404 = arith.constant 288 : index
    %c0_405 = arith.constant 0 : index
    %572 = vector.load %arg9[%c0_403, %c288_404, %c0_405] : memref<1x352x4xf32, #tpu.memory_space<vmem>>, vector<1x16x4xf32>
    %573 = vector.shape_cast %572 : vector<1x16x4xf32> to vector<16x4xf32>
    %574 = vector.shape_cast %571 : vector<16x4xf32> to vector<1x16x4xf32>
    tpu.vector_store %arg9[%c0_403, %c288_404, %c0_405], %574 {strides = array<i32>} : memref<1x352x4xf32, #tpu.memory_space<vmem>>, vector<1x16x4xf32>,
    %575 = vector.extract_strided_slice %457 {offsets = [0, 18], sizes = [16, 6], strides = [1, 1]} : vector<16x128xf32> to vector<16x6xf32>
    %cst_406 = arith.constant dense<0xFF800000> : vector<16xf32>
    %576 = vector.multi_reduction <maximumf>, %575, %cst_406 [1] : vector<16x6xf32> to vector<16xf32>
    %577 = vector.shape_cast %576 : vector<16xf32> to vector<16x1xf32>
    %578 = vector.broadcast %577 : vector<16x1xf32> to vector<16x6xf32>
    %579 = arith.subf %575, %578 : vector<16x6xf32>
    %580 = math.exp %579 : vector<16x6xf32>
    %cst_407 = arith.constant dense<0.000000e+00> : vector<16xf32>
    %581 = vector.multi_reduction <add>, %580, %cst_407 [1] : vector<16x6xf32> to vector<16xf32>
    %582 = vector.shape_cast %581 : vector<16xf32> to vector<16x1xf32>
    %583 = tpu.reciprocal %582 : vector<16x1xf32> -> vector<16x1xf32>
    %584 = vector.broadcast %583 : vector<16x1xf32> to vector<16x6xf32>
    %585 = arith.mulf %580, %584 : vector<16x6xf32>
    %c0_408 = arith.constant 0 : index
    %c304 = arith.constant 304 : index
    %c0_409 = arith.constant 0 : index
    %586 = vector.load %arg8[%c0_408, %c304, %c0_409] : memref<1x352x6xf32, #tpu.memory_space<vmem>>, vector<1x16x6xf32>
    %587 = vector.shape_cast %586 : vector<1x16x6xf32> to vector<16x6xf32>
    %588 = vector.shape_cast %585 : vector<16x6xf32> to vector<1x16x6xf32>
    tpu.vector_store %arg8[%c0_408, %c304, %c0_409], %588 {strides = array<i32>} : memref<1x352x6xf32, #tpu.memory_space<vmem>>, vector<1x16x6xf32>,
    %589 = vector.extract_strided_slice %457 {offsets = [0, 48], sizes = [16, 4], strides = [1, 1]} : vector<16x128xf32> to vector<16x4xf32>
    %c304_410 = arith.constant 304 : index
    %c0_411 = arith.constant 0 : index
    %590 = vector.load %arg7[%c304_410, %c0_411] : memref<352x4xf32, #tpu.memory_space<vmem>>, vector<16x4xf32>
    %591 = vector.extract_strided_slice %589 {offsets = [0, 0], sizes = [16, 2], strides = [1, 1]} : vector<16x4xf32> to vector<16x2xf32>
    %cst_412 = arith.constant 1.000000e-01 : f32
    %592 = vector.broadcast %cst_412 : f32 to vector<16x2xf32>
    %593 = arith.mulf %591, %592 : vector<16x2xf32>
    %594 = vector.extract_strided_slice %590 {offsets = [0, 2], sizes = [16, 2], strides = [1, 1]} : vector<16x4xf32> to vector<16x2xf32>
    %595 = arith.mulf %593, %594 : vector<16x2xf32>
    %596 = vector.extract_strided_slice %590 {offsets = [0, 0], sizes = [16, 2], strides = [1, 1]} : vector<16x4xf32> to vector<16x2xf32>
    %597 = arith.addf %595, %596 : vector<16x2xf32>
    %598 = vector.extract_strided_slice %589 {offsets = [0, 2], sizes = [16, 2], strides = [1, 1]} : vector<16x4xf32> to vector<16x2xf32>
    %cst_413 = arith.constant 2.000000e-01 : f32
    %599 = vector.broadcast %cst_413 : f32 to vector<16x2xf32>
    %600 = arith.mulf %598, %599 : vector<16x2xf32>
    %601 = math.exp %600 : vector<16x2xf32>
    %602 = vector.extract_strided_slice %590 {offsets = [0, 2], sizes = [16, 2], strides = [1, 1]} : vector<16x4xf32> to vector<16x2xf32>
    %603 = arith.mulf %601, %602 : vector<16x2xf32>
    %cst_414 = arith.constant 5.000000e-01 : f32
    %604 = vector.broadcast %cst_414 : f32 to vector<16x2xf32>
    %605 = arith.mulf %604, %603 : vector<16x2xf32>
    %606 = arith.subf %597, %605 : vector<16x2xf32>
    %cst_415 = arith.constant 5.000000e-01 : f32
    %607 = vector.broadcast %cst_415 : f32 to vector<16x2xf32>
    %608 = arith.mulf %607, %603 : vector<16x2xf32>
    %609 = arith.addf %597, %608 : vector<16x2xf32>
    %610 = tpu.concatenate %606, %609 in 1 : vector<16x2xf32>, vector<16x2xf32> -> vector<16x4xf32>
    %c0_416 = arith.constant 0 : index
    %c304_417 = arith.constant 304 : index
    %c0_418 = arith.constant 0 : index
    %611 = vector.load %arg9[%c0_416, %c304_417, %c0_418] : memref<1x352x4xf32, #tpu.memory_space<vmem>>, vector<1x16x4xf32>
    %612 = vector.shape_cast %611 : vector<1x16x4xf32> to vector<16x4xf32>
    %613 = vector.shape_cast %610 : vector<16x4xf32> to vector<1x16x4xf32>
    tpu.vector_store %arg9[%c0_416, %c304_417, %c0_418], %613 {strides = array<i32>} : memref<1x352x4xf32, #tpu.memory_space<vmem>>, vector<1x16x4xf32>,
    %614 = vector.extract_strided_slice %457 {offsets = [0, 24], sizes = [16, 6], strides = [1, 1]} : vector<16x128xf32> to vector<16x6xf32>
    %cst_419 = arith.constant dense<0xFF800000> : vector<16xf32>
    %615 = vector.multi_reduction <maximumf>, %614, %cst_419 [1] : vector<16x6xf32> to vector<16xf32>
    %616 = vector.shape_cast %615 : vector<16xf32> to vector<16x1xf32>
    %617 = vector.broadcast %616 : vector<16x1xf32> to vector<16x6xf32>
    %618 = arith.subf %614, %617 : vector<16x6xf32>
    %619 = math.exp %618 : vector<16x6xf32>
    %cst_420 = arith.constant dense<0.000000e+00> : vector<16xf32>
    %620 = vector.multi_reduction <add>, %619, %cst_420 [1] : vector<16x6xf32> to vector<16xf32>
    %621 = vector.shape_cast %620 : vector<16xf32> to vector<16x1xf32>
    %622 = tpu.reciprocal %621 : vector<16x1xf32> -> vector<16x1xf32>
    %623 = vector.broadcast %622 : vector<16x1xf32> to vector<16x6xf32>
    %624 = arith.mulf %619, %623 : vector<16x6xf32>
    %c0_421 = arith.constant 0 : index
    %c320 = arith.constant 320 : index
    %c0_422 = arith.constant 0 : index
    %625 = vector.load %arg8[%c0_421, %c320, %c0_422] : memref<1x352x6xf32, #tpu.memory_space<vmem>>, vector<1x16x6xf32>
    %626 = vector.shape_cast %625 : vector<1x16x6xf32> to vector<16x6xf32>
    %627 = vector.shape_cast %624 : vector<16x6xf32> to vector<1x16x6xf32>
    tpu.vector_store %arg8[%c0_421, %c320, %c0_422], %627 {strides = array<i32>} : memref<1x352x6xf32, #tpu.memory_space<vmem>>, vector<1x16x6xf32>,
    %628 = vector.extract_strided_slice %457 {offsets = [0, 52], sizes = [16, 4], strides = [1, 1]} : vector<16x128xf32> to vector<16x4xf32>
    %c320_423 = arith.constant 320 : index
    %c0_424 = arith.constant 0 : index
    %629 = vector.load %arg7[%c320_423, %c0_424] : memref<352x4xf32, #tpu.memory_space<vmem>>, vector<16x4xf32>
    %630 = vector.extract_strided_slice %628 {offsets = [0, 0], sizes = [16, 2], strides = [1, 1]} : vector<16x4xf32> to vector<16x2xf32>
    %cst_425 = arith.constant 1.000000e-01 : f32
    %631 = vector.broadcast %cst_425 : f32 to vector<16x2xf32>
    %632 = arith.mulf %630, %631 : vector<16x2xf32>
    %633 = vector.extract_strided_slice %629 {offsets = [0, 2], sizes = [16, 2], strides = [1, 1]} : vector<16x4xf32> to vector<16x2xf32>
    %634 = arith.mulf %632, %633 : vector<16x2xf32>
    %635 = vector.extract_strided_slice %629 {offsets = [0, 0], sizes = [16, 2], strides = [1, 1]} : vector<16x4xf32> to vector<16x2xf32>
    %636 = arith.addf %634, %635 : vector<16x2xf32>
    %637 = vector.extract_strided_slice %628 {offsets = [0, 2], sizes = [16, 2], strides = [1, 1]} : vector<16x4xf32> to vector<16x2xf32>
    %cst_426 = arith.constant 2.000000e-01 : f32
    %638 = vector.broadcast %cst_426 : f32 to vector<16x2xf32>
    %639 = arith.mulf %637, %638 : vector<16x2xf32>
    %640 = math.exp %639 : vector<16x2xf32>
    %641 = vector.extract_strided_slice %629 {offsets = [0, 2], sizes = [16, 2], strides = [1, 1]} : vector<16x4xf32> to vector<16x2xf32>
    %642 = arith.mulf %640, %641 : vector<16x2xf32>
    %cst_427 = arith.constant 5.000000e-01 : f32
    %643 = vector.broadcast %cst_427 : f32 to vector<16x2xf32>
    %644 = arith.mulf %643, %642 : vector<16x2xf32>
    %645 = arith.subf %636, %644 : vector<16x2xf32>
    %cst_428 = arith.constant 5.000000e-01 : f32
    %646 = vector.broadcast %cst_428 : f32 to vector<16x2xf32>
    %647 = arith.mulf %646, %642 : vector<16x2xf32>
    %648 = arith.addf %636, %647 : vector<16x2xf32>
    %649 = tpu.concatenate %645, %648 in 1 : vector<16x2xf32>, vector<16x2xf32> -> vector<16x4xf32>
    %c0_429 = arith.constant 0 : index
    %c320_430 = arith.constant 320 : index
    %c0_431 = arith.constant 0 : index
    %650 = vector.load %arg9[%c0_429, %c320_430, %c0_431] : memref<1x352x4xf32, #tpu.memory_space<vmem>>, vector<1x16x4xf32>
    %651 = vector.shape_cast %650 : vector<1x16x4xf32> to vector<16x4xf32>
    %652 = vector.shape_cast %649 : vector<16x4xf32> to vector<1x16x4xf32>
    tpu.vector_store %arg9[%c0_429, %c320_430, %c0_431], %652 {strides = array<i32>} : memref<1x352x4xf32, #tpu.memory_space<vmem>>, vector<1x16x4xf32>,
    %653 = vector.extract_strided_slice %457 {offsets = [0, 30], sizes = [16, 6], strides = [1, 1]} : vector<16x128xf32> to vector<16x6xf32>
    %cst_432 = arith.constant dense<0xFF800000> : vector<16xf32>
    %654 = vector.multi_reduction <maximumf>, %653, %cst_432 [1] : vector<16x6xf32> to vector<16xf32>
    %655 = vector.shape_cast %654 : vector<16xf32> to vector<16x1xf32>
    %656 = vector.broadcast %655 : vector<16x1xf32> to vector<16x6xf32>
    %657 = arith.subf %653, %656 : vector<16x6xf32>
    %658 = math.exp %657 : vector<16x6xf32>
    %cst_433 = arith.constant dense<0.000000e+00> : vector<16xf32>
    %659 = vector.multi_reduction <add>, %658, %cst_433 [1] : vector<16x6xf32> to vector<16xf32>
    %660 = vector.shape_cast %659 : vector<16xf32> to vector<16x1xf32>
    %661 = tpu.reciprocal %660 : vector<16x1xf32> -> vector<16x1xf32>
    %662 = vector.broadcast %661 : vector<16x1xf32> to vector<16x6xf32>
    %663 = arith.mulf %658, %662 : vector<16x6xf32>
    %c0_434 = arith.constant 0 : index
    %c336 = arith.constant 336 : index
    %c0_435 = arith.constant 0 : index
    %664 = vector.load %arg8[%c0_434, %c336, %c0_435] : memref<1x352x6xf32, #tpu.memory_space<vmem>>, vector<1x16x6xf32>
    %665 = vector.shape_cast %664 : vector<1x16x6xf32> to vector<16x6xf32>
    %666 = vector.shape_cast %663 : vector<16x6xf32> to vector<1x16x6xf32>
    tpu.vector_store %arg8[%c0_434, %c336, %c0_435], %666 {strides = array<i32>} : memref<1x352x6xf32, #tpu.memory_space<vmem>>, vector<1x16x6xf32>,
    %667 = vector.extract_strided_slice %457 {offsets = [0, 56], sizes = [16, 4], strides = [1, 1]} : vector<16x128xf32> to vector<16x4xf32>
    %c336_436 = arith.constant 336 : index
    %c0_437 = arith.constant 0 : index
    %668 = vector.load %arg7[%c336_436, %c0_437] : memref<352x4xf32, #tpu.memory_space<vmem>>, vector<16x4xf32>
    %669 = vector.extract_strided_slice %667 {offsets = [0, 0], sizes = [16, 2], strides = [1, 1]} : vector<16x4xf32> to vector<16x2xf32>
    %cst_438 = arith.constant 1.000000e-01 : f32
    %670 = vector.broadcast %cst_438 : f32 to vector<16x2xf32>
    %671 = arith.mulf %669, %670 : vector<16x2xf32>
    %672 = vector.extract_strided_slice %668 {offsets = [0, 2], sizes = [16, 2], strides = [1, 1]} : vector<16x4xf32> to vector<16x2xf32>
    %673 = arith.mulf %671, %672 : vector<16x2xf32>
    %674 = vector.extract_strided_slice %668 {offsets = [0, 0], sizes = [16, 2], strides = [1, 1]} : vector<16x4xf32> to vector<16x2xf32>
    %675 = arith.addf %673, %674 : vector<16x2xf32>
    %676 = vector.extract_strided_slice %667 {offsets = [0, 2], sizes = [16, 2], strides = [1, 1]} : vector<16x4xf32> to vector<16x2xf32>
    %cst_439 = arith.constant 2.000000e-01 : f32
    %677 = vector.broadcast %cst_439 : f32 to vector<16x2xf32>
    %678 = arith.mulf %676, %677 : vector<16x2xf32>
    %679 = math.exp %678 : vector<16x2xf32>
    %680 = vector.extract_strided_slice %668 {offsets = [0, 2], sizes = [16, 2], strides = [1, 1]} : vector<16x4xf32> to vector<16x2xf32>
    %681 = arith.mulf %679, %680 : vector<16x2xf32>
    %cst_440 = arith.constant 5.000000e-01 : f32
    %682 = vector.broadcast %cst_440 : f32 to vector<16x2xf32>
    %683 = arith.mulf %682, %681 : vector<16x2xf32>
    %684 = arith.subf %675, %683 : vector<16x2xf32>
    %cst_441 = arith.constant 5.000000e-01 : f32
    %685 = vector.broadcast %cst_441 : f32 to vector<16x2xf32>
    %686 = arith.mulf %685, %681 : vector<16x2xf32>
    %687 = arith.addf %675, %686 : vector<16x2xf32>
    %688 = tpu.concatenate %684, %687 in 1 : vector<16x2xf32>, vector<16x2xf32> -> vector<16x4xf32>
    %c0_442 = arith.constant 0 : index
    %c336_443 = arith.constant 336 : index
    %c0_444 = arith.constant 0 : index
    %689 = vector.load %arg9[%c0_442, %c336_443, %c0_444] : memref<1x352x4xf32, #tpu.memory_space<vmem>>, vector<1x16x4xf32>
    %690 = vector.shape_cast %689 : vector<1x16x4xf32> to vector<16x4xf32>
    %691 = vector.shape_cast %688 : vector<16x4xf32> to vector<1x16x4xf32>
    tpu.vector_store %arg9[%c0_442, %c336_443, %c0_444], %691 {strides = array<i32>} : memref<1x352x4xf32, #tpu.memory_space<vmem>>, vector<1x16x4xf32>,
    return
  }
  func.func @transform_0(%arg0: i32) -> (i32, i32, i32) {
    %c0_i32 = arith.constant 0 : i32
    %c0_i32_0 = arith.constant 0 : i32
    %c0_i32_1 = arith.constant 0 : i32
    return %arg0, %c0_i32, %c0_i32_0 : i32, i32, i32
  }
  func.func @transform_1(%arg0: i32) -> (i32, i32) {
    %c0_i32 = arith.constant 0 : i32
    %c0_i32_0 = arith.constant 0 : i32
    %c0_i32_1 = arith.constant 0 : i32
    return %c0_i32, %c0_i32_0 : i32, i32
  }
  func.func @transform_2(%arg0: i32) -> (i32, i32) {
    %c0_i32 = arith.constant 0 : i32
    %c0_i32_0 = arith.constant 0 : i32
    %c0_i32_1 = arith.constant 0 : i32
    return %c0_i32, %c0_i32_0 : i32, i32
  }
  func.func @transform_3(%arg0: i32) -> (i32, i32, i32) {
    %c0_i32 = arith.constant 0 : i32
    %c0_i32_0 = arith.constant 0 : i32
    %c0_i32_1 = arith.constant 0 : i32
    return %arg0, %c0_i32, %c0_i32_0 : i32, i32, i32
  }
  func.func @transform_4(%arg0: i32) -> (i32, i32) {
    %c0_i32 = arith.constant 0 : i32
    %c0_i32_0 = arith.constant 0 : i32
    %c0_i32_1 = arith.constant 0 : i32
    return %c0_i32, %c0_i32_0 : i32, i32
  }
  func.func @transform_5(%arg0: i32) -> (i32, i32) {
    %c0_i32 = arith.constant 0 : i32
    %c0_i32_0 = arith.constant 0 : i32
    %c0_i32_1 = arith.constant 0 : i32
    return %c0_i32, %c0_i32_0 : i32, i32
  }
  func.func @transform_6(%arg0: i32) -> (i32, i32) {
    %c0_i32 = arith.constant 0 : i32
    %c0_i32_0 = arith.constant 0 : i32
    %c0_i32_1 = arith.constant 0 : i32
    return %c0_i32, %c0_i32_0 : i32, i32
  }
  func.func @transform_7(%arg0: i32) -> (i32, i32, i32) {
    %c0_i32 = arith.constant 0 : i32
    %c0_i32_0 = arith.constant 0 : i32
    %c0_i32_1 = arith.constant 0 : i32
    return %arg0, %c0_i32, %c0_i32_0 : i32, i32, i32
  }
  func.func @transform_8(%arg0: i32) -> (i32, i32, i32) {
    %c0_i32 = arith.constant 0 : i32
    %c0_i32_0 = arith.constant 0 : i32
    %c0_i32_1 = arith.constant 0 : i32
    return %arg0, %c0_i32, %c0_i32_0 : i32, i32, i32
  }
}

</mosaic_0001>

<llo_original>
// kernel: ssd_head_forward.1
$region0: #{ssd_head_forward.1}
  #allocation0 [shape = 'u32[]', space=smem, size = 0x4, offset = 0x4, fixed_abs, tag = 'smem constant byte address 0x4 - core index']
  #allocation1 [shape = 'u32[72,128]{1,0:T(1,128)}', space=vmem, size = 0x9000, scoped, tag = 'internal scratch']
  #allocation2 [shape = 'f32[64,288]{1,0:T(8,128)}', space=vmem, size = 0x18000, scoped, tag = 'scratch operand']
  %s0 = inlined_call_operand.vmem [shape: f32[2,100,32], index: 0, kind: input, shape index: {}]
  %s1 = inlined_call_operand.vmem [shape: bf16[288,128], index: 1, kind: input, shape index: {}]
  %s2 = inlined_call_operand.vmem [shape: f32[1,128], index: 2, kind: input, shape index: {}]
  %s3 = inlined_call_operand.vmem [shape: f32[2,36,32], index: 3, kind: input, shape index: {}]
  %s4 = inlined_call_operand.vmem [shape: bf16[288,128], index: 4, kind: input, shape index: {}]
  %s5 = inlined_call_operand.vmem [shape: f32[1,128], index: 5, kind: input, shape index: {}]
  %s6 = inlined_call_operand.vmem [shape: f32[352,4], index: 6, kind: input, shape index: {}]
  %s7 = inlined_call_operand.vmem [shape: f32[2,352,6], index: 7, kind: output, shape index: {0}]
  %s8 = inlined_call_operand.vmem [shape: f32[2,352,4], index: 8, kind: output, shape index: {1}]
  %9 = xla_tuple %s7, %s8
  %s10 = sld [smem:[#allocation0]]
  $region69: #{ssd_head_forward.1} parent=0
    _
  %s12 = ssub.s32 1, %s10
  %s13 = scalar_select 0, %s12, %s10
  loop: start=0, step=1, limit=4
  $region2: #{ssd_head_forward.1} parent=0 // loop_pre_header
    _
  $region3: #{ssd_head_forward.1} parent=0 // loop_header
    %s15 = sphi 0, %s19
    %p16 = scmp.ge.s32.totalorder %s15, 4
    %s25 = sphi 0, %s27
    %s28 = sphi 0, %s25
    %s29 = sphi 0, %s28
    %s45 = sphi 0, %s29
    %s49 = sphi 0, %s49
    %s51 = sphi 0, %s49
    %s52 = sphi 0, %s51
    %s66 = sphi 0, %s52
    %s70 = sphi 0, %s70
    %s72 = sphi 0, %s70
    %s73 = sphi 0, %s72
    %s87 = sphi 0, %s73
    %s93 = sphi 0, %s95
    %s96 = sphi 0, %s93
    %s97 = sphi 0, %s96
    %s113 = sphi 0, %s97
    %s117 = sphi 0, %s117
    %s119 = sphi 0, %s117
    %s120 = sphi 0, %s119
    %s134 = sphi 0, %s120
    %s138 = sphi 0, %s138
    %s140 = sphi 0, %s138
    %s141 = sphi 0, %s140
    %s155 = sphi 0, %s141
    %s159 = sphi 0, %s159
    %s161 = sphi 0, %s159
    %s162 = sphi 0, %s161
    %s176 = sphi 0, %s162
    %s182 = sphi 0, %s184
    %s185 = sphi 0, %s182
    %s186 = sphi 0, %s185
    %s202 = sphi 0, %s186
    %s208 = sphi 0, %s210
    %s211 = sphi 0, %s208
    %s212 = sphi 0, %s211
    %s228 = sphi 0, %s212
  $region4: #{ssd_head_forward.1} parent=0 // loop_header_branch
    %18 = sbr.rel (%p16) target = $region8
  $region5: #{ssd_head_forward.1} parent=0 // loop_body
    %s20 = ssub.s32 %s15, 1
    %s21 = ssub.s32 %s15, 2
    %s22 = sadd.s32 %s15, 1
    %s23 = ssub.s32 %s15, %s22
    %p24 = scmp.eq.s32.totalorder %s23, 0
    %s26 = sadd.s32 %s25, 1
    %s27 = scalar_select %p24, %s25, %s26
    %p30 = pneg %p24
    %p31 = scmp.eq.s32.totalorder %s15, 1
    %p32 = por %p30, %p31
    %p33 = scmp.ne.s32.totalorder %s25, %s28
    %p34 = scmp.eq.s32.totalorder %s15, 0
    %p35 = por %p33, %p34
    %p36 = scmp.ne.s32.totalorder %s25, %s28
    %p37 = scmp.eq.s32.totalorder %s20, 1
    %p38 = por %p36, %p37
    %p39 = scmp.ne.s32.totalorder %s28, %s29
    %p40 = scmp.eq.s32.totalorder %s20, 0
    %p41 = por %p39, %p40
    %p42 = scmp.ne.s32.totalorder %s28, %s29
    %p43 = scmp.eq.s32.totalorder %s21, 1
    %p44 = por %p42, %p43
    %p46 = scmp.ne.s32.totalorder %s29, %s45
    %p47 = scmp.eq.s32.totalorder %s21, 0
    %p48 = por %p46, %p47
    %s50 = sadd.s32 %s49, 1
    %p53 = scmp.eq.s32.totalorder %s15, 1
    %p54 = scmp.ne.s32.totalorder %s49, %s51
    %p55 = scmp.eq.s32.totalorder %s15, 0
    %p56 = por %p54, %p55
    %p57 = scmp.ne.s32.totalorder %s49, %s51
    %p58 = scmp.eq.s32.totalorder %s20, 1
    %p59 = por %p57, %p58
    %p60 = scmp.ne.s32.totalorder %s51, %s52
    %p61 = scmp.eq.s32.totalorder %s20, 0
    %p62 = por %p60, %p61
    %p63 = scmp.ne.s32.totalorder %s51, %s52
    %p64 = scmp.eq.s32.totalorder %s21, 1
    %p65 = por %p63, %p64
    %p67 = scmp.ne.s32.totalorder %s52, %s66
    %p68 = scmp.eq.s32.totalorder %s21, 0
    %p69 = por %p67, %p68
    %s71 = sadd.s32 %s70, 1
    %p74 = scmp.eq.s32.totalorder %s15, 1
    %p75 = scmp.ne.s32.totalorder %s70, %s72
    %p76 = scmp.eq.s32.totalorder %s15, 0
    %p77 = por %p75, %p76
    %p78 = scmp.ne.s32.totalorder %s70, %s72
    %p79 = scmp.eq.s32.totalorder %s20, 1
    %p80 = por %p78, %p79
    %p81 = scmp.ne.s32.totalorder %s72, %s73
    %p82 = scmp.eq.s32.totalorder %s20, 0
    %p83 = por %p81, %p82
    %p84 = scmp.ne.s32.totalorder %s72, %s73
    %p85 = scmp.eq.s32.totalorder %s21, 1
    %p86 = por %p84, %p85
    %p88 = scmp.ne.s32.totalorder %s73, %s87
    %p89 = scmp.eq.s32.totalorder %s21, 0
    %p90 = por %p88, %p89
    %s91 = ssub.s32 %s15, %s22
    %p92 = scmp.eq.s32.totalorder %s91, 0
    %s94 = sadd.s32 %s93, 1
    %s95 = scalar_select %p92, %s93, %s94
    %p98 = pneg %p92
    %p99 = scmp.eq.s32.totalorder %s15, 1
    %p100 = por %p98, %p99
    %p101 = scmp.ne.s32.totalorder %s93, %s96
    %p102 = scmp.eq.s32.totalorder %s15, 0
    %p103 = por %p101, %p102
    %p104 = scmp.ne.s32.totalorder %s93, %s96
    %p105 = scmp.eq.s32.totalorder %s20, 1
    %p106 = por %p104, %p105
    %p107 = scmp.ne.s32.totalorder %s96, %s97
    %p108 = scmp.eq.s32.totalorder %s20, 0
    %p109 = por %p107, %p108
    %p110 = scmp.ne.s32.totalorder %s96, %s97
    %p111 = scmp.eq.s32.totalorder %s21, 1
    %p112 = por %p110, %p111
    %p114 = scmp.ne.s32.totalorder %s97, %s113
    %p115 = scmp.eq.s32.totalorder %s21, 0
    %p116 = por %p114, %p115
    %s118 = sadd.s32 %s117, 1
    %p121 = scmp.eq.s32.totalorder %s15, 1
    %p122 = scmp.ne.s32.totalorder %s117, %s119
    %p123 = scmp.eq.s32.totalorder %s15, 0
    %p124 = por %p122, %p123
    %p125 = scmp.ne.s32.totalorder %s117, %s119
    %p126 = scmp.eq.s32.totalorder %s20, 1
    %p127 = por %p125, %p126
    %p128 = scmp.ne.s32.totalorder %s119, %s120
    %p129 = scmp.eq.s32.totalorder %s20, 0
    %p130 = por %p128, %p129
    %p131 = scmp.ne.s32.totalorder %s119, %s120
    %p132 = scmp.eq.s32.totalorder %s21, 1
    %p133 = por %p131, %p132
    %p135 = scmp.ne.s32.totalorder %s120, %s134
    %p136 = scmp.eq.s32.totalorder %s21, 0
    %p137 = por %p135, %p136
    %s139 = sadd.s32 %s138, 1
    %p142 = scmp.eq.s32.totalorder %s15, 1
    %p143 = scmp.ne.s32.totalorder %s138, %s140
    %p144 = scmp.eq.s32.totalorder %s15, 0
    %p145 = por %p143, %p144
    %p146 = scmp.ne.s32.totalorder %s138, %s140
    %p147 = scmp.eq.s32.totalorder %s20, 1
    %p148 = por %p146, %p147
    %p149 = scmp.ne.s32.totalorder %s140, %s141
    %p150 = scmp.eq.s32.totalorder %s20, 0
    %p151 = por %p149, %p150
    %p152 = scmp.ne.s32.totalorder %s140, %s141
    %p153 = scmp.eq.s32.totalorder %s21, 1
    %p154 = por %p152, %p153
    %p156 = scmp.ne.s32.totalorder %s141, %s155
    %p157 = scmp.eq.s32.totalorder %s21, 0
    %p158 = por %p156, %p157
    %s160 = sadd.s32 %s159, 1
    %p163 = scmp.eq.s32.totalorder %s15, 1
    %p164 = scmp.ne.s32.totalorder %s159, %s161
    %p165 = scmp.eq.s32.totalorder %s15, 0
    %p166 = por %p164, %p165
    %p167 = scmp.ne.s32.totalorder %s159, %s161
    %p168 = scmp.eq.s32.totalorder %s20, 1
    %p169 = por %p167, %p168
    %p170 = scmp.ne.s32.totalorder %s161, %s162
    %p171 = scmp.eq.s32.totalorder %s20, 0
    %p172 = por %p170, %p171
    %p173 = scmp.ne.s32.totalorder %s161, %s162
    %p174 = scmp.eq.s32.totalorder %s21, 1
    %p175 = por %p173, %p174
    %p177 = scmp.ne.s32.totalorder %s162, %s176
    %p178 = scmp.eq.s32.totalorder %s21, 0
    %p179 = por %p177, %p178
    %s180 = ssub.s32 %s15, %s22
    %p181 = scmp.eq.s32.totalorder %s180, 0
    %s183 = sadd.s32 %s182, 1
    %s184 = scalar_select %p181, %s182, %s183
    %p187 = pneg %p181
    %p188 = scmp.eq.s32.totalorder %s15, 1
    %p189 = por %p187, %p188
    %p190 = scmp.ne.s32.totalorder %s182, %s185
    %p191 = scmp.eq.s32.totalorder %s15, 0
    %p192 = por %p190, %p191
    %p193 = scmp.ne.s32.totalorder %s182, %s185
    %p194 = scmp.eq.s32.totalorder %s20, 1
    %p195 = por %p193, %p194
    %p196 = scmp.ne.s32.totalorder %s185, %s186
    %p197 = scmp.eq.s32.totalorder %s20, 0
    %p198 = por %p196, %p197
    %p199 = scmp.ne.s32.totalorder %s185, %s186
    %p200 = scmp.eq.s32.totalorder %s21, 1
    %p201 = por %p199, %p200
    %p203 = scmp.ne.s32.totalorder %s186, %s202
    %p204 = scmp.eq.s32.totalorder %s21, 0
    %p205 = por %p203, %p204
    %s206 = ssub.s32 %s15, %s22
    %p207 = scmp.eq.s32.totalorder %s206, 0
    %s209 = sadd.s32 %s208, 1
    %s210 = scalar_select %p207, %s208, %s209
    %p213 = pneg %p207
    %p214 = scmp.eq.s32.totalorder %s15, 1
    %p215 = por %p213, %p214
    %p216 = scmp.ne.s32.totalorder %s208, %s211
    %p217 = scmp.eq.s32.totalorder %s15, 0
    %p218 = por %p216, %p217
    %p219 = scmp.ne.s32.totalorder %s208, %s211
    %p220 = scmp.eq.s32.totalorder %s20, 1
    %p221 = por %p219, %p220
    %p222 = scmp.ne.s32.totalorder %s211, %s212
    %p223 = scmp.eq.s32.totalorder %s20, 0
    %p224 = por %p222, %p223
    %p225 = scmp.ne.s32.totalorder %s211, %s212
    %p226 = scmp.eq.s32.totalorder %s21, 1
    %p227 = por %p225, %p226
    %p229 = scmp.ne.s32.totalorder %s212, %s228
    %p230 = scmp.eq.s32.totalorder %s21, 0
    %p231 = por %p229, %p230
    %p232 = scmp.le.s32.totalorder 1, %s15
    %p233 = scmp.lt.s32.totalorder %s15, 3
    %p234 = pnand %p232, %p233
    %p235 = pneg %p234
    // Predicated region
    $region9: #{ssd_head_forward.1} parent=5 // pred_check
      _
    $region10: #{ssd_head_forward.1} parent=5 // pred_check_branch
      %237 = sbr.rel (%p234) target = $region12
    $region11: #{ssd_head_forward.1} parent=5 // pred_region
      %s238 = ssub.s32 %s15, 1
      // Predicated region
      $region13: #{ssd_head_forward.1} parent=11 // pred_check
        %p239 = pneg %p62
      $region14: #{ssd_head_forward.1} parent=11 // pred_check_branch
        %241 = sbr.rel (%p239) target = $region16
      $region15: #{ssd_head_forward.1} parent=11 // pred_region
        _
      $region16: #{ssd_head_forward.1} parent=11 // pred_fallthru
        _
      // Predicated region
      $region17: #{ssd_head_forward.1} parent=11 // pred_check
        %p242 = pneg %p83
      $region18: #{ssd_head_forward.1} parent=11 // pred_check_branch
        %244 = sbr.rel (%p242) target = $region20
      $region19: #{ssd_head_forward.1} parent=11 // pred_region
        _
      $region20: #{ssd_head_forward.1} parent=11 // pred_fallthru
        _
      // Predicated region
      $region21: #{ssd_head_forward.1} parent=11 // pred_check
        %p245 = pneg %p130
      $region22: #{ssd_head_forward.1} parent=11 // pred_check_branch
        %247 = sbr.rel (%p245) target = $region24
      $region23: #{ssd_head_forward.1} parent=11 // pred_region
        _
      $region24: #{ssd_head_forward.1} parent=11 // pred_fallthru
        _
      // Predicated region
      $region25: #{ssd_head_forward.1} parent=11 // pred_check
        %p248 = pneg %p151
      $region26: #{ssd_head_forward.1} parent=11 // pred_check_branch
        %250 = sbr.rel (%p248) target = $region28
      $region27: #{ssd_head_forward.1} parent=11 // pred_region
        _
      $region28: #{ssd_head_forward.1} parent=11 // pred_fallthru
        _
      // Predicated region
      $region29: #{ssd_head_forward.1} parent=11 // pred_check
        %p251 = pneg %p172
      $region30: #{ssd_head_forward.1} parent=11 // pred_check_branch
        %253 = sbr.rel (%p251) target = $region32
      $region31: #{ssd_head_forward.1} parent=11 // pred_region
        _
      $region32: #{ssd_head_forward.1} parent=11 // pred_fallthru
        _
    $region12: #{ssd_head_forward.1} parent=5 // pred_fallthru
      _
    %p254 = scmp.lt.s32.totalorder %s15, 2
    // Predicated region
    $region33: #{ssd_head_forward.1} parent=5 // pred_check
      %p255 = pneg %p254
    $region34: #{ssd_head_forward.1} parent=5 // pred_check_branch
      %257 = sbr.rel (%p255) target = $region36
    $region35: #{ssd_head_forward.1} parent=5 // pred_region
      // Predicated region
      $region37: #{ssd_head_forward.1} parent=35 // pred_check
        %p258 = pneg %p35
      $region38: #{ssd_head_forward.1} parent=35 // pred_check_branch
        %260 = sbr.rel (%p258) target = $region40
      $region39: #{ssd_head_forward.1} parent=35 // pred_region
        %p261 = scmp.lt.s32.totalorder %s15, 1
        %s262 = scalar_select %p261, %s15, 1
        %s263 = smul.addr %s262, 13
        %s264 = smul.addr %s263, 8
        %s265 = scalar_lea.vmem %s0, %s264
      $region40: #{ssd_head_forward.1} parent=35 // pred_fallthru
        _
      // Predicated region
      $region41: #{ssd_head_forward.1} parent=35 // pred_check
        %p266 = pneg %p103
      $region42: #{ssd_head_forward.1} parent=35 // pred_check_branch
        %268 = sbr.rel (%p266) target = $region44
      $region43: #{ssd_head_forward.1} parent=35 // pred_region
        %p269 = scmp.lt.s32.totalorder %s15, 1
        %s270 = scalar_select %p269, %s15, 1
        %s271 = smul.addr %s270, 5
        %s272 = smul.addr %s271, 8
        %s273 = scalar_lea.vmem %s3, %s272
      $region44: #{ssd_head_forward.1} parent=35 // pred_fallthru
        _
    $region36: #{ssd_head_forward.1} parent=5 // pred_fallthru
      _
    %p274 = scmp.le.s32.totalorder 1, %s15
    %p275 = scmp.lt.s32.totalorder %s15, 3
    %p276 = pnand %p274, %p275
    %p277 = pneg %p276
    // Predicated region
    $region45: #{ssd_head_forward.1} parent=5 // pred_check
      _
    $region46: #{ssd_head_forward.1} parent=5 // pred_check_branch
      %279 = sbr.rel (%p276) target = $region48
    $region47: #{ssd_head_forward.1} parent=5 // pred_region
      %s280 = ssub.s32 %s15, 1
      %p281 = scmp.lt.s32.totalorder %s20, 1
      %s282 = scalar_select %p281, %s20, 1
      %s283 = smul.addr %s282, 13
      %s284 = smul.addr %s283, 8
      %s285 = scalar_lea.vmem %s0, %s284
      %p286 = pneg %p41
      %p287 = pneg %p38
      %p288 = pneg %p62
      %p289 = pneg %p59
      %p290 = pneg %p83
      %p291 = pneg %p80
      %p292 = scmp.lt.s32.totalorder %s20, 1
      %s293 = scalar_select %p292, %s20, 1
      %s294 = smul.addr %s293, 5
      %s295 = smul.addr %s294, 8
      %s296 = scalar_lea.vmem %s3, %s295
      %p297 = pneg %p109
      %p298 = pneg %p106
      %p299 = pneg %p130
      %p300 = pneg %p127
      %p301 = pneg %p151
      %p302 = pneg %p148
      %p303 = pneg %p172
      %p304 = pneg %p169
      %p305 = pneg %p198
      %p306 = pneg %p195
      %p307 = scmp.lt.s32.totalorder %s20, 1
      %s308 = scalar_select %p307, %s20, 1
      %s309 = smul.addr %s308, 44
      %s310 = smul.addr %s309, 8
      %s311 = scalar_lea.vmem %s7, %s310
      %p312 = pneg %p224
      %p313 = pneg %p221
      %p314 = scmp.lt.s32.totalorder %s20, 1
      %s315 = scalar_select %p314, %s20, 1
      %s316 = smul.addr %s315, 44
      %s317 = smul.addr %s316, 8
      %s318 = scalar_lea.vmem %s8, %s317
      %p319 = scmp.lt.s32.totalorder %s20, 1
      %s320 = scalar_select %p319, %s20, 1
      %s321 = smul.addr %s320, 13
      %s322 = smul.addr %s321, 8
      %s323 = scalar_lea.vmem %s0, %s322
      %p324 = scmp.lt.s32.totalorder %s20, 1
      %s325 = scalar_select %p324, %s20, 1
      %s326 = smul.addr %s325, 5
      %s327 = smul.addr %s326, 8
      %s328 = scalar_lea.vmem %s3, %s327
      %p329 = scmp.lt.s32.totalorder %s20, 1
      %s330 = scalar_select %p329, %s20, 1
      %s331 = smul.addr %s330, 44
      %s332 = smul.addr %s331, 8
      %s333 = scalar_lea.vmem %s7, %s332
      %p334 = scmp.lt.s32.totalorder %s20, 1
      %s335 = scalar_select %p334, %s20, 1
      %s336 = smul.addr %s335, 44
      %s337 = smul.addr %s336, 8
      %s338 = scalar_lea.vmem %s8, %s337
      %v340 = vld [vmem:[%s323] sm:$0xff]
      %v341 = vld [vmem:[%s323 + $0x8] sm:$0x3]
      %vm342 = vcmask 261120
      %343 = vst.msk [vmem:[#allocation2] sm:$0xff] %vm342, %v340
      %vm346 = vcmask 1046528
      %v347 = vrot.slane %v340, 1
      %v348 = vrot.slane %v341, 1
      %v349 = vsel %vm346, %v347, %v348
      %350 = vrot.lane.b32.xlu0 %v349, 32
      %v351 = vpop.permute.xlu0 %350
      %vm353 = vcmask 523520
      %354 = vst.msk [vmem:[#allocation2] sm:$0xff] %vm353, %v351
      %vm355 = vcmask 1045504
      %v356 = vrot.slane %v340, 2
      %v357 = vrot.slane %v341, 2
      %v358 = vsel %vm355, %v356, %v357
      %359 = vrot.lane.b32.xlu0 %v358, 64
      %v360 = vpop.permute.xlu0 %359
      %vm362 = vcmask 785920
      %363 = vst.msk [vmem:[#allocation2] sm:$0xff] %vm362, %v360
      %v364 = vld [vmem:[%s323 + $0xa] sm:$0xff]
      %v365 = vld [vmem:[%s323 + $0x12] sm:$0x3]
      %366 = vst.msk [vmem:[#allocation2 + $0x18] sm:$0xff] %vm342, %v364
      %v369 = vrot.slane %v364, 1
      %v370 = vrot.slane %v365, 1
      %v371 = vsel %vm346, %v369, %v370
      %372 = vrot.lane.b32.xlu0 %v371, 32
      %v373 = vpop.permute.xlu0 %372
      %375 = vst.msk [vmem:[#allocation2 + $0x18] sm:$0xff] %vm353, %v373
      %v376 = vrot.slane %v364, 2
      %v377 = vrot.slane %v365, 2
      %v378 = vsel %vm355, %v376, %v377
      %379 = vrot.lane.b32.xlu0 %v378, 64
      %v380 = vpop.permute.xlu0 %379
      %382 = vst.msk [vmem:[#allocation2 + $0x18] sm:$0xff] %vm362, %v380
      %v383 = vld [vmem:[%s323 + $0x14] sm:$0xff]
      %v384 = vld [vmem:[%s323 + $0x1c] sm:$0x3]
      %385 = vst.msk [vmem:[#allocation2 + $0x30] sm:$0xff] %vm342, %v383
      %v388 = vrot.slane %v383, 1
      %v389 = vrot.slane %v384, 1
      %v390 = vsel %vm346, %v388, %v389
      %391 = vrot.lane.b32.xlu0 %v390, 32
      %v392 = vpop.permute.xlu0 %391
      %394 = vst.msk [vmem:[#allocation2 + $0x30] sm:$0xff] %vm353, %v392
      %v395 = vrot.slane %v383, 2
      %v396 = vrot.slane %v384, 2
      %v397 = vsel %vm355, %v395, %v396
      %398 = vrot.lane.b32.xlu0 %v397, 64
      %v399 = vpop.permute.xlu0 %398
      %401 = vst.msk [vmem:[#allocation2 + $0x30] sm:$0xff] %vm362, %v399
      %v402 = vld [vmem:[%s323 + $0x1e] sm:$0xff]
      %v403 = vld [vmem:[%s323 + $0x26] sm:$0x3]
      %404 = vst.msk [vmem:[#allocation2 + $0x48] sm:$0xff] %vm342, %v402
      %v407 = vrot.slane %v402, 1
      %v408 = vrot.slane %v403, 1
      %v409 = vsel %vm346, %v407, %v408
      %410 = vrot.lane.b32.xlu0 %v409, 32
      %v411 = vpop.permute.xlu0 %410
      %413 = vst.msk [vmem:[#allocation2 + $0x48] sm:$0xff] %vm353, %v411
      %v414 = vrot.slane %v402, 2
      %v415 = vrot.slane %v403, 2
      %v416 = vsel %vm355, %v414, %v415
      %417 = vrot.lane.b32.xlu0 %v416, 64
      %v418 = vpop.permute.xlu0 %417
      %420 = vst.msk [vmem:[#allocation2 + $0x48] sm:$0xff] %vm362, %v418
      %v421 = vld [vmem:[%s323 + $0x28] sm:$0xff]
      %v422 = vld [vmem:[%s323 + $0x30] sm:$0x3]
      %423 = vst.msk [vmem:[#allocation2 + $0x60] sm:$0xff] %vm342, %v421
      %v426 = vrot.slane %v421, 1
      %v427 = vrot.slane %v422, 1
      %v428 = vsel %vm346, %v426, %v427
      %429 = vrot.lane.b32.xlu0 %v428, 32
      %v430 = vpop.permute.xlu0 %429
      %432 = vst.msk [vmem:[#allocation2 + $0x60] sm:$0xff] %vm353, %v430
      %v433 = vrot.slane %v421, 2
      %v434 = vrot.slane %v422, 2
      %v435 = vsel %vm355, %v433, %v434
      %436 = vrot.lane.b32.xlu0 %v435, 64
      %v437 = vpop.permute.xlu0 %436
      %439 = vst.msk [vmem:[#allocation2 + $0x60] sm:$0xff] %vm362, %v437
      %v440 = vld [vmem:[%s323 + $0x32] sm:$0xff]
      %v441 = vld [vmem:[%s323 + $0x3a] sm:$0x3]
      %442 = vst.msk [vmem:[#allocation2 + $0x78] sm:$0xff] %vm342, %v440
      %v445 = vrot.slane %v440, 1
      %v446 = vrot.slane %v441, 1
      %v447 = vsel %vm346, %v445, %v446
      %448 = vrot.lane.b32.xlu0 %v447, 32
      %v449 = vpop.permute.xlu0 %448
      %451 = vst.msk [vmem:[#allocation2 + $0x78] sm:$0xff] %vm353, %v449
      %v452 = vrot.slane %v440, 2
      %v453 = vrot.slane %v441, 2
      %v454 = vsel %vm355, %v452, %v453
      %455 = vrot.lane.b32.xlu0 %v454, 64
      %v456 = vpop.permute.xlu0 %455
      %458 = vst.msk [vmem:[#allocation2 + $0x78] sm:$0xff] %vm362, %v456
      %v459 = vld [vmem:[%s323 + $0x3c] sm:$0xff]
      %v460 = vld [vmem:[%s323 + $0x44] sm:$0x3]
      %461 = vst.msk [vmem:[#allocation2 + $0x90] sm:$0xff] %vm342, %v459
      %v464 = vrot.slane %v459, 1
      %v465 = vrot.slane %v460, 1
      %v466 = vsel %vm346, %v464, %v465
      %467 = vrot.lane.b32.xlu0 %v466, 32
      %v468 = vpop.permute.xlu0 %467
      %470 = vst.msk [vmem:[#allocation2 + $0x90] sm:$0xff] %vm353, %v468
      %v471 = vrot.slane %v459, 2
      %v472 = vrot.slane %v460, 2
      %v473 = vsel %vm355, %v471, %v472
      %474 = vrot.lane.b32.xlu0 %v473, 64
      %v475 = vpop.permute.xlu0 %474
      %477 = vst.msk [vmem:[#allocation2 + $0x90] sm:$0xff] %vm362, %v475
      %v478 = vld [vmem:[%s323 + $0x46] sm:$0xff]
      %v479 = vld [vmem:[%s323 + $0x4e] sm:$0x3]
      %480 = vst.msk [vmem:[#allocation2 + $0xa8] sm:$0xff] %vm342, %v478
      %v483 = vrot.slane %v478, 1
      %v484 = vrot.slane %v479, 1
      %v485 = vsel %vm346, %v483, %v484
      %486 = vrot.lane.b32.xlu0 %v485, 32
      %v487 = vpop.permute.xlu0 %486
      %489 = vst.msk [vmem:[#allocation2 + $0xa8] sm:$0xff] %vm353, %v487
      %v490 = vrot.slane %v478, 2
      %v491 = vrot.slane %v479, 2
      %v492 = vsel %vm355, %v490, %v491
      %493 = vrot.lane.b32.xlu0 %v492, 64
      %v494 = vpop.permute.xlu0 %493
      %496 = vst.msk [vmem:[#allocation2 + $0xa8] sm:$0xff] %vm362, %v494
      %v497 = vld [vmem:[%s323 + $0xa] sm:$0xff]
      %v498 = vld [vmem:[%s323 + $0x12] sm:$0x3]
      %500 = vrot.lane.b32.xlu0 %v497, 96
      %v501 = vpop.permute.xlu0 %500
      %vm503 = vcmask 1048320
      %504 = vst.msk [vmem:[#allocation2] sm:$0xff] %vm503, %v501
      %v506 = vrot.slane %v497, 1
      %v507 = vrot.slane %v498, 1
      %v508 = vsel %vm346, %v506, %v507
      %510 = vst.msk [vmem:[#allocation2 + $0x8] sm:$0xff] %vm342, %v508
      %v511 = vrot.slane %v497, 2
      %v512 = vrot.slane %v498, 2
      %v513 = vsel %vm355, %v511, %v512
      %514 = vrot.lane.b32.xlu0 %v513, 32
      %v515 = vpop.permute.xlu0 %514
      %517 = vst.msk [vmem:[#allocation2 + $0x8] sm:$0xff] %vm353, %v515
      %v518 = vld [vmem:[%s323 + $0x14] sm:$0xff]
      %v519 = vld [vmem:[%s323 + $0x1c] sm:$0x3]
      %521 = vrot.lane.b32.xlu0 %v518, 96
      %v522 = vpop.permute.xlu0 %521
      %524 = vst.msk [vmem:[#allocation2 + $0x18] sm:$0xff] %vm503, %v522
      %v526 = vrot.slane %v518, 1
      %v527 = vrot.slane %v519, 1
      %v528 = vsel %vm346, %v526, %v527
      %530 = vst.msk [vmem:[#allocation2 + $0x20] sm:$0xff] %vm342, %v528
      %v531 = vrot.slane %v518, 2
      %v532 = vrot.slane %v519, 2
      %v533 = vsel %vm355, %v531, %v532
      %534 = vrot.lane.b32.xlu0 %v533, 32
      %v535 = vpop.permute.xlu0 %534
      %537 = vst.msk [vmem:[#allocation2 + $0x20] sm:$0xff] %vm353, %v535
      %v538 = vld [vmem:[%s323 + $0x1e] sm:$0xff]
      %v539 = vld [vmem:[%s323 + $0x26] sm:$0x3]
      %541 = vrot.lane.b32.xlu0 %v538, 96
      %v542 = vpop.permute.xlu0 %541
      %544 = vst.msk [vmem:[#allocation2 + $0x30] sm:$0xff] %vm503, %v542
      %v546 = vrot.slane %v538, 1
      %v547 = vrot.slane %v539, 1
      %v548 = vsel %vm346, %v546, %v547
      %550 = vst.msk [vmem:[#allocation2 + $0x38] sm:$0xff] %vm342, %v548
      %v551 = vrot.slane %v538, 2
      %v552 = vrot.slane %v539, 2
      %v553 = vsel %vm355, %v551, %v552
      %554 = vrot.lane.b32.xlu0 %v553, 32
      %v555 = vpop.permute.xlu0 %554
      %557 = vst.msk [vmem:[#allocation2 + $0x38] sm:$0xff] %vm353, %v555
      %v558 = vld [vmem:[%s323 + $0x28] sm:$0xff]
      %v559 = vld [vmem:[%s323 + $0x30] sm:$0x3]
      %561 = vrot.lane.b32.xlu0 %v558, 96
      %v562 = vpop.permute.xlu0 %561
      %564 = vst.msk [vmem:[#allocation2 + $0x48] sm:$0xff] %vm503, %v562
      %v566 = vrot.slane %v558, 1
      %v567 = vrot.slane %v559, 1
      %v568 = vsel %vm346, %v566, %v567
      %570 = vst.msk [vmem:[#allocation2 + $0x50] sm:$0xff] %vm342, %v568
      %v571 = vrot.slane %v558, 2
      %v572 = vrot.slane %v559, 2
      %v573 = vsel %vm355, %v571, %v572
      %574 = vrot.lane.b32.xlu0 %v573, 32
      %v575 = vpop.permute.xlu0 %574
      %577 = vst.msk [vmem:[#allocation2 + $0x50] sm:$0xff] %vm353, %v575
      %v578 = vld [vmem:[%s323 + $0x32] sm:$0xff]
      %v579 = vld [vmem:[%s323 + $0x3a] sm:$0x3]
      %581 = vrot.lane.b32.xlu0 %v578, 96
      %v582 = vpop.permute.xlu0 %581
      %584 = vst.msk [vmem:[#allocation2 + $0x60] sm:$0xff] %vm503, %v582
      %v586 = vrot.slane %v578, 1
      %v587 = vrot.slane %v579, 1
      %v588 = vsel %vm346, %v586, %v587
      %590 = vst.msk [vmem:[#allocation2 + $0x68] sm:$0xff] %vm342, %v588
      %v591 = vrot.slane %v578, 2
      %v592 = vrot.slane %v579, 2
      %v593 = vsel %vm355, %v591, %v592
      %594 = vrot.lane.b32.xlu0 %v593, 32
      %v595 = vpop.permute.xlu0 %594
      %597 = vst.msk [vmem:[#allocation2 + $0x68] sm:$0xff] %vm353, %v595
      %v598 = vld [vmem:[%s323 + $0x3c] sm:$0xff]
      %v599 = vld [vmem:[%s323 + $0x44] sm:$0x3]
      %601 = vrot.lane.b32.xlu0 %v598, 96
      %v602 = vpop.permute.xlu0 %601
      %604 = vst.msk [vmem:[#allocation2 + $0x78] sm:$0xff] %vm503, %v602
      %v606 = vrot.slane %v598, 1
      %v607 = vrot.slane %v599, 1
      %v608 = vsel %vm346, %v606, %v607
      %610 = vst.msk [vmem:[#allocation2 + $0x80] sm:$0xff] %vm342, %v608
      %v611 = vrot.slane %v598, 2
      %v612 = vrot.slane %v599, 2
      %v613 = vsel %vm355, %v611, %v612
      %614 = vrot.lane.b32.xlu0 %v613, 32
      %v615 = vpop.permute.xlu0 %614
      %617 = vst.msk [vmem:[#allocation2 + $0x80] sm:$0xff] %vm353, %v615
      %v618 = vld [vmem:[%s323 + $0x46] sm:$0xff]
      %v619 = vld [vmem:[%s323 + $0x4e] sm:$0x3]
      %621 = vrot.lane.b32.xlu0 %v618, 96
      %v622 = vpop.permute.xlu0 %621
      %624 = vst.msk [vmem:[#allocation2 + $0x90] sm:$0xff] %vm503, %v622
      %v626 = vrot.slane %v618, 1
      %v627 = vrot.slane %v619, 1
      %v628 = vsel %vm346, %v626, %v627
      %630 = vst.msk [vmem:[#allocation2 + $0x98] sm:$0xff] %vm342, %v628
      %v631 = vrot.slane %v618, 2
      %v632 = vrot.slane %v619, 2
      %v633 = vsel %vm355, %v631, %v632
      %634 = vrot.lane.b32.xlu0 %v633, 32
      %v635 = vpop.permute.xlu0 %634
      %637 = vst.msk [vmem:[#allocation2 + $0x98] sm:$0xff] %vm353, %v635
      %v638 = vld [vmem:[%s323 + $0x50] sm:$0xff]
      %v639 = vld [vmem:[%s323 + $0x58] sm:$0x3]
      %641 = vrot.lane.b32.xlu0 %v638, 96
      %v642 = vpop.permute.xlu0 %641
      %644 = vst.msk [vmem:[#allocation2 + $0xa8] sm:$0xff] %vm503, %v642
      %v646 = vrot.slane %v638, 1
      %v647 = vrot.slane %v639, 1
      %v648 = vsel %vm346, %v646, %v647
      %650 = vst.msk [vmem:[#allocation2 + $0xb0] sm:$0xff] %vm342, %v648
      %v651 = vrot.slane %v638, 2
      %v652 = vrot.slane %v639, 2
      %v653 = vsel %vm355, %v651, %v652
      %654 = vrot.lane.b32.xlu0 %v653, 32
      %v655 = vpop.permute.xlu0 %654
      %657 = vst.msk [vmem:[#allocation2 + $0xb0] sm:$0xff] %vm353, %v655
      %v658 = vld [vmem:[%s323 + $0x14] sm:$0xff]
      %v659 = vld [vmem:[%s323 + $0x1c] sm:$0x3]
      %661 = vrot.lane.b32.xlu0 %v658, 64
      %v662 = vpop.permute.xlu0 %661
      %664 = vst.msk [vmem:[#allocation2 + $0x8] sm:$0xff] %vm362, %v662
      %v666 = vrot.slane %v658, 1
      %v667 = vrot.slane %v659, 1
      %v668 = vsel %vm346, %v666, %v667
      %669 = vrot.lane.b32.xlu0 %v668, 96
      %v670 = vpop.permute.xlu0 %669
      %672 = vst.msk [vmem:[#allocation2 + $0x8] sm:$0xff] %vm503, %v670
      %v673 = vrot.slane %v658, 2
      %v674 = vrot.slane %v659, 2
      %v675 = vsel %vm355, %v673, %v674
      %677 = vst.msk [vmem:[#allocation2 + $0x10] sm:$0xff] %vm342, %v675
      %v678 = vld [vmem:[%s323 + $0x1e] sm:$0xff]
      %v679 = vld [vmem:[%s323 + $0x26] sm:$0x3]
      %681 = vrot.lane.b32.xlu0 %v678, 64
      %v682 = vpop.permute.xlu0 %681
      %684 = vst.msk [vmem:[#allocation2 + $0x20] sm:$0xff] %vm362, %v682
      %v686 = vrot.slane %v678, 1
      %v687 = vrot.slane %v679, 1
      %v688 = vsel %vm346, %v686, %v687
      %689 = vrot.lane.b32.xlu0 %v688, 96
      %v690 = vpop.permute.xlu0 %689
      %692 = vst.msk [vmem:[#allocation2 + $0x20] sm:$0xff] %vm503, %v690
      %v693 = vrot.slane %v678, 2
      %v694 = vrot.slane %v679, 2
      %v695 = vsel %vm355, %v693, %v694
      %697 = vst.msk [vmem:[#allocation2 + $0x28] sm:$0xff] %vm342, %v695
      %v698 = vld [vmem:[%s323 + $0x28] sm:$0xff]
      %v699 = vld [vmem:[%s323 + $0x30] sm:$0x3]
      %701 = vrot.lane.b32.xlu0 %v698, 64
      %v702 = vpop.permute.xlu0 %701
      %704 = vst.msk [vmem:[#allocation2 + $0x38] sm:$0xff] %vm362, %v702
      %v706 = vrot.slane %v698, 1
      %v707 = vrot.slane %v699, 1
      %v708 = vsel %vm346, %v706, %v707
      %709 = vrot.lane.b32.xlu0 %v708, 96
      %v710 = vpop.permute.xlu0 %709
      %712 = vst.msk [vmem:[#allocation2 + $0x38] sm:$0xff] %vm503, %v710
      %v713 = vrot.slane %v698, 2
      %v714 = vrot.slane %v699, 2
      %v715 = vsel %vm355, %v713, %v714
      %717 = vst.msk [vmem:[#allocation2 + $0x40] sm:$0xff] %vm342, %v715
      %v718 = vld [vmem:[%s323 + $0x32] sm:$0xff]
      %v719 = vld [vmem:[%s323 + $0x3a] sm:$0x3]
      %721 = vrot.lane.b32.xlu0 %v718, 64
      %v722 = vpop.permute.xlu0 %721
      %724 = vst.msk [vmem:[#allocation2 + $0x50] sm:$0xff] %vm362, %v722
      %v726 = vrot.slane %v718, 1
      %v727 = vrot.slane %v719, 1
      %v728 = vsel %vm346, %v726, %v727
      %729 = vrot.lane.b32.xlu0 %v728, 96
      %v730 = vpop.permute.xlu0 %729
      %732 = vst.msk [vmem:[#allocation2 + $0x50] sm:$0xff] %vm503, %v730
      %v733 = vrot.slane %v718, 2
      %v734 = vrot.slane %v719, 2
      %v735 = vsel %vm355, %v733, %v734
      %737 = vst.msk [vmem:[#allocation2 + $0x58] sm:$0xff] %vm342, %v735
      %v738 = vld [vmem:[%s323 + $0x3c] sm:$0xff]
      %v739 = vld [vmem:[%s323 + $0x44] sm:$0x3]
      %741 = vrot.lane.b32.xlu0 %v738, 64
      %v742 = vpop.permute.xlu0 %741
      %744 = vst.msk [vmem:[#allocation2 + $0x68] sm:$0xff] %vm362, %v742
      %v746 = vrot.slane %v738, 1
      %v747 = vrot.slane %v739, 1
      %v748 = vsel %vm346, %v746, %v747
      %749 = vrot.lane.b32.xlu0 %v748, 96
      %v750 = vpop.permute.xlu0 %749
      %752 = vst.msk [vmem:[#allocation2 + $0x68] sm:$0xff] %vm503, %v750
      %v753 = vrot.slane %v738, 2
      %v754 = vrot.slane %v739, 2
      %v755 = vsel %vm355, %v753, %v754
      %757 = vst.msk [vmem:[#allocation2 + $0x70] sm:$0xff] %vm342, %v755
      %v758 = vld [vmem:[%s323 + $0x46] sm:$0xff]
      %v759 = vld [vmem:[%s323 + $0x4e] sm:$0x3]
      %761 = vrot.lane.b32.xlu0 %v758, 64
      %v762 = vpop.permute.xlu0 %761
      %764 = vst.msk [vmem:[#allocation2 + $0x80] sm:$0xff] %vm362, %v762
      %v766 = vrot.slane %v758, 1
      %v767 = vrot.slane %v759, 1
      %v768 = vsel %vm346, %v766, %v767
      %769 = vrot.lane.b32.xlu0 %v768, 96
      %v770 = vpop.permute.xlu0 %769
      %772 = vst.msk [vmem:[#allocation2 + $0x80] sm:$0xff] %vm503, %v770
      %v773 = vrot.slane %v758, 2
      %v774 = vrot.slane %v759, 2
      %v775 = vsel %vm355, %v773, %v774
      %777 = vst.msk [vmem:[#allocation2 + $0x88] sm:$0xff] %vm342, %v775
      %v778 = vld [vmem:[%s323 + $0x50] sm:$0xff]
      %v779 = vld [vmem:[%s323 + $0x58] sm:$0x3]
      %781 = vrot.lane.b32.xlu0 %v778, 64
      %v782 = vpop.permute.xlu0 %781
      %784 = vst.msk [vmem:[#allocation2 + $0x98] sm:$0xff] %vm362, %v782
      %v786 = vrot.slane %v778, 1
      %v787 = vrot.slane %v779, 1
      %v788 = vsel %vm346, %v786, %v787
      %789 = vrot.lane.b32.xlu0 %v788, 96
      %v790 = vpop.permute.xlu0 %789
      %792 = vst.msk [vmem:[#allocation2 + $0x98] sm:$0xff] %vm503, %v790
      %v793 = vrot.slane %v778, 2
      %v794 = vrot.slane %v779, 2
      %v795 = vsel %vm355, %v793, %v794
      %797 = vst.msk [vmem:[#allocation2 + $0xa0] sm:$0xff] %vm342, %v795
      %v798 = vld [vmem:[%s323 + $0x5a] sm:$0xff]
      %v799 = vld [vmem:[%s323 + $0x62] sm:$0x3]
      %801 = vrot.lane.b32.xlu0 %v798, 64
      %v802 = vpop.permute.xlu0 %801
      %804 = vst.msk [vmem:[#allocation2 + $0xb0] sm:$0xff] %vm362, %v802
      %v806 = vrot.slane %v798, 1
      %v807 = vrot.slane %v799, 1
      %v808 = vsel %vm346, %v806, %v807
      %809 = vrot.lane.b32.xlu0 %v808, 96
      %v810 = vpop.permute.xlu0 %809
      %812 = vst.msk [vmem:[#allocation2 + $0xb0] sm:$0xff] %vm503, %v810
      %v813 = vrot.slane %v798, 2
      %v814 = vrot.slane %v799, 2
      %v815 = vsel %vm355, %v813, %v814
      %817 = vst.msk [vmem:[#allocation2 + $0xb8] sm:$0xff] %vm342, %v815
      %v818 = vld [vmem:[#allocation2] sm:$0xff]
      %v819 = vld [vmem:[#allocation2 + $0x8] sm:$0xff]
      %v820 = vld [vmem:[#allocation2 + $0x10] sm:$0xff]
      %v821 = vld [vmem:[#allocation2 + $0x18] sm:$0xff]
      %v822 = vld [vmem:[#allocation2 + $0x20] sm:$0xff]
      %v823 = vld [vmem:[#allocation2 + $0x28] sm:$0xff]
      %v824 = vld [vmem:[#allocation2 + $0x30] sm:$0xff]
      %v825 = vld [vmem:[#allocation2 + $0x38] sm:$0xff]
      %v826 = vld [vmem:[#allocation2 + $0x40] sm:$0xff]
      %v827 = vld [vmem:[#allocation2 + $0x48] sm:$0xff]
      %v828 = vld [vmem:[#allocation2 + $0x50] sm:$0xff]
      %v829 = vld [vmem:[#allocation2 + $0x58] sm:$0xff]
      %v830 = vld [vmem:[#allocation2 + $0x60] sm:$0xff]
      %v831 = vld [vmem:[#allocation2 + $0x68] sm:$0xff]
      %v832 = vld [vmem:[#allocation2 + $0x70] sm:$0xff]
      %v833 = vld [vmem:[#allocation2 + $0x78] sm:$0xff]
      %v834 = vld [vmem:[#allocation2 + $0x80] sm:$0xff]
      %v835 = vld [vmem:[#allocation2 + $0x88] sm:$0xff]
      %v836 = vld [vmem:[#allocation2 + $0x90] sm:$0xff]
      %v837 = vld [vmem:[#allocation2 + $0x98] sm:$0xff]
      %v838 = vld [vmem:[#allocation2 + $0xa0] sm:$0xff]
      %v839 = vld [vmem:[#allocation2 + $0xa8] sm:$0xff]
      %v840 = vld [vmem:[#allocation2 + $0xb0] sm:$0xff]
      %v841 = vld [vmem:[#allocation2 + $0xb8] sm:$0xff]
      %v842 = vpack.c.bf16 %v821, %v818
      %v843 = vpack.c.bf16 %v822, %v819
      %v844 = vpack.c.bf16 %v823, %v820
      %v845 = vpack.c.bf16 %v827, %v824
      %v846 = vpack.c.bf16 %v828, %v825
      %v847 = vpack.c.bf16 %v829, %v826
      %v848 = vpack.c.bf16 %v833, %v830
      %v849 = vpack.c.bf16 %v834, %v831
      %v850 = vpack.c.bf16 %v835, %v832
      %v851 = vpack.c.bf16 %v839, %v836
      %v852 = vpack.c.bf16 %v840, %v837
      %v853 = vpack.c.bf16 %v841, %v838
      %v854 = vld [vmem:[%s1] sm:$0xf]
      %v855 = vld [vmem:[%s1 + $0x4] sm:$0xf]
      %v856 = vld [vmem:[%s1 + $0x8] sm:$0xf]
      %v857 = vld [vmem:[%s1 + $0xc] sm:$0xf]
      %v858 = vld [vmem:[%s1 + $0x10] sm:$0xf]
      %v859 = vld [vmem:[%s1 + $0x14] sm:$0xf]
      %v860 = vld [vmem:[%s1 + $0x18] sm:$0xf]
      %v861 = vld [vmem:[%s1 + $0x1c] sm:$0xf]
      %v862 = vld [vmem:[%s1 + $0x20] sm:$0xf]
      %v863 = vld [vmem:[%s1 + $0x24] sm:$0xf]
      %v864 = vld [vmem:[%s1 + $0x28] sm:$0xf]
      %v865 = vld [vmem:[%s1 + $0x2c] sm:$0xf]
      %v866 = vld [vmem:[%s1 + $0x30] sm:$0xf]
      %v867 = vld [vmem:[%s1 + $0x34] sm:$0xf]
      %v868 = vld [vmem:[%s1 + $0x38] sm:$0xf]
      %v869 = vld [vmem:[%s1 + $0x3c] sm:$0xf]
      %v870 = vld [vmem:[%s1 + $0x40] sm:$0xf]
      %v871 = vld [vmem:[%s1 + $0x44] sm:$0xf]
      %v872 = vld [vmem:[%s1 + $0x48] sm:$0xf]
      %v873 = vld [vmem:[%s1 + $0x4c] sm:$0xf]
      %v874 = vld [vmem:[%s1 + $0x50] sm:$0xf]
      %v875 = vld [vmem:[%s1 + $0x54] sm:$0xf]
      %v876 = vld [vmem:[%s1 + $0x58] sm:$0xf]
      %v877 = vld [vmem:[%s1 + $0x5c] sm:$0xf]
      %v878 = vld [vmem:[%s1 + $0x60] sm:$0xf]
      %v879 = vld [vmem:[%s1 + $0x64] sm:$0xf]
      %v880 = vld [vmem:[%s1 + $0x68] sm:$0xf]
      %v881 = vld [vmem:[%s1 + $0x6c] sm:$0xf]
      %v882 = vld [vmem:[%s1 + $0x70] sm:$0xf]
      %v883 = vld [vmem:[%s1 + $0x74] sm:$0xf]
      %v884 = vld [vmem:[%s1 + $0x78] sm:$0xf]
      %v885 = vld [vmem:[%s1 + $0x7c] sm:$0xf]
      %v886 = vld [vmem:[%s1 + $0x80] sm:$0xf]
      %v887 = vld [vmem:[%s1 + $0x84] sm:$0xf]
      %v888 = vld [vmem:[%s1 + $0x88] sm:$0xf]
      %v889 = vld [vmem:[%s1 + $0x8c] sm:$0xf]
      %v890 = vld [vmem:[%s2] sm:$0x1]
      %v892 = vperm.slane %v890, 0
      %v930 = vunpack.c.l.b16 %v854
      %v931 = vunpack.c.l.b16 %v855
      %v932 = vunpack.c.l.b16 %v856
      %v933 = vunpack.c.l.b16 %v857
      %v934 = vunpack.c.l.b16 %v858
      %v935 = vunpack.c.l.b16 %v859
      %v936 = vunpack.c.l.b16 %v860
      %v937 = vunpack.c.l.b16 %v861
      %v938 = vunpack.c.l.b16 %v862
      %v939 = vunpack.c.l.b16 %v863
      %v940 = vunpack.c.l.b16 %v864
      %v941 = vunpack.c.l.b16 %v865
      %v942 = vunpack.c.l.b16 %v866
      %v943 = vunpack.c.l.b16 %v867
      %v944 = vunpack.c.l.b16 %v868
      %v945 = vunpack.c.l.b16 %v869
      %v946 = vunpack.c.l.b16 %v870
      %v947 = vunpack.c.l.b16 %v871
      %v948 = vunpack.c.l.b16 %v872
      %v949 = vunpack.c.l.b16 %v873
      %v950 = vunpack.c.l.b16 %v874
      %v951 = vunpack.c.l.b16 %v875
      %v952 = vunpack.c.l.b16 %v876
      %v953 = vunpack.c.l.b16 %v877
      %v954 = vunpack.c.l.b16 %v878
      %v955 = vunpack.c.l.b16 %v879
      %v956 = vunpack.c.l.b16 %v880
      %v957 = vunpack.c.l.b16 %v881
      %v958 = vunpack.c.l.b16 %v882
      %v959 = vunpack.c.l.b16 %v883
      %v960 = vunpack.c.l.b16 %v884
      %v961 = vunpack.c.l.b16 %v885
      %v962 = vunpack.c.l.b16 %v886
      %v963 = vunpack.c.l.b16 %v887
      %v964 = vunpack.c.l.b16 %v888
      %v965 = vunpack.c.l.b16 %v889
      %v966 = vpack.c.b16 %v931, %v930
      %v967 = vpack.c.b16 %v933, %v932
      %v968 = vpack.c.b16 %v935, %v934
      %v969 = vpack.c.b16 %v937, %v936
      %v970 = vpack.c.b16 %v939, %v938
      %v971 = vpack.c.b16 %v941, %v940
      %v972 = vpack.c.b16 %v943, %v942
      %v973 = vpack.c.b16 %v945, %v944
      %v974 = vpack.c.b16 %v947, %v946
      %v975 = vpack.c.b16 %v949, %v948
      %v976 = vpack.c.b16 %v951, %v950
      %v977 = vpack.c.b16 %v953, %v952
      %v978 = vpack.c.b16 %v955, %v954
      %v979 = vpack.c.b16 %v957, %v956
      %v980 = vpack.c.b16 %v959, %v958
      %v981 = vpack.c.b16 %v961, %v960
      %v982 = vpack.c.b16 %v963, %v962
      %v983 = vpack.c.b16 %v965, %v964
      %v1003 = vsel %vm342, %v844, 0
      %v1006 = vsel %vm342, %v847, 0
      %v1009 = vsel %vm342, %v850, 0
      %v1012 = vsel %vm342, %v853, 0
      %1014 = vmatpush.bf16.msra.mxu0 %v973
      %1015 = vmatpush.bf16.msra.mxu0 %v972
      %1016 = vmatpush.bf16.msra.mxu0 %v971
      %1017 = vmatpush.bf16.msra.mxu0 %v970
      %1018 = vmatpush.bf16.msra.mxu0 %v969
      %1019 = vmatpush.bf16.msra.mxu0 %v968
      %1020 = vmatpush.bf16.msra.mxu0 %v967
      %1021 = vmatpush.bf16.msra.mxu0 %v966
      %1022 = vmatmul.bf16.gmra.mxu0 %v842
      %v1023 = vpop.f32.mrf.mxu0
      %v1024 = vadd.f32 %v892, %v1023
      %v1025 = vpop.f32.mrf.mxu0
      %v1026 = vadd.f32 %v892, %v1025
      %1027 = vmatmul.bf16.gmra.mxu0 %v845
      %v1028 = vpop.f32.mrf.mxu0
      %v1029 = vadd.f32 %v892, %v1028
      %v1030 = vpop.f32.mrf.mxu0
      %v1031 = vadd.f32 %v892, %v1030
      %1032 = vmatmul.bf16.gmra.mxu0 %v848
      %v1033 = vpop.f32.mrf.mxu0
      %v1034 = vadd.f32 %v892, %v1033
      %v1035 = vpop.f32.mrf.mxu0
      %v1036 = vadd.f32 %v892, %v1035
      %1037 = vmatmul.bf16.gmra.mxu0 %v851
      %v1038 = vpop.f32.mrf.mxu0
      %v1039 = vadd.f32 %v892, %v1038
      %v1040 = vpop.f32.mrf.mxu0
      %v1041 = vadd.f32 %v892, %v1040
      %1042 = vdwg.mxu0
      %1043 = vmatpush.bf16.msra.mxu0 %v981
      %1044 = vmatpush.bf16.msra.mxu0 %v980
      %1045 = vmatpush.bf16.msra.mxu0 %v979
      %1046 = vmatpush.bf16.msra.mxu0 %v978
      %1047 = vmatpush.bf16.msra.mxu0 %v977
      %1048 = vmatpush.bf16.msra.mxu0 %v976
      %1049 = vmatpush.bf16.msra.mxu0 %v975
      %1050 = vmatpush.bf16.msra.mxu0 %v974
      %1051 = vmatmul.bf16.gmra.mxu0 %v843
      %v1052 = vpop.f32.mrf.mxu0
      %v1053 = vadd.f32 %v1024, %v1052
      %v1054 = vpop.f32.mrf.mxu0
      %v1055 = vadd.f32 %v1026, %v1054
      %1056 = vmatmul.bf16.gmra.mxu0 %v846
      %v1057 = vpop.f32.mrf.mxu0
      %v1058 = vadd.f32 %v1029, %v1057
      %v1059 = vpop.f32.mrf.mxu0
      %v1060 = vadd.f32 %v1031, %v1059
      %1061 = vmatmul.bf16.gmra.mxu0 %v849
      %v1062 = vpop.f32.mrf.mxu0
      %v1063 = vadd.f32 %v1034, %v1062
      %v1064 = vpop.f32.mrf.mxu0
      %v1065 = vadd.f32 %v1036, %v1064
      %1066 = vmatmul.bf16.gmra.mxu0 %v852
      %v1067 = vpop.f32.mrf.mxu0
      %v1068 = vadd.f32 %v1039, %v1067
      %v1069 = vpop.f32.mrf.mxu0
      %v1070 = vadd.f32 %v1041, %v1069
      %1071 = vdwg.mxu0
      %1072 = vmatpush.bf16.msra.mxu0 0
      %1073 = vmatpush.bf16.msra.mxu0 0
      %1074 = vmatpush.bf16.msra.mxu0 0
      %1075 = vmatpush.bf16.msra.mxu0 0
      %1076 = vmatpush.bf16.msra.mxu0 0
      %1077 = vmatpush.bf16.msra.mxu0 0
      %1078 = vmatpush.bf16.msra.mxu0 %v983
      %1079 = vmatpush.bf16.msra.mxu0 %v982
      %1080 = vmatmul.bf16.gmra.mxu0 %v1003
      %v1081 = vpop.f32.mrf.mxu0
      %v1082 = vadd.f32 %v1053, %v1081
      %v1083 = vpop.f32.mrf.mxu0
      %v1084 = vadd.f32 %v1055, %v1083
      %1085 = vmatmul.bf16.gmra.mxu0 %v1006
      %v1086 = vpop.f32.mrf.mxu0
      %v1087 = vadd.f32 %v1058, %v1086
      %v1088 = vpop.f32.mrf.mxu0
      %v1089 = vadd.f32 %v1060, %v1088
      %1090 = vmatmul.bf16.gmra.mxu0 %v1009
      %v1091 = vpop.f32.mrf.mxu0
      %v1092 = vadd.f32 %v1063, %v1091
      %v1093 = vpop.f32.mrf.mxu0
      %v1094 = vadd.f32 %v1065, %v1093
      %1095 = vmatmul.bf16.gmra.mxu0 %v1012
      %v1096 = vpop.f32.mrf.mxu0
      %v1097 = vadd.f32 %v1068, %v1096
      %v1098 = vpop.f32.mrf.mxu0
      %v1099 = vadd.f32 %v1070, %v1098
      %1100 = vdwg.mxu0
      %vm1101 = vcmask 48128
      %v1102 = vsel %vm1101, %v1082, -inf
      %1103 = vmax.xlane.f32.xlu0 %v1102
      %v1104 = vpop.xlane.xlu0 %1103
      %v1105 = vsel %vm1101, %v1084, -inf
      %1106 = vmax.xlane.f32.xlu0 %v1105
      %v1107 = vpop.xlane.xlu0 %1106
      %v1108 = vsel %vm1101, %v1087, -inf
      %1109 = vmax.xlane.f32.xlu0 %v1108
      %v1110 = vpop.xlane.xlu0 %1109
      %v1111 = vsel %vm1101, %v1089, -inf
      %1112 = vmax.xlane.f32.xlu0 %v1111
      %v1113 = vpop.xlane.xlu0 %1112
      %v1114 = vsel %vm1101, %v1092, -inf
      %1115 = vmax.xlane.f32.xlu0 %v1114
      %v1116 = vpop.xlane.xlu0 %1115
      %v1117 = vsel %vm1101, %v1094, -inf
      %1118 = vmax.xlane.f32.xlu0 %v1117
      %v1119 = vpop.xlane.xlu0 %1118
      %v1120 = vsel %vm1101, %v1097, -inf
      %1121 = vmax.xlane.f32.xlu0 %v1120
      %v1122 = vpop.xlane.xlu0 %1121
      %v1123 = vsel %vm1101, %v1099, -inf
      %1124 = vmax.xlane.f32.xlu0 %v1123
      %v1125 = vpop.xlane.xlu0 %1124
      %v1126 = vsub.f32 %v1082, %v1104
      %v1127 = vsub.f32 %v1084, %v1107
      %v1128 = vsub.f32 %v1087, %v1110
      %v1129 = vsub.f32 %v1089, %v1113
      %v1130 = vsub.f32 %v1092, %v1116
      %v1131 = vsub.f32 %v1094, %v1119
      %v1132 = vsub.f32 %v1097, %v1122
      %v1133 = vsub.f32 %v1099, %v1125
      %v1134 = vmul.f32 %v1126, 1.442695
      %v1135 = vpow.pop %v1134
      %v1136 = vmul.f32 %v1127, 1.442695
      %v1137 = vpow.pop %v1136
      %v1138 = vmul.f32 %v1128, 1.442695
      %v1139 = vpow.pop %v1138
      %v1140 = vmul.f32 %v1129, 1.442695
      %v1141 = vpow.pop %v1140
      %v1142 = vmul.f32 %v1130, 1.442695
      %v1143 = vpow.pop %v1142
      %v1144 = vmul.f32 %v1131, 1.442695
      %v1145 = vpow.pop %v1144
      %v1146 = vmul.f32 %v1132, 1.442695
      %v1147 = vpow.pop %v1146
      %v1148 = vmul.f32 %v1133, 1.442695
      %v1149 = vpow.pop %v1148
      %v1150 = vsel %vm1101, %v1135, 0.0
      %1151 = vadd.xlane.f32.xlu0 %v1150
      %v1152 = vpop.xlane.xlu0 %1151
      %v1153 = vsel %vm1101, %v1137, 0.0
      %1154 = vadd.xlane.f32.xlu0 %v1153
      %v1155 = vpop.xlane.xlu0 %1154
      %v1156 = vsel %vm1101, %v1139, 0.0
      %1157 = vadd.xlane.f32.xlu0 %v1156
      %v1158 = vpop.xlane.xlu0 %1157
      %v1159 = vsel %vm1101, %v1141, 0.0
      %1160 = vadd.xlane.f32.xlu0 %v1159
      %v1161 = vpop.xlane.xlu0 %1160
      %v1162 = vsel %vm1101, %v1143, 0.0
      %1163 = vadd.xlane.f32.xlu0 %v1162
      %v1164 = vpop.xlane.xlu0 %1163
      %v1165 = vsel %vm1101, %v1145, 0.0
      %1166 = vadd.xlane.f32.xlu0 %v1165
      %v1167 = vpop.xlane.xlu0 %1166
      %v1168 = vsel %vm1101, %v1147, 0.0
      %1169 = vadd.xlane.f32.xlu0 %v1168
      %v1170 = vpop.xlane.xlu0 %1169
      %v1171 = vsel %vm1101, %v1149, 0.0
      %1172 = vadd.xlane.f32.xlu0 %v1171
      %v1173 = vpop.xlane.xlu0 %1172
      %v1174 = vrcp.pop %v1152
      %v1175 = vmul.f32 %v1152, %v1174
      %v1176 = vsub.f32 1.0, %v1175
      %v1177 = vmul.f32 %v1174, %v1176
      %v1178 = vadd.f32 %v1174, %v1177
      %vm1179 = vweird.f32 %v1152
      %vm1180 = vweird.f32 %v1174
      %vm1181 = vmor %vm1179, %vm1180
      %v1182 = vsel %vm1181, %v1174, %v1178
      %v1183 = vand.u32 2147483647, %v1152
      %vm1184 = vcmp.eq.f32.partialorder %v1183, 8.507059e+37
      %v1185 = vand.u32 %v1152, 2147483648
      %v1186 = vor.u32 1.1754944e-38, %v1185
      %v1187 = vsel %vm1184, %v1186, %v1182
      %v1188 = vrcp.pop %v1155
      %v1189 = vmul.f32 %v1155, %v1188
      %v1190 = vsub.f32 1.0, %v1189
      %v1191 = vmul.f32 %v1188, %v1190
      %v1192 = vadd.f32 %v1188, %v1191
      %vm1193 = vweird.f32 %v1155
      %vm1194 = vweird.f32 %v1188
      %vm1195 = vmor %vm1193, %vm1194
      %v1196 = vsel %vm1195, %v1188, %v1192
      %v1197 = vand.u32 2147483647, %v1155
      %vm1198 = vcmp.eq.f32.partialorder %v1197, 8.507059e+37
      %v1199 = vand.u32 %v1155, 2147483648
      %v1200 = vor.u32 1.1754944e-38, %v1199
      %v1201 = vsel %vm1198, %v1200, %v1196
      %v1202 = vrcp.pop %v1158
      %v1203 = vmul.f32 %v1158, %v1202
      %v1204 = vsub.f32 1.0, %v1203
      %v1205 = vmul.f32 %v1202, %v1204
      %v1206 = vadd.f32 %v1202, %v1205
      %vm1207 = vweird.f32 %v1158
      %vm1208 = vweird.f32 %v1202
      %vm1209 = vmor %vm1207, %vm1208
      %v1210 = vsel %vm1209, %v1202, %v1206
      %v1211 = vand.u32 2147483647, %v1158
      %vm1212 = vcmp.eq.f32.partialorder %v1211, 8.507059e+37
      %v1213 = vand.u32 %v1158, 2147483648
      %v1214 = vor.u32 1.1754944e-38, %v1213
      %v1215 = vsel %vm1212, %v1214, %v1210
      %v1216 = vrcp.pop %v1161
      %v1217 = vmul.f32 %v1161, %v1216
      %v1218 = vsub.f32 1.0, %v1217
      %v1219 = vmul.f32 %v1216, %v1218
      %v1220 = vadd.f32 %v1216, %v1219
      %vm1221 = vweird.f32 %v1161
      %vm1222 = vweird.f32 %v1216
      %vm1223 = vmor %vm1221, %vm1222
      %v1224 = vsel %vm1223, %v1216, %v1220
      %v1225 = vand.u32 2147483647, %v1161
      %vm1226 = vcmp.eq.f32.partialorder %v1225, 8.507059e+37
      %v1227 = vand.u32 %v1161, 2147483648
      %v1228 = vor.u32 1.1754944e-38, %v1227
      %v1229 = vsel %vm1226, %v1228, %v1224
      %v1230 = vrcp.pop %v1164
      %v1231 = vmul.f32 %v1164, %v1230
      %v1232 = vsub.f32 1.0, %v1231
      %v1233 = vmul.f32 %v1230, %v1232
      %v1234 = vadd.f32 %v1230, %v1233
      %vm1235 = vweird.f32 %v1164
      %vm1236 = vweird.f32 %v1230
      %vm1237 = vmor %vm1235, %vm1236
      %v1238 = vsel %vm1237, %v1230, %v1234
      %v1239 = vand.u32 2147483647, %v1164
      %vm1240 = vcmp.eq.f32.partialorder %v1239, 8.507059e+37
      %v1241 = vand.u32 %v1164, 2147483648
      %v1242 = vor.u32 1.1754944e-38, %v1241
      %v1243 = vsel %vm1240, %v1242, %v1238
      %v1244 = vrcp.pop %v1167
      %v1245 = vmul.f32 %v1167, %v1244
      %v1246 = vsub.f32 1.0, %v1245
      %v1247 = vmul.f32 %v1244, %v1246
      %v1248 = vadd.f32 %v1244, %v1247
      %vm1249 = vweird.f32 %v1167
      %vm1250 = vweird.f32 %v1244
      %vm1251 = vmor %vm1249, %vm1250
      %v1252 = vsel %vm1251, %v1244, %v1248
      %v1253 = vand.u32 2147483647, %v1167
      %vm1254 = vcmp.eq.f32.partialorder %v1253, 8.507059e+37
      %v1255 = vand.u32 %v1167, 2147483648
      %v1256 = vor.u32 1.1754944e-38, %v1255
      %v1257 = vsel %vm1254, %v1256, %v1252
      %v1258 = vrcp.pop %v1170
      %v1259 = vmul.f32 %v1170, %v1258
      %v1260 = vsub.f32 1.0, %v1259
      %v1261 = vmul.f32 %v1258, %v1260
      %v1262 = vadd.f32 %v1258, %v1261
      %vm1263 = vweird.f32 %v1170
      %vm1264 = vweird.f32 %v1258
      %vm1265 = vmor %vm1263, %vm1264
      %v1266 = vsel %vm1265, %v1258, %v1262
      %v1267 = vand.u32 2147483647, %v1170
      %vm1268 = vcmp.eq.f32.partialorder %v1267, 8.507059e+37
      %v1269 = vand.u32 %v1170, 2147483648
      %v1270 = vor.u32 1.1754944e-38, %v1269
      %v1271 = vsel %vm1268, %v1270, %v1266
      %v1272 = vrcp.pop %v1173
      %v1273 = vmul.f32 %v1173, %v1272
      %v1274 = vsub.f32 1.0, %v1273
      %v1275 = vmul.f32 %v1272, %v1274
      %v1276 = vadd.f32 %v1272, %v1275
      %vm1277 = vweird.f32 %v1173
      %vm1278 = vweird.f32 %v1272
      %vm1279 = vmor %vm1277, %vm1278
      %v1280 = vsel %vm1279, %v1272, %v1276
      %v1281 = vand.u32 2147483647, %v1173
      %vm1282 = vcmp.eq.f32.partialorder %v1281, 8.507059e+37
      %v1283 = vand.u32 %v1173, 2147483648
      %v1284 = vor.u32 1.1754944e-38, %v1283
      %v1285 = vsel %vm1282, %v1284, %v1280
      %v1286 = vmul.f32 %v1135, %v1187
      %v1287 = vmul.f32 %v1137, %v1201
      %v1288 = vmul.f32 %v1139, %v1215
      %v1289 = vmul.f32 %v1141, %v1229
      %v1290 = vmul.f32 %v1143, %v1243
      %v1291 = vmul.f32 %v1145, %v1257
      %v1292 = vmul.f32 %v1147, %v1271
      %v1293 = vmul.f32 %v1149, %v1285
      %1294 = vst.msk [vmem:[%s333] sm:$0xff] %vm1101, %v1286
      %1295 = vst.msk [vmem:[%s333 + $0x8] sm:$0xff] %vm1101, %v1287
      %1296 = vst.msk [vmem:[%s333 + $0x10] sm:$0xff] %vm1101, %v1288
      %1297 = vst.msk [vmem:[%s333 + $0x18] sm:$0xff] %vm1101, %v1289
      %1298 = vst.msk [vmem:[%s333 + $0x20] sm:$0xff] %vm1101, %v1290
      %1299 = vst.msk [vmem:[%s333 + $0x28] sm:$0xff] %vm1101, %v1291
      %1300 = vst.msk [vmem:[%s333 + $0x30] sm:$0xff] %vm1101, %v1292
      %1301 = vst.msk [vmem:[%s333 + $0x38] sm:$0xff] %vm1101, %v1293
      %v1302 = vld [vmem:[%s6] sm:$0xff]
      %v1303 = vld [vmem:[%s6 + $0x8] sm:$0xff]
      %v1304 = vld [vmem:[%s6 + $0x10] sm:$0xff]
      %v1305 = vld [vmem:[%s6 + $0x18] sm:$0xff]
      %v1306 = vld [vmem:[%s6 + $0x20] sm:$0xff]
      %v1307 = vld [vmem:[%s6 + $0x28] sm:$0xff]
      %v1308 = vld [vmem:[%s6 + $0x30] sm:$0xff]
      %v1309 = vld [vmem:[%s6 + $0x38] sm:$0xff]
      %v1310 = vmul.f32 %v1082, 0.1
      %v1311 = vmul.f32 %v1084, 0.1
      %v1312 = vmul.f32 %v1087, 0.1
      %v1313 = vmul.f32 %v1089, 0.1
      %v1314 = vmul.f32 %v1092, 0.1
      %v1315 = vmul.f32 %v1094, 0.1
      %v1316 = vmul.f32 %v1097, 0.1
      %v1317 = vmul.f32 %v1099, 0.1
      %1326 = vrot.lane.b32.xlu0 %v1302, 22
      %v1327 = vpop.permute.xlu0 %1326
      %1328 = vrot.lane.b32.xlu0 %v1303, 22
      %v1329 = vpop.permute.xlu0 %1328
      %1330 = vrot.lane.b32.xlu0 %v1304, 22
      %v1331 = vpop.permute.xlu0 %1330
      %1332 = vrot.lane.b32.xlu0 %v1305, 22
      %v1333 = vpop.permute.xlu0 %1332
      %1334 = vrot.lane.b32.xlu0 %v1306, 22
      %v1335 = vpop.permute.xlu0 %1334
      %1336 = vrot.lane.b32.xlu0 %v1307, 22
      %v1337 = vpop.permute.xlu0 %1336
      %1338 = vrot.lane.b32.xlu0 %v1308, 22
      %v1339 = vpop.permute.xlu0 %1338
      %1340 = vrot.lane.b32.xlu0 %v1309, 22
      %v1341 = vpop.permute.xlu0 %1340
      %v1350 = vmul.f32 %v1310, %v1327
      %v1351 = vmul.f32 %v1311, %v1329
      %v1352 = vmul.f32 %v1312, %v1331
      %v1353 = vmul.f32 %v1313, %v1333
      %v1354 = vmul.f32 %v1314, %v1335
      %v1355 = vmul.f32 %v1315, %v1337
      %v1356 = vmul.f32 %v1316, %v1339
      %v1357 = vmul.f32 %v1317, %v1341
      %1358 = vrot.lane.b32.xlu0 %v1302, 24
      %v1359 = vpop.permute.xlu0 %1358
      %1360 = vrot.lane.b32.xlu0 %v1303, 24
      %v1361 = vpop.permute.xlu0 %1360
      %1362 = vrot.lane.b32.xlu0 %v1304, 24
      %v1363 = vpop.permute.xlu0 %1362
      %1364 = vrot.lane.b32.xlu0 %v1305, 24
      %v1365 = vpop.permute.xlu0 %1364
      %1366 = vrot.lane.b32.xlu0 %v1306, 24
      %v1367 = vpop.permute.xlu0 %1366
      %1368 = vrot.lane.b32.xlu0 %v1307, 24
      %v1369 = vpop.permute.xlu0 %1368
      %1370 = vrot.lane.b32.xlu0 %v1308, 24
      %v1371 = vpop.permute.xlu0 %1370
      %1372 = vrot.lane.b32.xlu0 %v1309, 24
      %v1373 = vpop.permute.xlu0 %1372
      %v1382 = vadd.f32 %v1350, %v1359
      %v1383 = vadd.f32 %v1351, %v1361
      %v1384 = vadd.f32 %v1352, %v1363
      %v1385 = vadd.f32 %v1353, %v1365
      %v1386 = vadd.f32 %v1354, %v1367
      %v1387 = vadd.f32 %v1355, %v1369
      %v1388 = vadd.f32 %v1356, %v1371
      %v1389 = vadd.f32 %v1357, %v1373
      %v1390 = vmul.f32 %v1082, 0.2
      %v1391 = vmul.f32 %v1084, 0.2
      %v1392 = vmul.f32 %v1087, 0.2
      %v1393 = vmul.f32 %v1089, 0.2
      %v1394 = vmul.f32 %v1092, 0.2
      %v1395 = vmul.f32 %v1094, 0.2
      %v1396 = vmul.f32 %v1097, 0.2
      %v1397 = vmul.f32 %v1099, 0.2
      %v1398 = vmul.f32 %v1390, 1.442695
      %v1399 = vpow.pop %v1398
      %v1400 = vmul.f32 %v1391, 1.442695
      %v1401 = vpow.pop %v1400
      %v1402 = vmul.f32 %v1392, 1.442695
      %v1403 = vpow.pop %v1402
      %v1404 = vmul.f32 %v1393, 1.442695
      %v1405 = vpow.pop %v1404
      %v1406 = vmul.f32 %v1394, 1.442695
      %v1407 = vpow.pop %v1406
      %v1408 = vmul.f32 %v1395, 1.442695
      %v1409 = vpow.pop %v1408
      %v1410 = vmul.f32 %v1396, 1.442695
      %v1411 = vpow.pop %v1410
      %v1412 = vmul.f32 %v1397, 1.442695
      %v1413 = vpow.pop %v1412
      %v1414 = vmul.f32 %v1399, %v1359
      %v1415 = vmul.f32 %v1401, %v1361
      %v1416 = vmul.f32 %v1403, %v1363
      %v1417 = vmul.f32 %v1405, %v1365
      %v1418 = vmul.f32 %v1407, %v1367
      %v1419 = vmul.f32 %v1409, %v1369
      %v1420 = vmul.f32 %v1411, %v1371
      %v1421 = vmul.f32 %v1413, %v1373
      %v1422 = vmul.f32 %v1414, 0.5
      %v1423 = vmul.f32 %v1415, 0.5
      %v1424 = vmul.f32 %v1416, 0.5
      %v1425 = vmul.f32 %v1417, 0.5
      %v1426 = vmul.f32 %v1418, 0.5
      %v1427 = vmul.f32 %v1419, 0.5
      %v1428 = vmul.f32 %v1420, 0.5
      %v1429 = vmul.f32 %v1421, 0.5
      %1438 = vrot.lane.b32.xlu0 %v1422, 126
      %v1439 = vpop.permute.xlu0 %1438
      %1440 = vrot.lane.b32.xlu0 %v1423, 126
      %v1441 = vpop.permute.xlu0 %1440
      %1442 = vrot.lane.b32.xlu0 %v1424, 126
      %v1443 = vpop.permute.xlu0 %1442
      %1444 = vrot.lane.b32.xlu0 %v1425, 126
      %v1445 = vpop.permute.xlu0 %1444
      %1446 = vrot.lane.b32.xlu0 %v1426, 126
      %v1447 = vpop.permute.xlu0 %1446
      %1448 = vrot.lane.b32.xlu0 %v1427, 126
      %v1449 = vpop.permute.xlu0 %1448
      %1450 = vrot.lane.b32.xlu0 %v1428, 126
      %v1451 = vpop.permute.xlu0 %1450
      %1452 = vrot.lane.b32.xlu0 %v1429, 126
      %v1453 = vpop.permute.xlu0 %1452
      %v1462 = vsub.f32 %v1382, %v1439
      %v1463 = vsub.f32 %v1383, %v1441
      %v1464 = vsub.f32 %v1384, %v1443
      %v1465 = vsub.f32 %v1385, %v1445
      %v1466 = vsub.f32 %v1386, %v1447
      %v1467 = vsub.f32 %v1387, %v1449
      %v1468 = vsub.f32 %v1388, %v1451
      %v1469 = vsub.f32 %v1389, %v1453
      %v1470 = vadd.f32 %v1382, %v1439
      %v1471 = vadd.f32 %v1383, %v1441
      %v1472 = vadd.f32 %v1384, %v1443
      %v1473 = vadd.f32 %v1385, %v1445
      %v1474 = vadd.f32 %v1386, %v1447
      %v1475 = vadd.f32 %v1387, %v1449
      %v1476 = vadd.f32 %v1388, %v1451
      %v1477 = vadd.f32 %v1389, %v1453
      %1486 = vrot.lane.b32.xlu0 %v1462, 104
      %v1487 = vpop.permute.xlu0 %1486
      %1488 = vrot.lane.b32.xlu0 %v1463, 104
      %v1489 = vpop.permute.xlu0 %1488
      %1490 = vrot.lane.b32.xlu0 %v1464, 104
      %v1491 = vpop.permute.xlu0 %1490
      %1492 = vrot.lane.b32.xlu0 %v1465, 104
      %v1493 = vpop.permute.xlu0 %1492
      %1494 = vrot.lane.b32.xlu0 %v1466, 104
      %v1495 = vpop.permute.xlu0 %1494
      %1496 = vrot.lane.b32.xlu0 %v1467, 104
      %v1497 = vpop.permute.xlu0 %1496
      %1498 = vrot.lane.b32.xlu0 %v1468, 104
      %v1499 = vpop.permute.xlu0 %1498
      %1500 = vrot.lane.b32.xlu0 %v1469, 104
      %v1501 = vpop.permute.xlu0 %1500
      %1518 = vrot.lane.b32.xlu0 %v1470, 106
      %v1519 = vpop.permute.xlu0 %1518
      %1520 = vrot.lane.b32.xlu0 %v1471, 106
      %v1521 = vpop.permute.xlu0 %1520
      %1522 = vrot.lane.b32.xlu0 %v1472, 106
      %v1523 = vpop.permute.xlu0 %1522
      %1524 = vrot.lane.b32.xlu0 %v1473, 106
      %v1525 = vpop.permute.xlu0 %1524
      %1526 = vrot.lane.b32.xlu0 %v1474, 106
      %v1527 = vpop.permute.xlu0 %1526
      %1528 = vrot.lane.b32.xlu0 %v1475, 106
      %v1529 = vpop.permute.xlu0 %1528
      %1530 = vrot.lane.b32.xlu0 %v1476, 106
      %v1531 = vpop.permute.xlu0 %1530
      %1532 = vrot.lane.b32.xlu0 %v1477, 106
      %v1533 = vpop.permute.xlu0 %1532
      %vm1542 = vcmask 15360
      %v1543 = vsel %vm1542, %v1487, %v1519
      %v1544 = vsel %vm1542, %v1489, %v1521
      %v1545 = vsel %vm1542, %v1491, %v1523
      %v1546 = vsel %vm1542, %v1493, %v1525
      %v1547 = vsel %vm1542, %v1495, %v1527
      %v1548 = vsel %vm1542, %v1497, %v1529
      %v1549 = vsel %vm1542, %v1499, %v1531
      %v1550 = vsel %vm1542, %v1501, %v1533
      %vm1551 = vcmask 31744
      %1552 = vst.msk [vmem:[%s338] sm:$0xff] %vm1551, %v1543
      %1553 = vst.msk [vmem:[%s338 + $0x8] sm:$0xff] %vm1551, %v1544
      %1554 = vst.msk [vmem:[%s338 + $0x10] sm:$0xff] %vm1551, %v1545
      %1555 = vst.msk [vmem:[%s338 + $0x18] sm:$0xff] %vm1551, %v1546
      %1556 = vst.msk [vmem:[%s338 + $0x20] sm:$0xff] %vm1551, %v1547
      %1557 = vst.msk [vmem:[%s338 + $0x28] sm:$0xff] %vm1551, %v1548
      %1558 = vst.msk [vmem:[%s338 + $0x30] sm:$0xff] %vm1551, %v1549
      %1559 = vst.msk [vmem:[%s338 + $0x38] sm:$0xff] %vm1551, %v1550
      %vm1560 = vcmask 97328
      %v1561 = vsel %vm1560, %v1082, -inf
      %1562 = vmax.xlane.f32.xlu0 %v1561
      %v1563 = vpop.xlane.xlu0 %1562
      %v1564 = vsel %vm1560, %v1084, -inf
      %1565 = vmax.xlane.f32.xlu0 %v1564
      %v1566 = vpop.xlane.xlu0 %1565
      %v1567 = vsel %vm1560, %v1087, -inf
      %1568 = vmax.xlane.f32.xlu0 %v1567
      %v1569 = vpop.xlane.xlu0 %1568
      %v1570 = vsel %vm1560, %v1089, -inf
      %1571 = vmax.xlane.f32.xlu0 %v1570
      %v1572 = vpop.xlane.xlu0 %1571
      %v1573 = vsel %vm1560, %v1092, -inf
      %1574 = vmax.xlane.f32.xlu0 %v1573
      %v1575 = vpop.xlane.xlu0 %1574
      %v1576 = vsel %vm1560, %v1094, -inf
      %1577 = vmax.xlane.f32.xlu0 %v1576
      %v1578 = vpop.xlane.xlu0 %1577
      %v1579 = vsel %vm1560, %v1097, -inf
      %1580 = vmax.xlane.f32.xlu0 %v1579
      %v1581 = vpop.xlane.xlu0 %1580
      %v1582 = vsel %vm1560, %v1099, -inf
      %1583 = vmax.xlane.f32.xlu0 %v1582
      %v1584 = vpop.xlane.xlu0 %1583
      %v1585 = vsub.f32 %v1082, %v1563
      %v1586 = vsub.f32 %v1084, %v1566
      %v1587 = vsub.f32 %v1087, %v1569
      %v1588 = vsub.f32 %v1089, %v1572
      %v1589 = vsub.f32 %v1092, %v1575
      %v1590 = vsub.f32 %v1094, %v1578
      %v1591 = vsub.f32 %v1097, %v1581
      %v1592 = vsub.f32 %v1099, %v1584
      %v1593 = vmul.f32 %v1585, 1.442695
      %v1594 = vpow.pop %v1593
      %v1595 = vmul.f32 %v1586, 1.442695
      %v1596 = vpow.pop %v1595
      %v1597 = vmul.f32 %v1587, 1.442695
      %v1598 = vpow.pop %v1597
      %v1599 = vmul.f32 %v1588, 1.442695
      %v1600 = vpow.pop %v1599
      %v1601 = vmul.f32 %v1589, 1.442695
      %v1602 = vpow.pop %v1601
      %v1603 = vmul.f32 %v1590, 1.442695
      %v1604 = vpow.pop %v1603
      %v1605 = vmul.f32 %v1591, 1.442695
      %v1606 = vpow.pop %v1605
      %v1607 = vmul.f32 %v1592, 1.442695
      %v1608 = vpow.pop %v1607
      %1617 = vrot.lane.b32.xlu0 %v1594, 122
      %v1618 = vpop.permute.xlu0 %1617
      %1619 = vrot.lane.b32.xlu0 %v1596, 122
      %v1620 = vpop.permute.xlu0 %1619
      %1621 = vrot.lane.b32.xlu0 %v1598, 122
      %v1622 = vpop.permute.xlu0 %1621
      %1623 = vrot.lane.b32.xlu0 %v1600, 122
      %v1624 = vpop.permute.xlu0 %1623
      %1625 = vrot.lane.b32.xlu0 %v1602, 122
      %v1626 = vpop.permute.xlu0 %1625
      %1627 = vrot.lane.b32.xlu0 %v1604, 122
      %v1628 = vpop.permute.xlu0 %1627
      %1629 = vrot.lane.b32.xlu0 %v1606, 122
      %v1630 = vpop.permute.xlu0 %1629
      %1631 = vrot.lane.b32.xlu0 %v1608, 122
      %v1632 = vpop.permute.xlu0 %1631
      %v1641 = vsel %vm1101, %v1618, 0.0
      %1642 = vadd.xlane.f32.xlu0 %v1641
      %v1643 = vpop.xlane.xlu0 %1642
      %v1644 = vsel %vm1101, %v1620, 0.0
      %1645 = vadd.xlane.f32.xlu0 %v1644
      %v1646 = vpop.xlane.xlu0 %1645
      %v1647 = vsel %vm1101, %v1622, 0.0
      %1648 = vadd.xlane.f32.xlu0 %v1647
      %v1649 = vpop.xlane.xlu0 %1648
      %v1650 = vsel %vm1101, %v1624, 0.0
      %1651 = vadd.xlane.f32.xlu0 %v1650
      %v1652 = vpop.xlane.xlu0 %1651
      %v1653 = vsel %vm1101, %v1626, 0.0
      %1654 = vadd.xlane.f32.xlu0 %v1653
      %v1655 = vpop.xlane.xlu0 %1654
      %v1656 = vsel %vm1101, %v1628, 0.0
      %1657 = vadd.xlane.f32.xlu0 %v1656
      %v1658 = vpop.xlane.xlu0 %1657
      %v1659 = vsel %vm1101, %v1630, 0.0
      %1660 = vadd.xlane.f32.xlu0 %v1659
      %v1661 = vpop.xlane.xlu0 %1660
      %v1662 = vsel %vm1101, %v1632, 0.0
      %1663 = vadd.xlane.f32.xlu0 %v1662
      %v1664 = vpop.xlane.xlu0 %1663
      %v1665 = vrcp.pop %v1643
      %v1666 = vmul.f32 %v1643, %v1665
      %v1667 = vsub.f32 1.0, %v1666
      %v1668 = vmul.f32 %v1665, %v1667
      %v1669 = vadd.f32 %v1665, %v1668
      %vm1670 = vweird.f32 %v1643
      %vm1671 = vweird.f32 %v1665
      %vm1672 = vmor %vm1670, %vm1671
      %v1673 = vsel %vm1672, %v1665, %v1669
      %v1674 = vand.u32 2147483647, %v1643
      %vm1675 = vcmp.eq.f32.partialorder %v1674, 8.507059e+37
      %v1676 = vand.u32 %v1643, 2147483648
      %v1677 = vor.u32 1.1754944e-38, %v1676
      %v1678 = vsel %vm1675, %v1677, %v1673
      %v1679 = vrcp.pop %v1646
      %v1680 = vmul.f32 %v1646, %v1679
      %v1681 = vsub.f32 1.0, %v1680
      %v1682 = vmul.f32 %v1679, %v1681
      %v1683 = vadd.f32 %v1679, %v1682
      %vm1684 = vweird.f32 %v1646
      %vm1685 = vweird.f32 %v1679
      %vm1686 = vmor %vm1684, %vm1685
      %v1687 = vsel %vm1686, %v1679, %v1683
      %v1688 = vand.u32 2147483647, %v1646
      %vm1689 = vcmp.eq.f32.partialorder %v1688, 8.507059e+37
      %v1690 = vand.u32 %v1646, 2147483648
      %v1691 = vor.u32 1.1754944e-38, %v1690
      %v1692 = vsel %vm1689, %v1691, %v1687
      %v1693 = vrcp.pop %v1649
      %v1694 = vmul.f32 %v1649, %v1693
      %v1695 = vsub.f32 1.0, %v1694
      %v1696 = vmul.f32 %v1693, %v1695
      %v1697 = vadd.f32 %v1693, %v1696
      %vm1698 = vweird.f32 %v1649
      %vm1699 = vweird.f32 %v1693
      %vm1700 = vmor %vm1698, %vm1699
      %v1701 = vsel %vm1700, %v1693, %v1697
      %v1702 = vand.u32 2147483647, %v1649
      %vm1703 = vcmp.eq.f32.partialorder %v1702, 8.507059e+37
      %v1704 = vand.u32 %v1649, 2147483648
      %v1705 = vor.u32 1.1754944e-38, %v1704
      %v1706 = vsel %vm1703, %v1705, %v1701
      %v1707 = vrcp.pop %v1652
      %v1708 = vmul.f32 %v1652, %v1707
      %v1709 = vsub.f32 1.0, %v1708
      %v1710 = vmul.f32 %v1707, %v1709
      %v1711 = vadd.f32 %v1707, %v1710
      %vm1712 = vweird.f32 %v1652
      %vm1713 = vweird.f32 %v1707
      %vm1714 = vmor %vm1712, %vm1713
      %v1715 = vsel %vm1714, %v1707, %v1711
      %v1716 = vand.u32 2147483647, %v1652
      %vm1717 = vcmp.eq.f32.partialorder %v1716, 8.507059e+37
      %v1718 = vand.u32 %v1652, 2147483648
      %v1719 = vor.u32 1.1754944e-38, %v1718
      %v1720 = vsel %vm1717, %v1719, %v1715
      %v1721 = vrcp.pop %v1655
      %v1722 = vmul.f32 %v1655, %v1721
      %v1723 = vsub.f32 1.0, %v1722
      %v1724 = vmul.f32 %v1721, %v1723
      %v1725 = vadd.f32 %v1721, %v1724
      %vm1726 = vweird.f32 %v1655
      %vm1727 = vweird.f32 %v1721
      %vm1728 = vmor %vm1726, %vm1727
      %v1729 = vsel %vm1728, %v1721, %v1725
      %v1730 = vand.u32 2147483647, %v1655
      %vm1731 = vcmp.eq.f32.partialorder %v1730, 8.507059e+37
      %v1732 = vand.u32 %v1655, 2147483648
      %v1733 = vor.u32 1.1754944e-38, %v1732
      %v1734 = vsel %vm1731, %v1733, %v1729
      %v1735 = vrcp.pop %v1658
      %v1736 = vmul.f32 %v1658, %v1735
      %v1737 = vsub.f32 1.0, %v1736
      %v1738 = vmul.f32 %v1735, %v1737
      %v1739 = vadd.f32 %v1735, %v1738
      %vm1740 = vweird.f32 %v1658
      %vm1741 = vweird.f32 %v1735
      %vm1742 = vmor %vm1740, %vm1741
      %v1743 = vsel %vm1742, %v1735, %v1739
      %v1744 = vand.u32 2147483647, %v1658
      %vm1745 = vcmp.eq.f32.partialorder %v1744, 8.507059e+37
      %v1746 = vand.u32 %v1658, 2147483648
      %v1747 = vor.u32 1.1754944e-38, %v1746
      %v1748 = vsel %vm1745, %v1747, %v1743
      %v1749 = vrcp.pop %v1661
      %v1750 = vmul.f32 %v1661, %v1749
      %v1751 = vsub.f32 1.0, %v1750
      %v1752 = vmul.f32 %v1749, %v1751
      %v1753 = vadd.f32 %v1749, %v1752
      %vm1754 = vweird.f32 %v1661
      %vm1755 = vweird.f32 %v1749
      %vm1756 = vmor %vm1754, %vm1755
      %v1757 = vsel %vm1756, %v1749, %v1753
      %v1758 = vand.u32 2147483647, %v1661
      %vm1759 = vcmp.eq.f32.partialorder %v1758, 8.507059e+37
      %v1760 = vand.u32 %v1661, 2147483648
      %v1761 = vor.u32 1.1754944e-38, %v1760
      %v1762 = vsel %vm1759, %v1761, %v1757
      %v1763 = vrcp.pop %v1664
      %v1764 = vmul.f32 %v1664, %v1763
      %v1765 = vsub.f32 1.0, %v1764
      %v1766 = vmul.f32 %v1763, %v1765
      %v1767 = vadd.f32 %v1763, %v1766
      %vm1768 = vweird.f32 %v1664
      %vm1769 = vweird.f32 %v1763
      %vm1770 = vmor %vm1768, %vm1769
      %v1771 = vsel %vm1770, %v1763, %v1767
      %v1772 = vand.u32 2147483647, %v1664
      %vm1773 = vcmp.eq.f32.partialorder %v1772, 8.507059e+37
      %v1774 = vand.u32 %v1664, 2147483648
      %v1775 = vor.u32 1.1754944e-38, %v1774
      %v1776 = vsel %vm1773, %v1775, %v1771
      %v1777 = vmul.f32 %v1594, %v1678
      %v1778 = vmul.f32 %v1596, %v1692
      %v1779 = vmul.f32 %v1598, %v1706
      %v1780 = vmul.f32 %v1600, %v1720
      %v1781 = vmul.f32 %v1602, %v1734
      %v1782 = vmul.f32 %v1604, %v1748
      %v1783 = vmul.f32 %v1606, %v1762
      %v1784 = vmul.f32 %v1608, %v1776
      %1793 = vrot.lane.b32.xlu0 %v1777, 122
      %v1794 = vpop.permute.xlu0 %1793
      %1795 = vrot.lane.b32.xlu0 %v1778, 122
      %v1796 = vpop.permute.xlu0 %1795
      %1797 = vrot.lane.b32.xlu0 %v1779, 122
      %v1798 = vpop.permute.xlu0 %1797
      %1799 = vrot.lane.b32.xlu0 %v1780, 122
      %v1800 = vpop.permute.xlu0 %1799
      %1801 = vrot.lane.b32.xlu0 %v1781, 122
      %v1802 = vpop.permute.xlu0 %1801
      %1803 = vrot.lane.b32.xlu0 %v1782, 122
      %v1804 = vpop.permute.xlu0 %1803
      %1805 = vrot.lane.b32.xlu0 %v1783, 122
      %v1806 = vpop.permute.xlu0 %1805
      %1807 = vrot.lane.b32.xlu0 %v1784, 122
      %v1808 = vpop.permute.xlu0 %1807
      %1817 = vst.msk [vmem:[%s333 + $0x40] sm:$0xff] %vm1101, %v1794
      %1818 = vst.msk [vmem:[%s333 + $0x48] sm:$0xff] %vm1101, %v1796
      %1819 = vst.msk [vmem:[%s333 + $0x50] sm:$0xff] %vm1101, %v1798
      %1820 = vst.msk [vmem:[%s333 + $0x58] sm:$0xff] %vm1101, %v1800
      %1821 = vst.msk [vmem:[%s333 + $0x60] sm:$0xff] %vm1101, %v1802
      %1822 = vst.msk [vmem:[%s333 + $0x68] sm:$0xff] %vm1101, %v1804
      %1823 = vst.msk [vmem:[%s333 + $0x70] sm:$0xff] %vm1101, %v1806
      %1824 = vst.msk [vmem:[%s333 + $0x78] sm:$0xff] %vm1101, %v1808
      %v1825 = vld [vmem:[%s6 + $0x40] sm:$0xff]
      %v1826 = vld [vmem:[%s6 + $0x48] sm:$0xff]
      %v1827 = vld [vmem:[%s6 + $0x50] sm:$0xff]
      %v1828 = vld [vmem:[%s6 + $0x58] sm:$0xff]
      %v1829 = vld [vmem:[%s6 + $0x60] sm:$0xff]
      %v1830 = vld [vmem:[%s6 + $0x68] sm:$0xff]
      %v1831 = vld [vmem:[%s6 + $0x70] sm:$0xff]
      %v1832 = vld [vmem:[%s6 + $0x78] sm:$0xff]
      %1841 = vrot.lane.b32.xlu0 %v1825, 26
      %v1842 = vpop.permute.xlu0 %1841
      %1843 = vrot.lane.b32.xlu0 %v1826, 26
      %v1844 = vpop.permute.xlu0 %1843
      %1845 = vrot.lane.b32.xlu0 %v1827, 26
      %v1846 = vpop.permute.xlu0 %1845
      %1847 = vrot.lane.b32.xlu0 %v1828, 26
      %v1848 = vpop.permute.xlu0 %1847
      %1849 = vrot.lane.b32.xlu0 %v1829, 26
      %v1850 = vpop.permute.xlu0 %1849
      %1851 = vrot.lane.b32.xlu0 %v1830, 26
      %v1852 = vpop.permute.xlu0 %1851
      %1853 = vrot.lane.b32.xlu0 %v1831, 26
      %v1854 = vpop.permute.xlu0 %1853
      %1855 = vrot.lane.b32.xlu0 %v1832, 26
      %v1856 = vpop.permute.xlu0 %1855
      %v1865 = vmul.f32 %v1310, %v1842
      %v1866 = vmul.f32 %v1311, %v1844
      %v1867 = vmul.f32 %v1312, %v1846
      %v1868 = vmul.f32 %v1313, %v1848
      %v1869 = vmul.f32 %v1314, %v1850
      %v1870 = vmul.f32 %v1315, %v1852
      %v1871 = vmul.f32 %v1316, %v1854
      %v1872 = vmul.f32 %v1317, %v1856
      %1873 = vrot.lane.b32.xlu0 %v1825, 28
      %v1874 = vpop.permute.xlu0 %1873
      %1875 = vrot.lane.b32.xlu0 %v1826, 28
      %v1876 = vpop.permute.xlu0 %1875
      %1877 = vrot.lane.b32.xlu0 %v1827, 28
      %v1878 = vpop.permute.xlu0 %1877
      %1879 = vrot.lane.b32.xlu0 %v1828, 28
      %v1880 = vpop.permute.xlu0 %1879
      %1881 = vrot.lane.b32.xlu0 %v1829, 28
      %v1882 = vpop.permute.xlu0 %1881
      %1883 = vrot.lane.b32.xlu0 %v1830, 28
      %v1884 = vpop.permute.xlu0 %1883
      %1885 = vrot.lane.b32.xlu0 %v1831, 28
      %v1886 = vpop.permute.xlu0 %1885
      %1887 = vrot.lane.b32.xlu0 %v1832, 28
      %v1888 = vpop.permute.xlu0 %1887
      %v1897 = vadd.f32 %v1865, %v1874
      %v1898 = vadd.f32 %v1866, %v1876
      %v1899 = vadd.f32 %v1867, %v1878
      %v1900 = vadd.f32 %v1868, %v1880
      %v1901 = vadd.f32 %v1869, %v1882
      %v1902 = vadd.f32 %v1870, %v1884
      %v1903 = vadd.f32 %v1871, %v1886
      %v1904 = vadd.f32 %v1872, %v1888
      %v1905 = vmul.f32 %v1399, %v1874
      %v1906 = vmul.f32 %v1401, %v1876
      %v1907 = vmul.f32 %v1403, %v1878
      %v1908 = vmul.f32 %v1405, %v1880
      %v1909 = vmul.f32 %v1407, %v1882
      %v1910 = vmul.f32 %v1409, %v1884
      %v1911 = vmul.f32 %v1411, %v1886
      %v1912 = vmul.f32 %v1413, %v1888
      %v1913 = vmul.f32 %v1905, 0.5
      %v1914 = vmul.f32 %v1906, 0.5
      %v1915 = vmul.f32 %v1907, 0.5
      %v1916 = vmul.f32 %v1908, 0.5
      %v1917 = vmul.f32 %v1909, 0.5
      %v1918 = vmul.f32 %v1910, 0.5
      %v1919 = vmul.f32 %v1911, 0.5
      %v1920 = vmul.f32 %v1912, 0.5
      %1929 = vrot.lane.b32.xlu0 %v1913, 126
      %v1930 = vpop.permute.xlu0 %1929
      %1931 = vrot.lane.b32.xlu0 %v1914, 126
      %v1932 = vpop.permute.xlu0 %1931
      %1933 = vrot.lane.b32.xlu0 %v1915, 126
      %v1934 = vpop.permute.xlu0 %1933
      %1935 = vrot.lane.b32.xlu0 %v1916, 126
      %v1936 = vpop.permute.xlu0 %1935
      %1937 = vrot.lane.b32.xlu0 %v1917, 126
      %v1938 = vpop.permute.xlu0 %1937
      %1939 = vrot.lane.b32.xlu0 %v1918, 126
      %v1940 = vpop.permute.xlu0 %1939
      %1941 = vrot.lane.b32.xlu0 %v1919, 126
      %v1942 = vpop.permute.xlu0 %1941
      %1943 = vrot.lane.b32.xlu0 %v1920, 126
      %v1944 = vpop.permute.xlu0 %1943
      %v1953 = vsub.f32 %v1897, %v1930
      %v1954 = vsub.f32 %v1898, %v1932
      %v1955 = vsub.f32 %v1899, %v1934
      %v1956 = vsub.f32 %v1900, %v1936
      %v1957 = vsub.f32 %v1901, %v1938
      %v1958 = vsub.f32 %v1902, %v1940
      %v1959 = vsub.f32 %v1903, %v1942
      %v1960 = vsub.f32 %v1904, %v1944
      %v1961 = vadd.f32 %v1897, %v1930
      %v1962 = vadd.f32 %v1898, %v1932
      %v1963 = vadd.f32 %v1899, %v1934
      %v1964 = vadd.f32 %v1900, %v1936
      %v1965 = vadd.f32 %v1901, %v1938
      %v1966 = vadd.f32 %v1902, %v1940
      %v1967 = vadd.f32 %v1903, %v1942
      %v1968 = vadd.f32 %v1904, %v1944
      %1977 = vrot.lane.b32.xlu0 %v1953, 100
      %v1978 = vpop.permute.xlu0 %1977
      %1979 = vrot.lane.b32.xlu0 %v1954, 100
      %v1980 = vpop.permute.xlu0 %1979
      %1981 = vrot.lane.b32.xlu0 %v1955, 100
      %v1982 = vpop.permute.xlu0 %1981
      %1983 = vrot.lane.b32.xlu0 %v1956, 100
      %v1984 = vpop.permute.xlu0 %1983
      %1985 = vrot.lane.b32.xlu0 %v1957, 100
      %v1986 = vpop.permute.xlu0 %1985
      %1987 = vrot.lane.b32.xlu0 %v1958, 100
      %v1988 = vpop.permute.xlu0 %1987
      %1989 = vrot.lane.b32.xlu0 %v1959, 100
      %v1990 = vpop.permute.xlu0 %1989
      %1991 = vrot.lane.b32.xlu0 %v1960, 100
      %v1992 = vpop.permute.xlu0 %1991
      %2009 = vrot.lane.b32.xlu0 %v1961, 102
      %v2010 = vpop.permute.xlu0 %2009
      %2011 = vrot.lane.b32.xlu0 %v1962, 102
      %v2012 = vpop.permute.xlu0 %2011
      %2013 = vrot.lane.b32.xlu0 %v1963, 102
      %v2014 = vpop.permute.xlu0 %2013
      %2015 = vrot.lane.b32.xlu0 %v1964, 102
      %v2016 = vpop.permute.xlu0 %2015
      %2017 = vrot.lane.b32.xlu0 %v1965, 102
      %v2018 = vpop.permute.xlu0 %2017
      %2019 = vrot.lane.b32.xlu0 %v1966, 102
      %v2020 = vpop.permute.xlu0 %2019
      %2021 = vrot.lane.b32.xlu0 %v1967, 102
      %v2022 = vpop.permute.xlu0 %2021
      %2023 = vrot.lane.b32.xlu0 %v1968, 102
      %v2024 = vpop.permute.xlu0 %2023
      %v2033 = vsel %vm1542, %v1978, %v2010
      %v2034 = vsel %vm1542, %v1980, %v2012
      %v2035 = vsel %vm1542, %v1982, %v2014
      %v2036 = vsel %vm1542, %v1984, %v2016
      %v2037 = vsel %vm1542, %v1986, %v2018
      %v2038 = vsel %vm1542, %v1988, %v2020
      %v2039 = vsel %vm1542, %v1990, %v2022
      %v2040 = vsel %vm1542, %v1992, %v2024
      %2041 = vst.msk [vmem:[%s338 + $0x40] sm:$0xff] %vm1551, %v2033
      %2042 = vst.msk [vmem:[%s338 + $0x48] sm:$0xff] %vm1551, %v2034
      %2043 = vst.msk [vmem:[%s338 + $0x50] sm:$0xff] %vm1551, %v2035
      %2044 = vst.msk [vmem:[%s338 + $0x58] sm:$0xff] %vm1551, %v2036
      %2045 = vst.msk [vmem:[%s338 + $0x60] sm:$0xff] %vm1551, %v2037
      %2046 = vst.msk [vmem:[%s338 + $0x68] sm:$0xff] %vm1551, %v2038
      %2047 = vst.msk [vmem:[%s338 + $0x70] sm:$0xff] %vm1551, %v2039
      %2048 = vst.msk [vmem:[%s338 + $0x78] sm:$0xff] %vm1551, %v2040
      %vm2049 = vcmask 146528
      %v2050 = vsel %vm2049, %v1082, -inf
      %2051 = vmax.xlane.f32.xlu0 %v2050
      %v2052 = vpop.xlane.xlu0 %2051
      %v2053 = vsel %vm2049, %v1084, -inf
      %2054 = vmax.xlane.f32.xlu0 %v2053
      %v2055 = vpop.xlane.xlu0 %2054
      %v2056 = vsel %vm2049, %v1087, -inf
      %2057 = vmax.xlane.f32.xlu0 %v2056
      %v2058 = vpop.xlane.xlu0 %2057
      %v2059 = vsel %vm2049, %v1089, -inf
      %2060 = vmax.xlane.f32.xlu0 %v2059
      %v2061 = vpop.xlane.xlu0 %2060
      %v2062 = vsel %vm2049, %v1092, -inf
      %2063 = vmax.xlane.f32.xlu0 %v2062
      %v2064 = vpop.xlane.xlu0 %2063
      %v2065 = vsel %vm2049, %v1094, -inf
      %2066 = vmax.xlane.f32.xlu0 %v2065
      %v2067 = vpop.xlane.xlu0 %2066
      %v2068 = vsel %vm2049, %v1097, -inf
      %2069 = vmax.xlane.f32.xlu0 %v2068
      %v2070 = vpop.xlane.xlu0 %2069
      %v2071 = vsel %vm2049, %v1099, -inf
      %2072 = vmax.xlane.f32.xlu0 %v2071
      %v2073 = vpop.xlane.xlu0 %2072
      %v2074 = vsub.f32 %v1082, %v2052
      %v2075 = vsub.f32 %v1084, %v2055
      %v2076 = vsub.f32 %v1087, %v2058
      %v2077 = vsub.f32 %v1089, %v2061
      %v2078 = vsub.f32 %v1092, %v2064
      %v2079 = vsub.f32 %v1094, %v2067
      %v2080 = vsub.f32 %v1097, %v2070
      %v2081 = vsub.f32 %v1099, %v2073
      %v2082 = vmul.f32 %v2074, 1.442695
      %v2083 = vpow.pop %v2082
      %v2084 = vmul.f32 %v2075, 1.442695
      %v2085 = vpow.pop %v2084
      %v2086 = vmul.f32 %v2076, 1.442695
      %v2087 = vpow.pop %v2086
      %v2088 = vmul.f32 %v2077, 1.442695
      %v2089 = vpow.pop %v2088
      %v2090 = vmul.f32 %v2078, 1.442695
      %v2091 = vpow.pop %v2090
      %v2092 = vmul.f32 %v2079, 1.442695
      %v2093 = vpow.pop %v2092
      %v2094 = vmul.f32 %v2080, 1.442695
      %v2095 = vpow.pop %v2094
      %v2096 = vmul.f32 %v2081, 1.442695
      %v2097 = vpow.pop %v2096
      %2106 = vrot.lane.b32.xlu0 %v2083, 116
      %v2107 = vpop.permute.xlu0 %2106
      %2108 = vrot.lane.b32.xlu0 %v2085, 116
      %v2109 = vpop.permute.xlu0 %2108
      %2110 = vrot.lane.b32.xlu0 %v2087, 116
      %v2111 = vpop.permute.xlu0 %2110
      %2112 = vrot.lane.b32.xlu0 %v2089, 116
      %v2113 = vpop.permute.xlu0 %2112
      %2114 = vrot.lane.b32.xlu0 %v2091, 116
      %v2115 = vpop.permute.xlu0 %2114
      %2116 = vrot.lane.b32.xlu0 %v2093, 116
      %v2117 = vpop.permute.xlu0 %2116
      %2118 = vrot.lane.b32.xlu0 %v2095, 116
      %v2119 = vpop.permute.xlu0 %2118
      %2120 = vrot.lane.b32.xlu0 %v2097, 116
      %v2121 = vpop.permute.xlu0 %2120
      %v2130 = vsel %vm1101, %v2107, 0.0
      %2131 = vadd.xlane.f32.xlu0 %v2130
      %v2132 = vpop.xlane.xlu0 %2131
      %v2133 = vsel %vm1101, %v2109, 0.0
      %2134 = vadd.xlane.f32.xlu0 %v2133
      %v2135 = vpop.xlane.xlu0 %2134
      %v2136 = vsel %vm1101, %v2111, 0.0
      %2137 = vadd.xlane.f32.xlu0 %v2136
      %v2138 = vpop.xlane.xlu0 %2137
      %v2139 = vsel %vm1101, %v2113, 0.0
      %2140 = vadd.xlane.f32.xlu0 %v2139
      %v2141 = vpop.xlane.xlu0 %2140
      %v2142 = vsel %vm1101, %v2115, 0.0
      %2143 = vadd.xlane.f32.xlu0 %v2142
      %v2144 = vpop.xlane.xlu0 %2143
      %v2145 = vsel %vm1101, %v2117, 0.0
      %2146 = vadd.xlane.f32.xlu0 %v2145
      %v2147 = vpop.xlane.xlu0 %2146
      %v2148 = vsel %vm1101, %v2119, 0.0
      %2149 = vadd.xlane.f32.xlu0 %v2148
      %v2150 = vpop.xlane.xlu0 %2149
      %v2151 = vsel %vm1101, %v2121, 0.0
      %2152 = vadd.xlane.f32.xlu0 %v2151
      %v2153 = vpop.xlane.xlu0 %2152
      %v2154 = vrcp.pop %v2132
      %v2155 = vmul.f32 %v2132, %v2154
      %v2156 = vsub.f32 1.0, %v2155
      %v2157 = vmul.f32 %v2154, %v2156
      %v2158 = vadd.f32 %v2154, %v2157
      %vm2159 = vweird.f32 %v2132
      %vm2160 = vweird.f32 %v2154
      %vm2161 = vmor %vm2159, %vm2160
      %v2162 = vsel %vm2161, %v2154, %v2158
      %v2163 = vand.u32 2147483647, %v2132
      %vm2164 = vcmp.eq.f32.partialorder %v2163, 8.507059e+37
      %v2165 = vand.u32 %v2132, 2147483648
      %v2166 = vor.u32 1.1754944e-38, %v2165
      %v2167 = vsel %vm2164, %v2166, %v2162
      %v2168 = vrcp.pop %v2135
      %v2169 = vmul.f32 %v2135, %v2168
      %v2170 = vsub.f32 1.0, %v2169
      %v2171 = vmul.f32 %v2168, %v2170
      %v2172 = vadd.f32 %v2168, %v2171
      %vm2173 = vweird.f32 %v2135
      %vm2174 = vweird.f32 %v2168
      %vm2175 = vmor %vm2173, %vm2174
      %v2176 = vsel %vm2175, %v2168, %v2172
      %v2177 = vand.u32 2147483647, %v2135
      %vm2178 = vcmp.eq.f32.partialorder %v2177, 8.507059e+37
      %v2179 = vand.u32 %v2135, 2147483648
      %v2180 = vor.u32 1.1754944e-38, %v2179
      %v2181 = vsel %vm2178, %v2180, %v2176
      %v2182 = vrcp.pop %v2138
      %v2183 = vmul.f32 %v2138, %v2182
      %v2184 = vsub.f32 1.0, %v2183
      %v2185 = vmul.f32 %v2182, %v2184
      %v2186 = vadd.f32 %v2182, %v2185
      %vm2187 = vweird.f32 %v2138
      %vm2188 = vweird.f32 %v2182
      %vm2189 = vmor %vm2187, %vm2188
      %v2190 = vsel %vm2189, %v2182, %v2186
      %v2191 = vand.u32 2147483647, %v2138
      %vm2192 = vcmp.eq.f32.partialorder %v2191, 8.507059e+37
      %v2193 = vand.u32 %v2138, 2147483648
      %v2194 = vor.u32 1.1754944e-38, %v2193
      %v2195 = vsel %vm2192, %v2194, %v2190
      %v2196 = vrcp.pop %v2141
      %v2197 = vmul.f32 %v2141, %v2196
      %v2198 = vsub.f32 1.0, %v2197
      %v2199 = vmul.f32 %v2196, %v2198
      %v2200 = vadd.f32 %v2196, %v2199
      %vm2201 = vweird.f32 %v2141
      %vm2202 = vweird.f32 %v2196
      %vm2203 = vmor %vm2201, %vm2202
      %v2204 = vsel %vm2203, %v2196, %v2200
      %v2205 = vand.u32 2147483647, %v2141
      %vm2206 = vcmp.eq.f32.partialorder %v2205, 8.507059e+37
      %v2207 = vand.u32 %v2141, 2147483648
      %v2208 = vor.u32 1.1754944e-38, %v2207
      %v2209 = vsel %vm2206, %v2208, %v2204
      %v2210 = vrcp.pop %v2144
      %v2211 = vmul.f32 %v2144, %v2210
      %v2212 = vsub.f32 1.0, %v2211
      %v2213 = vmul.f32 %v2210, %v2212
      %v2214 = vadd.f32 %v2210, %v2213
      %vm2215 = vweird.f32 %v2144
      %vm2216 = vweird.f32 %v2210
      %vm2217 = vmor %vm2215, %vm2216
      %v2218 = vsel %vm2217, %v2210, %v2214
      %v2219 = vand.u32 2147483647, %v2144
      %vm2220 = vcmp.eq.f32.partialorder %v2219, 8.507059e+37
      %v2221 = vand.u32 %v2144, 2147483648
      %v2222 = vor.u32 1.1754944e-38, %v2221
      %v2223 = vsel %vm2220, %v2222, %v2218
      %v2224 = vrcp.pop %v2147
      %v2225 = vmul.f32 %v2147, %v2224
      %v2226 = vsub.f32 1.0, %v2225
      %v2227 = vmul.f32 %v2224, %v2226
      %v2228 = vadd.f32 %v2224, %v2227
      %vm2229 = vweird.f32 %v2147
      %vm2230 = vweird.f32 %v2224
      %vm2231 = vmor %vm2229, %vm2230
      %v2232 = vsel %vm2231, %v2224, %v2228
      %v2233 = vand.u32 2147483647, %v2147
      %vm2234 = vcmp.eq.f32.partialorder %v2233, 8.507059e+37
      %v2235 = vand.u32 %v2147, 2147483648
      %v2236 = vor.u32 1.1754944e-38, %v2235
      %v2237 = vsel %vm2234, %v2236, %v2232
      %v2238 = vrcp.pop %v2150
      %v2239 = vmul.f32 %v2150, %v2238
      %v2240 = vsub.f32 1.0, %v2239
      %v2241 = vmul.f32 %v2238, %v2240
      %v2242 = vadd.f32 %v2238, %v2241
      %vm2243 = vweird.f32 %v2150
      %vm2244 = vweird.f32 %v2238
      %vm2245 = vmor %vm2243, %vm2244
      %v2246 = vsel %vm2245, %v2238, %v2242
      %v2247 = vand.u32 2147483647, %v2150
      %vm2248 = vcmp.eq.f32.partialorder %v2247, 8.507059e+37
      %v2249 = vand.u32 %v2150, 2147483648
      %v2250 = vor.u32 1.1754944e-38, %v2249
      %v2251 = vsel %vm2248, %v2250, %v2246
      %v2252 = vrcp.pop %v2153
      %v2253 = vmul.f32 %v2153, %v2252
      %v2254 = vsub.f32 1.0, %v2253
      %v2255 = vmul.f32 %v2252, %v2254
      %v2256 = vadd.f32 %v2252, %v2255
      %vm2257 = vweird.f32 %v2153
      %vm2258 = vweird.f32 %v2252
      %vm2259 = vmor %vm2257, %vm2258
      %v2260 = vsel %vm2259, %v2252, %v2256
      %v2261 = vand.u32 2147483647, %v2153
      %vm2262 = vcmp.eq.f32.partialorder %v2261, 8.507059e+37
      %v2263 = vand.u32 %v2153, 2147483648
      %v2264 = vor.u32 1.1754944e-38, %v2263
      %v2265 = vsel %vm2262, %v2264, %v2260
      %v2266 = vmul.f32 %v2083, %v2167
      %v2267 = vmul.f32 %v2085, %v2181
      %v2268 = vmul.f32 %v2087, %v2195
      %v2269 = vmul.f32 %v2089, %v2209
      %v2270 = vmul.f32 %v2091, %v2223
      %v2271 = vmul.f32 %v2093, %v2237
      %v2272 = vmul.f32 %v2095, %v2251
      %v2273 = vmul.f32 %v2097, %v2265
      %2282 = vrot.lane.b32.xlu0 %v2266, 116
      %v2283 = vpop.permute.xlu0 %2282
      %2284 = vrot.lane.b32.xlu0 %v2267, 116
      %v2285 = vpop.permute.xlu0 %2284
      %2286 = vrot.lane.b32.xlu0 %v2268, 116
      %v2287 = vpop.permute.xlu0 %2286
      %2288 = vrot.lane.b32.xlu0 %v2269, 116
      %v2289 = vpop.permute.xlu0 %2288
      %2290 = vrot.lane.b32.xlu0 %v2270, 116
      %v2291 = vpop.permute.xlu0 %2290
      %2292 = vrot.lane.b32.xlu0 %v2271, 116
      %v2293 = vpop.permute.xlu0 %2292
      %2294 = vrot.lane.b32.xlu0 %v2272, 116
      %v2295 = vpop.permute.xlu0 %2294
      %2296 = vrot.lane.b32.xlu0 %v2273, 116
      %v2297 = vpop.permute.xlu0 %2296
      %2306 = vst.msk [vmem:[%s333 + $0x80] sm:$0xff] %vm1101, %v2283
      %2307 = vst.msk [vmem:[%s333 + $0x88] sm:$0xff] %vm1101, %v2285
      %2308 = vst.msk [vmem:[%s333 + $0x90] sm:$0xff] %vm1101, %v2287
      %2309 = vst.msk [vmem:[%s333 + $0x98] sm:$0xff] %vm1101, %v2289
      %2310 = vst.msk [vmem:[%s333 + $0xa0] sm:$0xff] %vm1101, %v2291
      %2311 = vst.msk [vmem:[%s333 + $0xa8] sm:$0xff] %vm1101, %v2293
      %2312 = vst.msk [vmem:[%s333 + $0xb0] sm:$0xff] %vm1101, %v2295
      %2313 = vst.msk [vmem:[%s333 + $0xb8] sm:$0xff] %vm1101, %v2297
      %v2314 = vld [vmem:[%s6 + $0x80] sm:$0xff]
      %v2315 = vld [vmem:[%s6 + $0x88] sm:$0xff]
      %v2316 = vld [vmem:[%s6 + $0x90] sm:$0xff]
      %v2317 = vld [vmem:[%s6 + $0x98] sm:$0xff]
      %v2318 = vld [vmem:[%s6 + $0xa0] sm:$0xff]
      %v2319 = vld [vmem:[%s6 + $0xa8] sm:$0xff]
      %v2320 = vld [vmem:[%s6 + $0xb0] sm:$0xff]
      %v2321 = vld [vmem:[%s6 + $0xb8] sm:$0xff]
      %2330 = vrot.lane.b32.xlu0 %v2314, 30
      %v2331 = vpop.permute.xlu0 %2330
      %2332 = vrot.lane.b32.xlu0 %v2315, 30
      %v2333 = vpop.permute.xlu0 %2332
      %2334 = vrot.lane.b32.xlu0 %v2316, 30
      %v2335 = vpop.permute.xlu0 %2334
      %2336 = vrot.lane.b32.xlu0 %v2317, 30
      %v2337 = vpop.permute.xlu0 %2336
      %2338 = vrot.lane.b32.xlu0 %v2318, 30
      %v2339 = vpop.permute.xlu0 %2338
      %2340 = vrot.lane.b32.xlu0 %v2319, 30
      %v2341 = vpop.permute.xlu0 %2340
      %2342 = vrot.lane.b32.xlu0 %v2320, 30
      %v2343 = vpop.permute.xlu0 %2342
      %2344 = vrot.lane.b32.xlu0 %v2321, 30
      %v2345 = vpop.permute.xlu0 %2344
      %v2354 = vmul.f32 %v1310, %v2331
      %v2355 = vmul.f32 %v1311, %v2333
      %v2356 = vmul.f32 %v1312, %v2335
      %v2357 = vmul.f32 %v1313, %v2337
      %v2358 = vmul.f32 %v1314, %v2339
      %v2359 = vmul.f32 %v1315, %v2341
      %v2360 = vmul.f32 %v1316, %v2343
      %v2361 = vmul.f32 %v1317, %v2345
      %2362 = vrot.lane.b32.xlu0 %v2314, 32
      %v2363 = vpop.permute.xlu0 %2362
      %2364 = vrot.lane.b32.xlu0 %v2315, 32
      %v2365 = vpop.permute.xlu0 %2364
      %2366 = vrot.lane.b32.xlu0 %v2316, 32
      %v2367 = vpop.permute.xlu0 %2366
      %2368 = vrot.lane.b32.xlu0 %v2317, 32
      %v2369 = vpop.permute.xlu0 %2368
      %2370 = vrot.lane.b32.xlu0 %v2318, 32
      %v2371 = vpop.permute.xlu0 %2370
      %2372 = vrot.lane.b32.xlu0 %v2319, 32
      %v2373 = vpop.permute.xlu0 %2372
      %2374 = vrot.lane.b32.xlu0 %v2320, 32
      %v2375 = vpop.permute.xlu0 %2374
      %2376 = vrot.lane.b32.xlu0 %v2321, 32
      %v2377 = vpop.permute.xlu0 %2376
      %v2386 = vadd.f32 %v2354, %v2363
      %v2387 = vadd.f32 %v2355, %v2365
      %v2388 = vadd.f32 %v2356, %v2367
      %v2389 = vadd.f32 %v2357, %v2369
      %v2390 = vadd.f32 %v2358, %v2371
      %v2391 = vadd.f32 %v2359, %v2373
      %v2392 = vadd.f32 %v2360, %v2375
      %v2393 = vadd.f32 %v2361, %v2377
      %v2394 = vmul.f32 %v1399, %v2363
      %v2395 = vmul.f32 %v1401, %v2365
      %v2396 = vmul.f32 %v1403, %v2367
      %v2397 = vmul.f32 %v1405, %v2369
      %v2398 = vmul.f32 %v1407, %v2371
      %v2399 = vmul.f32 %v1409, %v2373
      %v2400 = vmul.f32 %v1411, %v2375
      %v2401 = vmul.f32 %v1413, %v2377
      %v2402 = vmul.f32 %v2394, 0.5
      %v2403 = vmul.f32 %v2395, 0.5
      %v2404 = vmul.f32 %v2396, 0.5
      %v2405 = vmul.f32 %v2397, 0.5
      %v2406 = vmul.f32 %v2398, 0.5
      %v2407 = vmul.f32 %v2399, 0.5
      %v2408 = vmul.f32 %v2400, 0.5
      %v2409 = vmul.f32 %v2401, 0.5
      %2418 = vrot.lane.b32.xlu0 %v2402, 126
      %v2419 = vpop.permute.xlu0 %2418
      %2420 = vrot.lane.b32.xlu0 %v2403, 126
      %v2421 = vpop.permute.xlu0 %2420
      %2422 = vrot.lane.b32.xlu0 %v2404, 126
      %v2423 = vpop.permute.xlu0 %2422
      %2424 = vrot.lane.b32.xlu0 %v2405, 126
      %v2425 = vpop.permute.xlu0 %2424
      %2426 = vrot.lane.b32.xlu0 %v2406, 126
      %v2427 = vpop.permute.xlu0 %2426
      %2428 = vrot.lane.b32.xlu0 %v2407, 126
      %v2429 = vpop.permute.xlu0 %2428
      %2430 = vrot.lane.b32.xlu0 %v2408, 126
      %v2431 = vpop.permute.xlu0 %2430
      %2432 = vrot.lane.b32.xlu0 %v2409, 126
      %v2433 = vpop.permute.xlu0 %2432
      %v2442 = vsub.f32 %v2386, %v2419
      %v2443 = vsub.f32 %v2387, %v2421
      %v2444 = vsub.f32 %v2388, %v2423
      %v2445 = vsub.f32 %v2389, %v2425
      %v2446 = vsub.f32 %v2390, %v2427
      %v2447 = vsub.f32 %v2391, %v2429
      %v2448 = vsub.f32 %v2392, %v2431
      %v2449 = vsub.f32 %v2393, %v2433
      %v2450 = vadd.f32 %v2386, %v2419
      %v2451 = vadd.f32 %v2387, %v2421
      %v2452 = vadd.f32 %v2388, %v2423
      %v2453 = vadd.f32 %v2389, %v2425
      %v2454 = vadd.f32 %v2390, %v2427
      %v2455 = vadd.f32 %v2391, %v2429
      %v2456 = vadd.f32 %v2392, %v2431
      %v2457 = vadd.f32 %v2393, %v2433
      %2466 = vrot.lane.b32.xlu0 %v2442, 96
      %v2467 = vpop.permute.xlu0 %2466
      %2468 = vrot.lane.b32.xlu0 %v2443, 96
      %v2469 = vpop.permute.xlu0 %2468
      %2470 = vrot.lane.b32.xlu0 %v2444, 96
      %v2471 = vpop.permute.xlu0 %2470
      %2472 = vrot.lane.b32.xlu0 %v2445, 96
      %v2473 = vpop.permute.xlu0 %2472
      %2474 = vrot.lane.b32.xlu0 %v2446, 96
      %v2475 = vpop.permute.xlu0 %2474
      %2476 = vrot.lane.b32.xlu0 %v2447, 96
      %v2477 = vpop.permute.xlu0 %2476
      %2478 = vrot.lane.b32.xlu0 %v2448, 96
      %v2479 = vpop.permute.xlu0 %2478
      %2480 = vrot.lane.b32.xlu0 %v2449, 96
      %v2481 = vpop.permute.xlu0 %2480
      %2498 = vrot.lane.b32.xlu0 %v2450, 98
      %v2499 = vpop.permute.xlu0 %2498
      %2500 = vrot.lane.b32.xlu0 %v2451, 98
      %v2501 = vpop.permute.xlu0 %2500
      %2502 = vrot.lane.b32.xlu0 %v2452, 98
      %v2503 = vpop.permute.xlu0 %2502
      %2504 = vrot.lane.b32.xlu0 %v2453, 98
      %v2505 = vpop.permute.xlu0 %2504
      %2506 = vrot.lane.b32.xlu0 %v2454, 98
      %v2507 = vpop.permute.xlu0 %2506
      %2508 = vrot.lane.b32.xlu0 %v2455, 98
      %v2509 = vpop.permute.xlu0 %2508
      %2510 = vrot.lane.b32.xlu0 %v2456, 98
      %v2511 = vpop.permute.xlu0 %2510
      %2512 = vrot.lane.b32.xlu0 %v2457, 98
      %v2513 = vpop.permute.xlu0 %2512
      %v2522 = vsel %vm1542, %v2467, %v2499
      %v2523 = vsel %vm1542, %v2469, %v2501
      %v2524 = vsel %vm1542, %v2471, %v2503
      %v2525 = vsel %vm1542, %v2473, %v2505
      %v2526 = vsel %vm1542, %v2475, %v2507
      %v2527 = vsel %vm1542, %v2477, %v2509
      %v2528 = vsel %vm1542, %v2479, %v2511
      %v2529 = vsel %vm1542, %v2481, %v2513
      %2530 = vst.msk [vmem:[%s338 + $0x80] sm:$0xff] %vm1551, %v2522
      %2531 = vst.msk [vmem:[%s338 + $0x88] sm:$0xff] %vm1551, %v2523
      %2532 = vst.msk [vmem:[%s338 + $0x90] sm:$0xff] %vm1551, %v2524
      %2533 = vst.msk [vmem:[%s338 + $0x98] sm:$0xff] %vm1551, %v2525
      %2534 = vst.msk [vmem:[%s338 + $0xa0] sm:$0xff] %vm1551, %v2526
      %2535 = vst.msk [vmem:[%s338 + $0xa8] sm:$0xff] %vm1551, %v2527
      %2536 = vst.msk [vmem:[%s338 + $0xb0] sm:$0xff] %vm1551, %v2528
      %2537 = vst.msk [vmem:[%s338 + $0xb8] sm:$0xff] %vm1551, %v2529
      %vm2538 = vcmask 195728
      %v2539 = vsel %vm2538, %v1082, -inf
      %2540 = vmax.xlane.f32.xlu0 %v2539
      %v2541 = vpop.xlane.xlu0 %2540
      %v2542 = vsel %vm2538, %v1084, -inf
      %2543 = vmax.xlane.f32.xlu0 %v2542
      %v2544 = vpop.xlane.xlu0 %2543
      %v2545 = vsel %vm2538, %v1087, -inf
      %2546 = vmax.xlane.f32.xlu0 %v2545
      %v2547 = vpop.xlane.xlu0 %2546
      %v2548 = vsel %vm2538, %v1089, -inf
      %2549 = vmax.xlane.f32.xlu0 %v2548
      %v2550 = vpop.xlane.xlu0 %2549
      %v2551 = vsel %vm2538, %v1092, -inf
      %2552 = vmax.xlane.f32.xlu0 %v2551
      %v2553 = vpop.xlane.xlu0 %2552
      %v2554 = vsel %vm2538, %v1094, -inf
      %2555 = vmax.xlane.f32.xlu0 %v2554
      %v2556 = vpop.xlane.xlu0 %2555
      %v2557 = vsel %vm2538, %v1097, -inf
      %2558 = vmax.xlane.f32.xlu0 %v2557
      %v2559 = vpop.xlane.xlu0 %2558
      %v2560 = vsel %vm2538, %v1099, -inf
      %2561 = vmax.xlane.f32.xlu0 %v2560
      %v2562 = vpop.xlane.xlu0 %2561
      %v2563 = vsub.f32 %v1082, %v2541
      %v2564 = vsub.f32 %v1084, %v2544
      %v2565 = vsub.f32 %v1087, %v2547
      %v2566 = vsub.f32 %v1089, %v2550
      %v2567 = vsub.f32 %v1092, %v2553
      %v2568 = vsub.f32 %v1094, %v2556
      %v2569 = vsub.f32 %v1097, %v2559
      %v2570 = vsub.f32 %v1099, %v2562
      %v2571 = vmul.f32 %v2563, 1.442695
      %v2572 = vpow.pop %v2571
      %v2573 = vmul.f32 %v2564, 1.442695
      %v2574 = vpow.pop %v2573
      %v2575 = vmul.f32 %v2565, 1.442695
      %v2576 = vpow.pop %v2575
      %v2577 = vmul.f32 %v2566, 1.442695
      %v2578 = vpow.pop %v2577
      %v2579 = vmul.f32 %v2567, 1.442695
      %v2580 = vpow.pop %v2579
      %v2581 = vmul.f32 %v2568, 1.442695
      %v2582 = vpow.pop %v2581
      %v2583 = vmul.f32 %v2569, 1.442695
      %v2584 = vpow.pop %v2583
      %v2585 = vmul.f32 %v2570, 1.442695
      %v2586 = vpow.pop %v2585
      %2595 = vrot.lane.b32.xlu0 %v2572, 110
      %v2596 = vpop.permute.xlu0 %2595
      %2597 = vrot.lane.b32.xlu0 %v2574, 110
      %v2598 = vpop.permute.xlu0 %2597
      %2599 = vrot.lane.b32.xlu0 %v2576, 110
      %v2600 = vpop.permute.xlu0 %2599
      %2601 = vrot.lane.b32.xlu0 %v2578, 110
      %v2602 = vpop.permute.xlu0 %2601
      %2603 = vrot.lane.b32.xlu0 %v2580, 110
      %v2604 = vpop.permute.xlu0 %2603
      %2605 = vrot.lane.b32.xlu0 %v2582, 110
      %v2606 = vpop.permute.xlu0 %2605
      %2607 = vrot.lane.b32.xlu0 %v2584, 110
      %v2608 = vpop.permute.xlu0 %2607
      %2609 = vrot.lane.b32.xlu0 %v2586, 110
      %v2610 = vpop.permute.xlu0 %2609
      %v2619 = vsel %vm1101, %v2596, 0.0
      %2620 = vadd.xlane.f32.xlu0 %v2619
      %v2621 = vpop.xlane.xlu0 %2620
      %v2622 = vsel %vm1101, %v2598, 0.0
      %2623 = vadd.xlane.f32.xlu0 %v2622
      %v2624 = vpop.xlane.xlu0 %2623
      %v2625 = vsel %vm1101, %v2600, 0.0
      %2626 = vadd.xlane.f32.xlu0 %v2625
      %v2627 = vpop.xlane.xlu0 %2626
      %v2628 = vsel %vm1101, %v2602, 0.0
      %2629 = vadd.xlane.f32.xlu0 %v2628
      %v2630 = vpop.xlane.xlu0 %2629
      %v2631 = vsel %vm1101, %v2604, 0.0
      %2632 = vadd.xlane.f32.xlu0 %v2631
      %v2633 = vpop.xlane.xlu0 %2632
      %v2634 = vsel %vm1101, %v2606, 0.0
      %2635 = vadd.xlane.f32.xlu0 %v2634
      %v2636 = vpop.xlane.xlu0 %2635
      %v2637 = vsel %vm1101, %v2608, 0.0
      %2638 = vadd.xlane.f32.xlu0 %v2637
      %v2639 = vpop.xlane.xlu0 %2638
      %v2640 = vsel %vm1101, %v2610, 0.0
      %2641 = vadd.xlane.f32.xlu0 %v2640
      %v2642 = vpop.xlane.xlu0 %2641
      %v2643 = vrcp.pop %v2621
      %v2644 = vmul.f32 %v2621, %v2643
      %v2645 = vsub.f32 1.0, %v2644
      %v2646 = vmul.f32 %v2643, %v2645
      %v2647 = vadd.f32 %v2643, %v2646
      %vm2648 = vweird.f32 %v2621
      %vm2649 = vweird.f32 %v2643
      %vm2650 = vmor %vm2648, %vm2649
      %v2651 = vsel %vm2650, %v2643, %v2647
      %v2652 = vand.u32 2147483647, %v2621
      %vm2653 = vcmp.eq.f32.partialorder %v2652, 8.507059e+37
      %v2654 = vand.u32 %v2621, 2147483648
      %v2655 = vor.u32 1.1754944e-38, %v2654
      %v2656 = vsel %vm2653, %v2655, %v2651
      %v2657 = vrcp.pop %v2624
      %v2658 = vmul.f32 %v2624, %v2657
      %v2659 = vsub.f32 1.0, %v2658
      %v2660 = vmul.f32 %v2657, %v2659
      %v2661 = vadd.f32 %v2657, %v2660
      %vm2662 = vweird.f32 %v2624
      %vm2663 = vweird.f32 %v2657
      %vm2664 = vmor %vm2662, %vm2663
      %v2665 = vsel %vm2664, %v2657, %v2661
      %v2666 = vand.u32 2147483647, %v2624
      %vm2667 = vcmp.eq.f32.partialorder %v2666, 8.507059e+37
      %v2668 = vand.u32 %v2624, 2147483648
      %v2669 = vor.u32 1.1754944e-38, %v2668
      %v2670 = vsel %vm2667, %v2669, %v2665
      %v2671 = vrcp.pop %v2627
      %v2672 = vmul.f32 %v2627, %v2671
      %v2673 = vsub.f32 1.0, %v2672
      %v2674 = vmul.f32 %v2671, %v2673
      %v2675 = vadd.f32 %v2671, %v2674
      %vm2676 = vweird.f32 %v2627
      %vm2677 = vweird.f32 %v2671
      %vm2678 = vmor %vm2676, %vm2677
      %v2679 = vsel %vm2678, %v2671, %v2675
      %v2680 = vand.u32 2147483647, %v2627
      %vm2681 = vcmp.eq.f32.partialorder %v2680, 8.507059e+37
      %v2682 = vand.u32 %v2627, 2147483648
      %v2683 = vor.u32 1.1754944e-38, %v2682
      %v2684 = vsel %vm2681, %v2683, %v2679
      %v2685 = vrcp.pop %v2630
      %v2686 = vmul.f32 %v2630, %v2685
      %v2687 = vsub.f32 1.0, %v2686
      %v2688 = vmul.f32 %v2685, %v2687
      %v2689 = vadd.f32 %v2685, %v2688
      %vm2690 = vweird.f32 %v2630
      %vm2691 = vweird.f32 %v2685
      %vm2692 = vmor %vm2690, %vm2691
      %v2693 = vsel %vm2692, %v2685, %v2689
      %v2694 = vand.u32 2147483647, %v2630
      %vm2695 = vcmp.eq.f32.partialorder %v2694, 8.507059e+37
      %v2696 = vand.u32 %v2630, 2147483648
      %v2697 = vor.u32 1.1754944e-38, %v2696
      %v2698 = vsel %vm2695, %v2697, %v2693
      %v2699 = vrcp.pop %v2633
      %v2700 = vmul.f32 %v2633, %v2699
      %v2701 = vsub.f32 1.0, %v2700
      %v2702 = vmul.f32 %v2699, %v2701
      %v2703 = vadd.f32 %v2699, %v2702
      %vm2704 = vweird.f32 %v2633
      %vm2705 = vweird.f32 %v2699
      %vm2706 = vmor %vm2704, %vm2705
      %v2707 = vsel %vm2706, %v2699, %v2703
      %v2708 = vand.u32 2147483647, %v2633
      %vm2709 = vcmp.eq.f32.partialorder %v2708, 8.507059e+37
      %v2710 = vand.u32 %v2633, 2147483648
      %v2711 = vor.u32 1.1754944e-38, %v2710
      %v2712 = vsel %vm2709, %v2711, %v2707
      %v2713 = vrcp.pop %v2636
      %v2714 = vmul.f32 %v2636, %v2713
      %v2715 = vsub.f32 1.0, %v2714
      %v2716 = vmul.f32 %v2713, %v2715
      %v2717 = vadd.f32 %v2713, %v2716
      %vm2718 = vweird.f32 %v2636
      %vm2719 = vweird.f32 %v2713
      %vm2720 = vmor %vm2718, %vm2719
      %v2721 = vsel %vm2720, %v2713, %v2717
      %v2722 = vand.u32 2147483647, %v2636
      %vm2723 = vcmp.eq.f32.partialorder %v2722, 8.507059e+37
      %v2724 = vand.u32 %v2636, 2147483648
      %v2725 = vor.u32 1.1754944e-38, %v2724
      %v2726 = vsel %vm2723, %v2725, %v2721
      %v2727 = vrcp.pop %v2639
      %v2728 = vmul.f32 %v2639, %v2727
      %v2729 = vsub.f32 1.0, %v2728
      %v2730 = vmul.f32 %v2727, %v2729
      %v2731 = vadd.f32 %v2727, %v2730
      %vm2732 = vweird.f32 %v2639
      %vm2733 = vweird.f32 %v2727
      %vm2734 = vmor %vm2732, %vm2733
      %v2735 = vsel %vm2734, %v2727, %v2731
      %v2736 = vand.u32 2147483647, %v2639
      %vm2737 = vcmp.eq.f32.partialorder %v2736, 8.507059e+37
      %v2738 = vand.u32 %v2639, 2147483648
      %v2739 = vor.u32 1.1754944e-38, %v2738
      %v2740 = vsel %vm2737, %v2739, %v2735
      %v2741 = vrcp.pop %v2642
      %v2742 = vmul.f32 %v2642, %v2741
      %v2743 = vsub.f32 1.0, %v2742
      %v2744 = vmul.f32 %v2741, %v2743
      %v2745 = vadd.f32 %v2741, %v2744
      %vm2746 = vweird.f32 %v2642
      %vm2747 = vweird.f32 %v2741
      %vm2748 = vmor %vm2746, %vm2747
      %v2749 = vsel %vm2748, %v2741, %v2745
      %v2750 = vand.u32 2147483647, %v2642
      %vm2751 = vcmp.eq.f32.partialorder %v2750, 8.507059e+37
      %v2752 = vand.u32 %v2642, 2147483648
      %v2753 = vor.u32 1.1754944e-38, %v2752
      %v2754 = vsel %vm2751, %v2753, %v2749
      %v2755 = vmul.f32 %v2572, %v2656
      %v2756 = vmul.f32 %v2574, %v2670
      %v2757 = vmul.f32 %v2576, %v2684
      %v2758 = vmul.f32 %v2578, %v2698
      %v2759 = vmul.f32 %v2580, %v2712
      %v2760 = vmul.f32 %v2582, %v2726
      %v2761 = vmul.f32 %v2584, %v2740
      %v2762 = vmul.f32 %v2586, %v2754
      %2771 = vrot.lane.b32.xlu0 %v2755, 110
      %v2772 = vpop.permute.xlu0 %2771
      %2773 = vrot.lane.b32.xlu0 %v2756, 110
      %v2774 = vpop.permute.xlu0 %2773
      %2775 = vrot.lane.b32.xlu0 %v2757, 110
      %v2776 = vpop.permute.xlu0 %2775
      %2777 = vrot.lane.b32.xlu0 %v2758, 110
      %v2778 = vpop.permute.xlu0 %2777
      %2779 = vrot.lane.b32.xlu0 %v2759, 110
      %v2780 = vpop.permute.xlu0 %2779
      %2781 = vrot.lane.b32.xlu0 %v2760, 110
      %v2782 = vpop.permute.xlu0 %2781
      %2783 = vrot.lane.b32.xlu0 %v2761, 110
      %v2784 = vpop.permute.xlu0 %2783
      %2785 = vrot.lane.b32.xlu0 %v2762, 110
      %v2786 = vpop.permute.xlu0 %2785
      %2795 = vst.msk [vmem:[%s333 + $0xc0] sm:$0xff] %vm1101, %v2772
      %2796 = vst.msk [vmem:[%s333 + $0xc8] sm:$0xff] %vm1101, %v2774
      %2797 = vst.msk [vmem:[%s333 + $0xd0] sm:$0xff] %vm1101, %v2776
      %2798 = vst.msk [vmem:[%s333 + $0xd8] sm:$0xff] %vm1101, %v2778
      %2799 = vst.msk [vmem:[%s333 + $0xe0] sm:$0xff] %vm1101, %v2780
      %2800 = vst.msk [vmem:[%s333 + $0xe8] sm:$0xff] %vm1101, %v2782
      %2801 = vst.msk [vmem:[%s333 + $0xf0] sm:$0xff] %vm1101, %v2784
      %2802 = vst.msk [vmem:[%s333 + $0xf8] sm:$0xff] %vm1101, %v2786
      %v2803 = vld [vmem:[%s6 + $0xc0] sm:$0xff]
      %v2804 = vld [vmem:[%s6 + $0xc8] sm:$0xff]
      %v2805 = vld [vmem:[%s6 + $0xd0] sm:$0xff]
      %v2806 = vld [vmem:[%s6 + $0xd8] sm:$0xff]
      %v2807 = vld [vmem:[%s6 + $0xe0] sm:$0xff]
      %v2808 = vld [vmem:[%s6 + $0xe8] sm:$0xff]
      %v2809 = vld [vmem:[%s6 + $0xf0] sm:$0xff]
      %v2810 = vld [vmem:[%s6 + $0xf8] sm:$0xff]
      %2819 = vrot.lane.b32.xlu0 %v2803, 34
      %v2820 = vpop.permute.xlu0 %2819
      %2821 = vrot.lane.b32.xlu0 %v2804, 34
      %v2822 = vpop.permute.xlu0 %2821
      %2823 = vrot.lane.b32.xlu0 %v2805, 34
      %v2824 = vpop.permute.xlu0 %2823
      %2825 = vrot.lane.b32.xlu0 %v2806, 34
      %v2826 = vpop.permute.xlu0 %2825
      %2827 = vrot.lane.b32.xlu0 %v2807, 34
      %v2828 = vpop.permute.xlu0 %2827
      %2829 = vrot.lane.b32.xlu0 %v2808, 34
      %v2830 = vpop.permute.xlu0 %2829
      %2831 = vrot.lane.b32.xlu0 %v2809, 34
      %v2832 = vpop.permute.xlu0 %2831
      %2833 = vrot.lane.b32.xlu0 %v2810, 34
      %v2834 = vpop.permute.xlu0 %2833
      %v2843 = vmul.f32 %v1310, %v2820
      %v2844 = vmul.f32 %v1311, %v2822
      %v2845 = vmul.f32 %v1312, %v2824
      %v2846 = vmul.f32 %v1313, %v2826
      %v2847 = vmul.f32 %v1314, %v2828
      %v2848 = vmul.f32 %v1315, %v2830
      %v2849 = vmul.f32 %v1316, %v2832
      %v2850 = vmul.f32 %v1317, %v2834
      %2851 = vrot.lane.b32.xlu0 %v2803, 36
      %v2852 = vpop.permute.xlu0 %2851
      %2853 = vrot.lane.b32.xlu0 %v2804, 36
      %v2854 = vpop.permute.xlu0 %2853
      %2855 = vrot.lane.b32.xlu0 %v2805, 36
      %v2856 = vpop.permute.xlu0 %2855
      %2857 = vrot.lane.b32.xlu0 %v2806, 36
      %v2858 = vpop.permute.xlu0 %2857
      %2859 = vrot.lane.b32.xlu0 %v2807, 36
      %v2860 = vpop.permute.xlu0 %2859
      %2861 = vrot.lane.b32.xlu0 %v2808, 36
      %v2862 = vpop.permute.xlu0 %2861
      %2863 = vrot.lane.b32.xlu0 %v2809, 36
      %v2864 = vpop.permute.xlu0 %2863
      %2865 = vrot.lane.b32.xlu0 %v2810, 36
      %v2866 = vpop.permute.xlu0 %2865
      %v2875 = vadd.f32 %v2843, %v2852
      %v2876 = vadd.f32 %v2844, %v2854
      %v2877 = vadd.f32 %v2845, %v2856
      %v2878 = vadd.f32 %v2846, %v2858
      %v2879 = vadd.f32 %v2847, %v2860
      %v2880 = vadd.f32 %v2848, %v2862
      %v2881 = vadd.f32 %v2849, %v2864
      %v2882 = vadd.f32 %v2850, %v2866
      %v2883 = vmul.f32 %v1399, %v2852
      %v2884 = vmul.f32 %v1401, %v2854
      %v2885 = vmul.f32 %v1403, %v2856
      %v2886 = vmul.f32 %v1405, %v2858
      %v2887 = vmul.f32 %v1407, %v2860
      %v2888 = vmul.f32 %v1409, %v2862
      %v2889 = vmul.f32 %v1411, %v2864
      %v2890 = vmul.f32 %v1413, %v2866
      %v2891 = vmul.f32 %v2883, 0.5
      %v2892 = vmul.f32 %v2884, 0.5
      %v2893 = vmul.f32 %v2885, 0.5
      %v2894 = vmul.f32 %v2886, 0.5
      %v2895 = vmul.f32 %v2887, 0.5
      %v2896 = vmul.f32 %v2888, 0.5
      %v2897 = vmul.f32 %v2889, 0.5
      %v2898 = vmul.f32 %v2890, 0.5
      %2907 = vrot.lane.b32.xlu0 %v2891, 126
      %v2908 = vpop.permute.xlu0 %2907
      %2909 = vrot.lane.b32.xlu0 %v2892, 126
      %v2910 = vpop.permute.xlu0 %2909
      %2911 = vrot.lane.b32.xlu0 %v2893, 126
      %v2912 = vpop.permute.xlu0 %2911
      %2913 = vrot.lane.b32.xlu0 %v2894, 126
      %v2914 = vpop.permute.xlu0 %2913
      %2915 = vrot.lane.b32.xlu0 %v2895, 126
      %v2916 = vpop.permute.xlu0 %2915
      %2917 = vrot.lane.b32.xlu0 %v2896, 126
      %v2918 = vpop.permute.xlu0 %2917
      %2919 = vrot.lane.b32.xlu0 %v2897, 126
      %v2920 = vpop.permute.xlu0 %2919
      %2921 = vrot.lane.b32.xlu0 %v2898, 126
      %v2922 = vpop.permute.xlu0 %2921
      %v2931 = vsub.f32 %v2875, %v2908
      %v2932 = vsub.f32 %v2876, %v2910
      %v2933 = vsub.f32 %v2877, %v2912
      %v2934 = vsub.f32 %v2878, %v2914
      %v2935 = vsub.f32 %v2879, %v2916
      %v2936 = vsub.f32 %v2880, %v2918
      %v2937 = vsub.f32 %v2881, %v2920
      %v2938 = vsub.f32 %v2882, %v2922
      %v2939 = vadd.f32 %v2875, %v2908
      %v2940 = vadd.f32 %v2876, %v2910
      %v2941 = vadd.f32 %v2877, %v2912
      %v2942 = vadd.f32 %v2878, %v2914
      %v2943 = vadd.f32 %v2879, %v2916
      %v2944 = vadd.f32 %v2880, %v2918
      %v2945 = vadd.f32 %v2881, %v2920
      %v2946 = vadd.f32 %v2882, %v2922
      %2955 = vrot.lane.b32.xlu0 %v2931, 92
      %v2956 = vpop.permute.xlu0 %2955
      %2957 = vrot.lane.b32.xlu0 %v2932, 92
      %v2958 = vpop.permute.xlu0 %2957
      %2959 = vrot.lane.b32.xlu0 %v2933, 92
      %v2960 = vpop.permute.xlu0 %2959
      %2961 = vrot.lane.b32.xlu0 %v2934, 92
      %v2962 = vpop.permute.xlu0 %2961
      %2963 = vrot.lane.b32.xlu0 %v2935, 92
      %v2964 = vpop.permute.xlu0 %2963
      %2965 = vrot.lane.b32.xlu0 %v2936, 92
      %v2966 = vpop.permute.xlu0 %2965
      %2967 = vrot.lane.b32.xlu0 %v2937, 92
      %v2968 = vpop.permute.xlu0 %2967
      %2969 = vrot.lane.b32.xlu0 %v2938, 92
      %v2970 = vpop.permute.xlu0 %2969
      %2987 = vrot.lane.b32.xlu0 %v2939, 94
      %v2988 = vpop.permute.xlu0 %2987
      %2989 = vrot.lane.b32.xlu0 %v2940, 94
      %v2990 = vpop.permute.xlu0 %2989
      %2991 = vrot.lane.b32.xlu0 %v2941, 94
      %v2992 = vpop.permute.xlu0 %2991
      %2993 = vrot.lane.b32.xlu0 %v2942, 94
      %v2994 = vpop.permute.xlu0 %2993
      %2995 = vrot.lane.b32.xlu0 %v2943, 94
      %v2996 = vpop.permute.xlu0 %2995
      %2997 = vrot.lane.b32.xlu0 %v2944, 94
      %v2998 = vpop.permute.xlu0 %2997
      %2999 = vrot.lane.b32.xlu0 %v2945, 94
      %v3000 = vpop.permute.xlu0 %2999
      %3001 = vrot.lane.b32.xlu0 %v2946, 94
      %v3002 = vpop.permute.xlu0 %3001
      %v3011 = vsel %vm1542, %v2956, %v2988
      %v3012 = vsel %vm1542, %v2958, %v2990
      %v3013 = vsel %vm1542, %v2960, %v2992
      %v3014 = vsel %vm1542, %v2962, %v2994
      %v3015 = vsel %vm1542, %v2964, %v2996
      %v3016 = vsel %vm1542, %v2966, %v2998
      %v3017 = vsel %vm1542, %v2968, %v3000
      %v3018 = vsel %vm1542, %v2970, %v3002
      %3019 = vst.msk [vmem:[%s338 + $0xc0] sm:$0xff] %vm1551, %v3011
      %3020 = vst.msk [vmem:[%s338 + $0xc8] sm:$0xff] %vm1551, %v3012
      %3021 = vst.msk [vmem:[%s338 + $0xd0] sm:$0xff] %vm1551, %v3013
      %3022 = vst.msk [vmem:[%s338 + $0xd8] sm:$0xff] %vm1551, %v3014
      %3023 = vst.msk [vmem:[%s338 + $0xe0] sm:$0xff] %vm1551, %v3015
      %3024 = vst.msk [vmem:[%s338 + $0xe8] sm:$0xff] %vm1551, %v3016
      %3025 = vst.msk [vmem:[%s338 + $0xf0] sm:$0xff] %vm1551, %v3017
      %3026 = vst.msk [vmem:[%s338 + $0xf8] sm:$0xff] %vm1551, %v3018
      %v3027 = vld [vmem:[%s328] sm:$0x3f]
      %vm3028 = vcmask 257024
      %3029 = vst.msk [vmem:[#allocation2] sm:$0xf] %vm3028, %v3027
      %v3031 = vrot.slane %v3027, 1
      %3032 = vrot.lane.b32.xlu0 %v3031, 32
      %v3033 = vpop.permute.xlu0 %3032
      %vm3035 = vcmask 519424
      %3036 = vst.msk [vmem:[#allocation2] sm:$0xf] %vm3035, %v3033
      %v3037 = vrot.slane %v3027, 2
      %3038 = vrot.lane.b32.xlu0 %v3037, 64
      %v3039 = vpop.permute.xlu0 %3038
      %vm3041 = vcmask 781824
      %3042 = vst.msk [vmem:[#allocation2] sm:$0xf] %vm3041, %v3039
      %v3043 = vld [vmem:[%s328 + $0x6] sm:$0x3f]
      %v3045 = vrot.slane %v3043, 4
      %vm3047 = vcmask 261124
      %3048 = vst.msk [vmem:[#allocation2] sm:$0xf0] %vm3047, %v3045
      %v3049 = vrot.slane %v3043, 5
      %3050 = vrot.lane.b32.xlu0 %v3049, 32
      %v3051 = vpop.permute.xlu0 %3050
      %vm3053 = vcmask 523524
      %3054 = vst.msk [vmem:[#allocation2] sm:$0xf0] %vm3053, %v3051
      %v3055 = vrot.slane %v3043, 6
      %3056 = vrot.lane.b32.xlu0 %v3055, 64
      %v3057 = vpop.permute.xlu0 %3056
      %vm3059 = vcmask 785924
      %3060 = vst.msk [vmem:[#allocation2] sm:$0xf0] %vm3059, %v3057
      %v3061 = vld [vmem:[%s328 + $0xc] sm:$0x3f]
      %3062 = vst.msk [vmem:[#allocation2 + $0x18] sm:$0xf] %vm3028, %v3061
      %v3064 = vrot.slane %v3061, 1
      %3065 = vrot.lane.b32.xlu0 %v3064, 32
      %v3066 = vpop.permute.xlu0 %3065
      %3068 = vst.msk [vmem:[#allocation2 + $0x18] sm:$0xf] %vm3035, %v3066
      %v3069 = vrot.slane %v3061, 2
      %3070 = vrot.lane.b32.xlu0 %v3069, 64
      %v3071 = vpop.permute.xlu0 %3070
      %3073 = vst.msk [vmem:[#allocation2 + $0x18] sm:$0xf] %vm3041, %v3071
      %v3074 = vld [vmem:[%s328 + $0x12] sm:$0x3f]
      %v3076 = vrot.slane %v3074, 4
      %3078 = vst.msk [vmem:[#allocation2 + $0x18] sm:$0xf0] %vm3047, %v3076
      %v3079 = vrot.slane %v3074, 5
      %3080 = vrot.lane.b32.xlu0 %v3079, 32
      %v3081 = vpop.permute.xlu0 %3080
      %3083 = vst.msk [vmem:[#allocation2 + $0x18] sm:$0xf0] %vm3053, %v3081
      %v3084 = vrot.slane %v3074, 6
      %3085 = vrot.lane.b32.xlu0 %v3084, 64
      %v3086 = vpop.permute.xlu0 %3085
      %3088 = vst.msk [vmem:[#allocation2 + $0x18] sm:$0xf0] %vm3059, %v3086
      %v3089 = vld [vmem:[%s328 + $0x6] sm:$0x3f]
      %3091 = vrot.lane.b32.xlu0 %v3089, 96
      %v3092 = vpop.permute.xlu0 %3091
      %vm3094 = vcmask 1044224
      %3095 = vst.msk [vmem:[#allocation2] sm:$0xf] %vm3094, %v3092
      %v3096 = vrot.slane %v3089, 1
      %3098 = vst.msk [vmem:[#allocation2 + $0x8] sm:$0xf] %vm3028, %v3096
      %v3099 = vrot.slane %v3089, 2
      %3100 = vrot.lane.b32.xlu0 %v3099, 32
      %v3101 = vpop.permute.xlu0 %3100
      %3103 = vst.msk [vmem:[#allocation2 + $0x8] sm:$0xf] %vm3035, %v3101
      %v3104 = vld [vmem:[%s328 + $0xc] sm:$0x3f]
      %v3106 = vrot.slane %v3104, 4
      %3107 = vrot.lane.b32.xlu0 %v3106, 96
      %v3108 = vpop.permute.xlu0 %3107
      %vm3110 = vcmask 1048324
      %3111 = vst.msk [vmem:[#allocation2] sm:$0xf0] %vm3110, %v3108
      %v3112 = vrot.slane %v3104, 5
      %3114 = vst.msk [vmem:[#allocation2 + $0x8] sm:$0xf0] %vm3047, %v3112
      %v3115 = vrot.slane %v3104, 6
      %3116 = vrot.lane.b32.xlu0 %v3115, 32
      %v3117 = vpop.permute.xlu0 %3116
      %3119 = vst.msk [vmem:[#allocation2 + $0x8] sm:$0xf0] %vm3053, %v3117
      %v3120 = vld [vmem:[%s328 + $0x12] sm:$0x3f]
      %3122 = vrot.lane.b32.xlu0 %v3120, 96
      %v3123 = vpop.permute.xlu0 %3122
      %3125 = vst.msk [vmem:[#allocation2 + $0x18] sm:$0xf] %vm3094, %v3123
      %v3126 = vrot.slane %v3120, 1
      %3128 = vst.msk [vmem:[#allocation2 + $0x20] sm:$0xf] %vm3028, %v3126
      %v3129 = vrot.slane %v3120, 2
      %3130 = vrot.lane.b32.xlu0 %v3129, 32
      %v3131 = vpop.permute.xlu0 %3130
      %3133 = vst.msk [vmem:[#allocation2 + $0x20] sm:$0xf] %vm3035, %v3131
      %v3134 = vld [vmem:[%s328 + $0x18] sm:$0x3f]
      %v3136 = vrot.slane %v3134, 4
      %3137 = vrot.lane.b32.xlu0 %v3136, 96
      %v3138 = vpop.permute.xlu0 %3137
      %3140 = vst.msk [vmem:[#allocation2 + $0x18] sm:$0xf0] %vm3110, %v3138
      %v3141 = vrot.slane %v3134, 5
      %3143 = vst.msk [vmem:[#allocation2 + $0x20] sm:$0xf0] %vm3047, %v3141
      %v3144 = vrot.slane %v3134, 6
      %3145 = vrot.lane.b32.xlu0 %v3144, 32
      %v3146 = vpop.permute.xlu0 %3145
      %3148 = vst.msk [vmem:[#allocation2 + $0x20] sm:$0xf0] %vm3053, %v3146
      %v3149 = vld [vmem:[%s328 + $0xc] sm:$0x3f]
      %3151 = vrot.lane.b32.xlu0 %v3149, 64
      %v3152 = vpop.permute.xlu0 %3151
      %3154 = vst.msk [vmem:[#allocation2 + $0x8] sm:$0xf] %vm3041, %v3152
      %v3155 = vrot.slane %v3149, 1
      %3156 = vrot.lane.b32.xlu0 %v3155, 96
      %v3157 = vpop.permute.xlu0 %3156
      %3159 = vst.msk [vmem:[#allocation2 + $0x8] sm:$0xf] %vm3094, %v3157
      %v3160 = vrot.slane %v3149, 2
      %3162 = vst.msk [vmem:[#allocation2 + $0x10] sm:$0xf] %vm3028, %v3160
      %v3163 = vld [vmem:[%s328 + $0x12] sm:$0x3f]
      %v3165 = vrot.slane %v3163, 4
      %3166 = vrot.lane.b32.xlu0 %v3165, 64
      %v3167 = vpop.permute.xlu0 %3166
      %3169 = vst.msk [vmem:[#allocation2 + $0x8] sm:$0xf0] %vm3059, %v3167
      %v3170 = vrot.slane %v3163, 5
      %3171 = vrot.lane.b32.xlu0 %v3170, 96
      %v3172 = vpop.permute.xlu0 %3171
      %3174 = vst.msk [vmem:[#allocation2 + $0x8] sm:$0xf0] %vm3110, %v3172
      %v3175 = vrot.slane %v3163, 6
      %3177 = vst.msk [vmem:[#allocation2 + $0x10] sm:$0xf0] %vm3047, %v3175
      %v3178 = vld [vmem:[%s328 + $0x18] sm:$0x3f]
      %3180 = vrot.lane.b32.xlu0 %v3178, 64
      %v3181 = vpop.permute.xlu0 %3180
      %3183 = vst.msk [vmem:[#allocation2 + $0x20] sm:$0xf] %vm3041, %v3181
      %v3184 = vrot.slane %v3178, 1
      %3185 = vrot.lane.b32.xlu0 %v3184, 96
      %v3186 = vpop.permute.xlu0 %3185
      %3188 = vst.msk [vmem:[#allocation2 + $0x20] sm:$0xf] %vm3094, %v3186
      %v3189 = vrot.slane %v3178, 2
      %3191 = vst.msk [vmem:[#allocation2 + $0x28] sm:$0xf] %vm3028, %v3189
      %v3192 = vld [vmem:[%s328 + $0x1e] sm:$0x3f]
      %v3194 = vrot.slane %v3192, 4
      %3195 = vrot.lane.b32.xlu0 %v3194, 64
      %v3196 = vpop.permute.xlu0 %3195
      %3198 = vst.msk [vmem:[#allocation2 + $0x20] sm:$0xf0] %vm3059, %v3196
      %v3199 = vrot.slane %v3192, 5
      %3200 = vrot.lane.b32.xlu0 %v3199, 96
      %v3201 = vpop.permute.xlu0 %3200
      %3203 = vst.msk [vmem:[#allocation2 + $0x20] sm:$0xf0] %vm3110, %v3201
      %v3204 = vrot.slane %v3192, 6
      %3206 = vst.msk [vmem:[#allocation2 + $0x28] sm:$0xf0] %vm3047, %v3204
      %v3207 = vld [vmem:[#allocation2] sm:$0xff]
      %v3208 = vld [vmem:[#allocation2 + $0x8] sm:$0xff]
      %v3209 = vld [vmem:[#allocation2 + $0x10] sm:$0xff]
      %v3210 = vld [vmem:[#allocation2 + $0x18] sm:$0xff]
      %v3211 = vld [vmem:[#allocation2 + $0x20] sm:$0xff]
      %v3212 = vld [vmem:[#allocation2 + $0x28] sm:$0xff]
      %v3213 = vpack.c.bf16 %v3210, %v3207
      %v3214 = vpack.c.bf16 %v3211, %v3208
      %v3215 = vpack.c.bf16 %v3212, %v3209
      %v3216 = vld [vmem:[%s4] sm:$0xf]
      %v3217 = vld [vmem:[%s4 + $0x4] sm:$0xf]
      %v3218 = vld [vmem:[%s4 + $0x8] sm:$0xf]
      %v3219 = vld [vmem:[%s4 + $0xc] sm:$0xf]
      %v3220 = vld [vmem:[%s4 + $0x10] sm:$0xf]
      %v3221 = vld [vmem:[%s4 + $0x14] sm:$0xf]
      %v3222 = vld [vmem:[%s4 + $0x18] sm:$0xf]
      %v3223 = vld [vmem:[%s4 + $0x1c] sm:$0xf]
      %v3224 = vld [vmem:[%s4 + $0x20] sm:$0xf]
      %v3225 = vld [vmem:[%s4 + $0x24] sm:$0xf]
      %v3226 = vld [vmem:[%s4 + $0x28] sm:$0xf]
      %v3227 = vld [vmem:[%s4 + $0x2c] sm:$0xf]
      %v3228 = vld [vmem:[%s4 + $0x30] sm:$0xf]
      %v3229 = vld [vmem:[%s4 + $0x34] sm:$0xf]
      %v3230 = vld [vmem:[%s4 + $0x38] sm:$0xf]
      %v3231 = vld [vmem:[%s4 + $0x3c] sm:$0xf]
      %v3232 = vld [vmem:[%s4 + $0x40] sm:$0xf]
      %v3233 = vld [vmem:[%s4 + $0x44] sm:$0xf]
      %v3234 = vld [vmem:[%s4 + $0x48] sm:$0xf]
      %v3235 = vld [vmem:[%s4 + $0x4c] sm:$0xf]
      %v3236 = vld [vmem:[%s4 + $0x50] sm:$0xf]
      %v3237 = vld [vmem:[%s4 + $0x54] sm:$0xf]
      %v3238 = vld [vmem:[%s4 + $0x58] sm:$0xf]
      %v3239 = vld [vmem:[%s4 + $0x5c] sm:$0xf]
      %v3240 = vld [vmem:[%s4 + $0x60] sm:$0xf]
      %v3241 = vld [vmem:[%s4 + $0x64] sm:$0xf]
      %v3242 = vld [vmem:[%s4 + $0x68] sm:$0xf]
      %v3243 = vld [vmem:[%s4 + $0x6c] sm:$0xf]
      %v3244 = vld [vmem:[%s4 + $0x70] sm:$0xf]
      %v3245 = vld [vmem:[%s4 + $0x74] sm:$0xf]
      %v3246 = vld [vmem:[%s4 + $0x78] sm:$0xf]
      %v3247 = vld [vmem:[%s4 + $0x7c] sm:$0xf]
      %v3248 = vld [vmem:[%s4 + $0x80] sm:$0xf]
      %v3249 = vld [vmem:[%s4 + $0x84] sm:$0xf]
      %v3250 = vld [vmem:[%s4 + $0x88] sm:$0xf]
      %v3251 = vld [vmem:[%s4 + $0x8c] sm:$0xf]
      %v3252 = vld [vmem:[%s5] sm:$0x1]
      %v3254 = vperm.slane %v3252, 0
      %v3292 = vunpack.c.l.b16 %v3216
      %v3293 = vunpack.c.l.b16 %v3217
      %v3294 = vunpack.c.l.b16 %v3218
      %v3295 = vunpack.c.l.b16 %v3219
      %v3296 = vunpack.c.l.b16 %v3220
      %v3297 = vunpack.c.l.b16 %v3221
      %v3298 = vunpack.c.l.b16 %v3222
      %v3299 = vunpack.c.l.b16 %v3223
      %v3300 = vunpack.c.l.b16 %v3224
      %v3301 = vunpack.c.l.b16 %v3225
      %v3302 = vunpack.c.l.b16 %v3226
      %v3303 = vunpack.c.l.b16 %v3227
      %v3304 = vunpack.c.l.b16 %v3228
      %v3305 = vunpack.c.l.b16 %v3229
      %v3306 = vunpack.c.l.b16 %v3230
      %v3307 = vunpack.c.l.b16 %v3231
      %v3308 = vunpack.c.l.b16 %v3232
      %v3309 = vunpack.c.l.b16 %v3233
      %v3310 = vunpack.c.l.b16 %v3234
      %v3311 = vunpack.c.l.b16 %v3235
      %v3312 = vunpack.c.l.b16 %v3236
      %v3313 = vunpack.c.l.b16 %v3237
      %v3314 = vunpack.c.l.b16 %v3238
      %v3315 = vunpack.c.l.b16 %v3239
      %v3316 = vunpack.c.l.b16 %v3240
      %v3317 = vunpack.c.l.b16 %v3241
      %v3318 = vunpack.c.l.b16 %v3242
      %v3319 = vunpack.c.l.b16 %v3243
      %v3320 = vunpack.c.l.b16 %v3244
      %v3321 = vunpack.c.l.b16 %v3245
      %v3322 = vunpack.c.l.b16 %v3246
      %v3323 = vunpack.c.l.b16 %v3247
      %v3324 = vunpack.c.l.b16 %v3248
      %v3325 = vunpack.c.l.b16 %v3249
      %v3326 = vunpack.c.l.b16 %v3250
      %v3327 = vunpack.c.l.b16 %v3251
      %v3328 = vpack.c.b16 %v3293, %v3292
      %v3329 = vpack.c.b16 %v3295, %v3294
      %v3330 = vpack.c.b16 %v3297, %v3296
      %v3331 = vpack.c.b16 %v3299, %v3298
      %v3332 = vpack.c.b16 %v3301, %v3300
      %v3333 = vpack.c.b16 %v3303, %v3302
      %v3334 = vpack.c.b16 %v3305, %v3304
      %v3335 = vpack.c.b16 %v3307, %v3306
      %v3336 = vpack.c.b16 %v3309, %v3308
      %v3337 = vpack.c.b16 %v3311, %v3310
      %v3338 = vpack.c.b16 %v3313, %v3312
      %v3339 = vpack.c.b16 %v3315, %v3314
      %v3340 = vpack.c.b16 %v3317, %v3316
      %v3341 = vpack.c.b16 %v3319, %v3318
      %v3342 = vpack.c.b16 %v3321, %v3320
      %v3343 = vpack.c.b16 %v3323, %v3322
      %v3344 = vpack.c.b16 %v3325, %v3324
      %v3345 = vpack.c.b16 %v3327, %v3326
      %v3365 = vsel %vm342, %v3215, 0
      %3367 = vmatpush.bf16.msra.mxu0 %v3335
      %3368 = vmatpush.bf16.msra.mxu0 %v3334
      %3369 = vmatpush.bf16.msra.mxu0 %v3333
      %3370 = vmatpush.bf16.msra.mxu0 %v3332
      %3371 = vmatpush.bf16.msra.mxu0 %v3331
      %3372 = vmatpush.bf16.msra.mxu0 %v3330
      %3373 = vmatpush.bf16.msra.mxu0 %v3329
      %3374 = vmatpush.bf16.msra.mxu0 %v3328
      %3375 = vmatmul.bf16.gmra.mxu0 %v3213
      %v3376 = vpop.f32.mrf.mxu0
      %v3377 = vadd.f32 %v3254, %v3376
      %v3378 = vpop.f32.mrf.mxu0
      %v3379 = vadd.f32 %v3254, %v3378
      %3380 = vdwg.mxu0
      %3381 = vmatpush.bf16.msra.mxu0 %v3343
      %3382 = vmatpush.bf16.msra.mxu0 %v3342
      %3383 = vmatpush.bf16.msra.mxu0 %v3341
      %3384 = vmatpush.bf16.msra.mxu0 %v3340
      %3385 = vmatpush.bf16.msra.mxu0 %v3339
      %3386 = vmatpush.bf16.msra.mxu0 %v3338
      %3387 = vmatpush.bf16.msra.mxu0 %v3337
      %3388 = vmatpush.bf16.msra.mxu0 %v3336
      %3389 = vmatmul.bf16.gmra.mxu0 %v3214
      %v3390 = vpop.f32.mrf.mxu0
      %v3391 = vadd.f32 %v3377, %v3390
      %v3392 = vpop.f32.mrf.mxu0
      %v3393 = vadd.f32 %v3379, %v3392
      %3394 = vdwg.mxu0
      %3395 = vmatpush.bf16.msra.mxu0 0
      %3396 = vmatpush.bf16.msra.mxu0 0
      %3397 = vmatpush.bf16.msra.mxu0 0
      %3398 = vmatpush.bf16.msra.mxu0 0
      %3399 = vmatpush.bf16.msra.mxu0 0
      %3400 = vmatpush.bf16.msra.mxu0 0
      %3401 = vmatpush.bf16.msra.mxu0 %v3345
      %3402 = vmatpush.bf16.msra.mxu0 %v3344
      %3403 = vmatmul.bf16.gmra.mxu0 %v3365
      %v3404 = vpop.f32.mrf.mxu0
      %v3405 = vadd.f32 %v3391, %v3404
      %v3406 = vpop.f32.mrf.mxu0
      %v3407 = vadd.f32 %v3393, %v3406
      %3408 = vdwg.mxu0
      %v3409 = vsel %vm1101, %v3405, -inf
      %3410 = vmax.xlane.f32.xlu0 %v3409
      %v3411 = vpop.xlane.xlu0 %3410
      %v3412 = vsel %vm1101, %v3407, -inf
      %3413 = vmax.xlane.f32.xlu0 %v3412
      %v3414 = vpop.xlane.xlu0 %3413
      %v3415 = vsub.f32 %v3405, %v3411
      %v3416 = vsub.f32 %v3407, %v3414
      %v3417 = vmul.f32 %v3415, 1.442695
      %v3418 = vpow.pop %v3417
      %v3419 = vmul.f32 %v3416, 1.442695
      %v3420 = vpow.pop %v3419
      %v3421 = vsel %vm1101, %v3418, 0.0
      %3422 = vadd.xlane.f32.xlu0 %v3421
      %v3423 = vpop.xlane.xlu0 %3422
      %v3424 = vsel %vm1101, %v3420, 0.0
      %3425 = vadd.xlane.f32.xlu0 %v3424
      %v3426 = vpop.xlane.xlu0 %3425
      %v3427 = vrcp.pop %v3423
      %v3428 = vmul.f32 %v3423, %v3427
      %v3429 = vsub.f32 1.0, %v3428
      %v3430 = vmul.f32 %v3427, %v3429
      %v3431 = vadd.f32 %v3427, %v3430
      %vm3432 = vweird.f32 %v3423
      %vm3433 = vweird.f32 %v3427
      %vm3434 = vmor %vm3432, %vm3433
      %v3435 = vsel %vm3434, %v3427, %v3431
      %v3436 = vand.u32 2147483647, %v3423
      %vm3437 = vcmp.eq.f32.partialorder %v3436, 8.507059e+37
      %v3438 = vand.u32 %v3423, 2147483648
      %v3439 = vor.u32 1.1754944e-38, %v3438
      %v3440 = vsel %vm3437, %v3439, %v3435
      %v3441 = vrcp.pop %v3426
      %v3442 = vmul.f32 %v3426, %v3441
      %v3443 = vsub.f32 1.0, %v3442
      %v3444 = vmul.f32 %v3441, %v3443
      %v3445 = vadd.f32 %v3441, %v3444
      %vm3446 = vweird.f32 %v3426
      %vm3447 = vweird.f32 %v3441
      %vm3448 = vmor %vm3446, %vm3447
      %v3449 = vsel %vm3448, %v3441, %v3445
      %v3450 = vand.u32 2147483647, %v3426
      %vm3451 = vcmp.eq.f32.partialorder %v3450, 8.507059e+37
      %v3452 = vand.u32 %v3426, 2147483648
      %v3453 = vor.u32 1.1754944e-38, %v3452
      %v3454 = vsel %vm3451, %v3453, %v3449
      %v3455 = vmul.f32 %v3418, %v3440
      %v3456 = vmul.f32 %v3420, %v3454
      %3457 = vst.msk [vmem:[%s333 + $0x100] sm:$0xff] %vm1101, %v3455
      %3458 = vst.msk [vmem:[%s333 + $0x108] sm:$0xff] %vm1101, %v3456
      %v3459 = vld [vmem:[%s6 + $0x100] sm:$0xff]
      %v3460 = vld [vmem:[%s6 + $0x108] sm:$0xff]
      %v3461 = vmul.f32 %v3405, 0.1
      %v3462 = vmul.f32 %v3407, 0.1
      %3465 = vrot.lane.b32.xlu0 %v3459, 34
      %v3466 = vpop.permute.xlu0 %3465
      %3467 = vrot.lane.b32.xlu0 %v3460, 34
      %v3468 = vpop.permute.xlu0 %3467
      %v3471 = vmul.f32 %v3461, %v3466
      %v3472 = vmul.f32 %v3462, %v3468
      %3473 = vrot.lane.b32.xlu0 %v3459, 36
      %v3474 = vpop.permute.xlu0 %3473
      %3475 = vrot.lane.b32.xlu0 %v3460, 36
      %v3476 = vpop.permute.xlu0 %3475
      %v3479 = vadd.f32 %v3471, %v3474
      %v3480 = vadd.f32 %v3472, %v3476
      %v3481 = vmul.f32 %v3405, 0.2
      %v3482 = vmul.f32 %v3407, 0.2
      %v3483 = vmul.f32 %v3481, 1.442695
      %v3484 = vpow.pop %v3483
      %v3485 = vmul.f32 %v3482, 1.442695
      %v3486 = vpow.pop %v3485
      %v3487 = vmul.f32 %v3484, %v3474
      %v3488 = vmul.f32 %v3486, %v3476
      %v3489 = vmul.f32 %v3487, 0.5
      %v3490 = vmul.f32 %v3488, 0.5
      %3493 = vrot.lane.b32.xlu0 %v3489, 126
      %v3494 = vpop.permute.xlu0 %3493
      %3495 = vrot.lane.b32.xlu0 %v3490, 126
      %v3496 = vpop.permute.xlu0 %3495
      %v3499 = vsub.f32 %v3479, %v3494
      %v3500 = vsub.f32 %v3480, %v3496
      %v3501 = vadd.f32 %v3479, %v3494
      %v3502 = vadd.f32 %v3480, %v3496
      %3505 = vrot.lane.b32.xlu0 %v3499, 92
      %v3506 = vpop.permute.xlu0 %3505
      %3507 = vrot.lane.b32.xlu0 %v3500, 92
      %v3508 = vpop.permute.xlu0 %3507
      %3513 = vrot.lane.b32.xlu0 %v3501, 94
      %v3514 = vpop.permute.xlu0 %3513
      %3515 = vrot.lane.b32.xlu0 %v3502, 94
      %v3516 = vpop.permute.xlu0 %3515
      %v3519 = vsel %vm1542, %v3506, %v3514
      %v3520 = vsel %vm1542, %v3508, %v3516
      %3521 = vst.msk [vmem:[%s338 + $0x100] sm:$0xff] %vm1551, %v3519
      %3522 = vst.msk [vmem:[%s338 + $0x108] sm:$0xff] %vm1551, %v3520
      %v3523 = vsel %vm1560, %v3405, -inf
      %3524 = vmax.xlane.f32.xlu0 %v3523
      %v3525 = vpop.xlane.xlu0 %3524
      %v3526 = vsel %vm1560, %v3407, -inf
      %3527 = vmax.xlane.f32.xlu0 %v3526
      %v3528 = vpop.xlane.xlu0 %3527
      %v3529 = vsub.f32 %v3405, %v3525
      %v3530 = vsub.f32 %v3407, %v3528
      %v3531 = vmul.f32 %v3529, 1.442695
      %v3532 = vpow.pop %v3531
      %v3533 = vmul.f32 %v3530, 1.442695
      %v3534 = vpow.pop %v3533
      %3537 = vrot.lane.b32.xlu0 %v3532, 122
      %v3538 = vpop.permute.xlu0 %3537
      %3539 = vrot.lane.b32.xlu0 %v3534, 122
      %v3540 = vpop.permute.xlu0 %3539
      %v3543 = vsel %vm1101, %v3538, 0.0
      %3544 = vadd.xlane.f32.xlu0 %v3543
      %v3545 = vpop.xlane.xlu0 %3544
      %v3546 = vsel %vm1101, %v3540, 0.0
      %3547 = vadd.xlane.f32.xlu0 %v3546
      %v3548 = vpop.xlane.xlu0 %3547
      %v3549 = vrcp.pop %v3545
      %v3550 = vmul.f32 %v3545, %v3549
      %v3551 = vsub.f32 1.0, %v3550
      %v3552 = vmul.f32 %v3549, %v3551
      %v3553 = vadd.f32 %v3549, %v3552
      %vm3554 = vweird.f32 %v3545
      %vm3555 = vweird.f32 %v3549
      %vm3556 = vmor %vm3554, %vm3555
      %v3557 = vsel %vm3556, %v3549, %v3553
      %v3558 = vand.u32 2147483647, %v3545
      %vm3559 = vcmp.eq.f32.partialorder %v3558, 8.507059e+37
      %v3560 = vand.u32 %v3545, 2147483648
      %v3561 = vor.u32 1.1754944e-38, %v3560
      %v3562 = vsel %vm3559, %v3561, %v3557
      %v3563 = vrcp.pop %v3548
      %v3564 = vmul.f32 %v3548, %v3563
      %v3565 = vsub.f32 1.0, %v3564
      %v3566 = vmul.f32 %v3563, %v3565
      %v3567 = vadd.f32 %v3563, %v3566
      %vm3568 = vweird.f32 %v3548
      %vm3569 = vweird.f32 %v3563
      %vm3570 = vmor %vm3568, %vm3569
      %v3571 = vsel %vm3570, %v3563, %v3567
      %v3572 = vand.u32 2147483647, %v3548
      %vm3573 = vcmp.eq.f32.partialorder %v3572, 8.507059e+37
      %v3574 = vand.u32 %v3548, 2147483648
      %v3575 = vor.u32 1.1754944e-38, %v3574
      %v3576 = vsel %vm3573, %v3575, %v3571
      %v3577 = vmul.f32 %v3532, %v3562
      %v3578 = vmul.f32 %v3534, %v3576
      %3581 = vrot.lane.b32.xlu0 %v3577, 122
      %v3582 = vpop.permute.xlu0 %3581
      %3583 = vrot.lane.b32.xlu0 %v3578, 122
      %v3584 = vpop.permute.xlu0 %3583
      %3587 = vst.msk [vmem:[%s333 + $0x110] sm:$0xff] %vm1101, %v3582
      %3588 = vst.msk [vmem:[%s333 + $0x118] sm:$0xff] %vm1101, %v3584
      %v3589 = vld [vmem:[%s6 + $0x110] sm:$0xff]
      %v3590 = vld [vmem:[%s6 + $0x118] sm:$0xff]
      %3593 = vrot.lane.b32.xlu0 %v3589, 38
      %v3594 = vpop.permute.xlu0 %3593
      %3595 = vrot.lane.b32.xlu0 %v3590, 38
      %v3596 = vpop.permute.xlu0 %3595
      %v3599 = vmul.f32 %v3461, %v3594
      %v3600 = vmul.f32 %v3462, %v3596
      %3601 = vrot.lane.b32.xlu0 %v3589, 40
      %v3602 = vpop.permute.xlu0 %3601
      %3603 = vrot.lane.b32.xlu0 %v3590, 40
      %v3604 = vpop.permute.xlu0 %3603
      %v3607 = vadd.f32 %v3599, %v3602
      %v3608 = vadd.f32 %v3600, %v3604
      %v3609 = vmul.f32 %v3484, %v3602
      %v3610 = vmul.f32 %v3486, %v3604
      %v3611 = vmul.f32 %v3609, 0.5
      %v3612 = vmul.f32 %v3610, 0.5
      %3615 = vrot.lane.b32.xlu0 %v3611, 126
      %v3616 = vpop.permute.xlu0 %3615
      %3617 = vrot.lane.b32.xlu0 %v3612, 126
      %v3618 = vpop.permute.xlu0 %3617
      %v3621 = vsub.f32 %v3607, %v3616
      %v3622 = vsub.f32 %v3608, %v3618
      %v3623 = vadd.f32 %v3607, %v3616
      %v3624 = vadd.f32 %v3608, %v3618
      %3627 = vrot.lane.b32.xlu0 %v3621, 88
      %v3628 = vpop.permute.xlu0 %3627
      %3629 = vrot.lane.b32.xlu0 %v3622, 88
      %v3630 = vpop.permute.xlu0 %3629
      %3635 = vrot.lane.b32.xlu0 %v3623, 90
      %v3636 = vpop.permute.xlu0 %3635
      %3637 = vrot.lane.b32.xlu0 %v3624, 90
      %v3638 = vpop.permute.xlu0 %3637
      %v3641 = vsel %vm1542, %v3628, %v3636
      %v3642 = vsel %vm1542, %v3630, %v3638
      %3643 = vst.msk [vmem:[%s338 + $0x110] sm:$0xff] %vm1551, %v3641
      %3644 = vst.msk [vmem:[%s338 + $0x118] sm:$0xff] %vm1551, %v3642
      %v3645 = vsel %vm2049, %v3405, -inf
      %3646 = vmax.xlane.f32.xlu0 %v3645
      %v3647 = vpop.xlane.xlu0 %3646
      %v3648 = vsel %vm2049, %v3407, -inf
      %3649 = vmax.xlane.f32.xlu0 %v3648
      %v3650 = vpop.xlane.xlu0 %3649
      %v3651 = vsub.f32 %v3405, %v3647
      %v3652 = vsub.f32 %v3407, %v3650
      %v3653 = vmul.f32 %v3651, 1.442695
      %v3654 = vpow.pop %v3653
      %v3655 = vmul.f32 %v3652, 1.442695
      %v3656 = vpow.pop %v3655
      %3659 = vrot.lane.b32.xlu0 %v3654, 116
      %v3660 = vpop.permute.xlu0 %3659
      %3661 = vrot.lane.b32.xlu0 %v3656, 116
      %v3662 = vpop.permute.xlu0 %3661
      %v3665 = vsel %vm1101, %v3660, 0.0
      %3666 = vadd.xlane.f32.xlu0 %v3665
      %v3667 = vpop.xlane.xlu0 %3666
      %v3668 = vsel %vm1101, %v3662, 0.0
      %3669 = vadd.xlane.f32.xlu0 %v3668
      %v3670 = vpop.xlane.xlu0 %3669
      %v3671 = vrcp.pop %v3667
      %v3672 = vmul.f32 %v3667, %v3671
      %v3673 = vsub.f32 1.0, %v3672
      %v3674 = vmul.f32 %v3671, %v3673
      %v3675 = vadd.f32 %v3671, %v3674
      %vm3676 = vweird.f32 %v3667
      %vm3677 = vweird.f32 %v3671
      %vm3678 = vmor %vm3676, %vm3677
      %v3679 = vsel %vm3678, %v3671, %v3675
      %v3680 = vand.u32 2147483647, %v3667
      %vm3681 = vcmp.eq.f32.partialorder %v3680, 8.507059e+37
      %v3682 = vand.u32 %v3667, 2147483648
      %v3683 = vor.u32 1.1754944e-38, %v3682
      %v3684 = vsel %vm3681, %v3683, %v3679
      %v3685 = vrcp.pop %v3670
      %v3686 = vmul.f32 %v3670, %v3685
      %v3687 = vsub.f32 1.0, %v3686
      %v3688 = vmul.f32 %v3685, %v3687
      %v3689 = vadd.f32 %v3685, %v3688
      %vm3690 = vweird.f32 %v3670
      %vm3691 = vweird.f32 %v3685
      %vm3692 = vmor %vm3690, %vm3691
      %v3693 = vsel %vm3692, %v3685, %v3689
      %v3694 = vand.u32 2147483647, %v3670
      %vm3695 = vcmp.eq.f32.partialorder %v3694, 8.507059e+37
      %v3696 = vand.u32 %v3670, 2147483648
      %v3697 = vor.u32 1.1754944e-38, %v3696
      %v3698 = vsel %vm3695, %v3697, %v3693
      %v3699 = vmul.f32 %v3654, %v3684
      %v3700 = vmul.f32 %v3656, %v3698
      %3703 = vrot.lane.b32.xlu0 %v3699, 116
      %v3704 = vpop.permute.xlu0 %3703
      %3705 = vrot.lane.b32.xlu0 %v3700, 116
      %v3706 = vpop.permute.xlu0 %3705
      %3709 = vst.msk [vmem:[%s333 + $0x120] sm:$0xff] %vm1101, %v3704
      %3710 = vst.msk [vmem:[%s333 + $0x128] sm:$0xff] %vm1101, %v3706
      %v3711 = vld [vmem:[%s6 + $0x120] sm:$0xff]
      %v3712 = vld [vmem:[%s6 + $0x128] sm:$0xff]
      %3715 = vrot.lane.b32.xlu0 %v3711, 42
      %v3716 = vpop.permute.xlu0 %3715
      %3717 = vrot.lane.b32.xlu0 %v3712, 42
      %v3718 = vpop.permute.xlu0 %3717
      %v3721 = vmul.f32 %v3461, %v3716
      %v3722 = vmul.f32 %v3462, %v3718
      %3723 = vrot.lane.b32.xlu0 %v3711, 44
      %v3724 = vpop.permute.xlu0 %3723
      %3725 = vrot.lane.b32.xlu0 %v3712, 44
      %v3726 = vpop.permute.xlu0 %3725
      %v3729 = vadd.f32 %v3721, %v3724
      %v3730 = vadd.f32 %v3722, %v3726
      %v3731 = vmul.f32 %v3484, %v3724
      %v3732 = vmul.f32 %v3486, %v3726
      %v3733 = vmul.f32 %v3731, 0.5
      %v3734 = vmul.f32 %v3732, 0.5
      %3737 = vrot.lane.b32.xlu0 %v3733, 126
      %v3738 = vpop.permute.xlu0 %3737
      %3739 = vrot.lane.b32.xlu0 %v3734, 126
      %v3740 = vpop.permute.xlu0 %3739
      %v3743 = vsub.f32 %v3729, %v3738
      %v3744 = vsub.f32 %v3730, %v3740
      %v3745 = vadd.f32 %v3729, %v3738
      %v3746 = vadd.f32 %v3730, %v3740
      %3749 = vrot.lane.b32.xlu0 %v3743, 84
      %v3750 = vpop.permute.xlu0 %3749
      %3751 = vrot.lane.b32.xlu0 %v3744, 84
      %v3752 = vpop.permute.xlu0 %3751
      %3757 = vrot.lane.b32.xlu0 %v3745, 86
      %v3758 = vpop.permute.xlu0 %3757
      %3759 = vrot.lane.b32.xlu0 %v3746, 86
      %v3760 = vpop.permute.xlu0 %3759
      %v3763 = vsel %vm1542, %v3750, %v3758
      %v3764 = vsel %vm1542, %v3752, %v3760
      %3765 = vst.msk [vmem:[%s338 + $0x120] sm:$0xff] %vm1551, %v3763
      %3766 = vst.msk [vmem:[%s338 + $0x128] sm:$0xff] %vm1551, %v3764
      %v3767 = vsel %vm2538, %v3405, -inf
      %3768 = vmax.xlane.f32.xlu0 %v3767
      %v3769 = vpop.xlane.xlu0 %3768
      %v3770 = vsel %vm2538, %v3407, -inf
      %3771 = vmax.xlane.f32.xlu0 %v3770
      %v3772 = vpop.xlane.xlu0 %3771
      %v3773 = vsub.f32 %v3405, %v3769
      %v3774 = vsub.f32 %v3407, %v3772
      %v3775 = vmul.f32 %v3773, 1.442695
      %v3776 = vpow.pop %v3775
      %v3777 = vmul.f32 %v3774, 1.442695
      %v3778 = vpow.pop %v3777
      %3781 = vrot.lane.b32.xlu0 %v3776, 110
      %v3782 = vpop.permute.xlu0 %3781
      %3783 = vrot.lane.b32.xlu0 %v3778, 110
      %v3784 = vpop.permute.xlu0 %3783
      %v3787 = vsel %vm1101, %v3782, 0.0
      %3788 = vadd.xlane.f32.xlu0 %v3787
      %v3789 = vpop.xlane.xlu0 %3788
      %v3790 = vsel %vm1101, %v3784, 0.0
      %3791 = vadd.xlane.f32.xlu0 %v3790
      %v3792 = vpop.xlane.xlu0 %3791
      %v3793 = vrcp.pop %v3789
      %v3794 = vmul.f32 %v3789, %v3793
      %v3795 = vsub.f32 1.0, %v3794
      %v3796 = vmul.f32 %v3793, %v3795
      %v3797 = vadd.f32 %v3793, %v3796
      %vm3798 = vweird.f32 %v3789
      %vm3799 = vweird.f32 %v3793
      %vm3800 = vmor %vm3798, %vm3799
      %v3801 = vsel %vm3800, %v3793, %v3797
      %v3802 = vand.u32 2147483647, %v3789
      %vm3803 = vcmp.eq.f32.partialorder %v3802, 8.507059e+37
      %v3804 = vand.u32 %v3789, 2147483648
      %v3805 = vor.u32 1.1754944e-38, %v3804
      %v3806 = vsel %vm3803, %v3805, %v3801
      %v3807 = vrcp.pop %v3792
      %v3808 = vmul.f32 %v3792, %v3807
      %v3809 = vsub.f32 1.0, %v3808
      %v3810 = vmul.f32 %v3807, %v3809
      %v3811 = vadd.f32 %v3807, %v3810
      %vm3812 = vweird.f32 %v3792
      %vm3813 = vweird.f32 %v3807
      %vm3814 = vmor %vm3812, %vm3813
      %v3815 = vsel %vm3814, %v3807, %v3811
      %v3816 = vand.u32 2147483647, %v3792
      %vm3817 = vcmp.eq.f32.partialorder %v3816, 8.507059e+37
      %v3818 = vand.u32 %v3792, 2147483648
      %v3819 = vor.u32 1.1754944e-38, %v3818
      %v3820 = vsel %vm3817, %v3819, %v3815
      %v3821 = vmul.f32 %v3776, %v3806
      %v3822 = vmul.f32 %v3778, %v3820
      %3825 = vrot.lane.b32.xlu0 %v3821, 110
      %v3826 = vpop.permute.xlu0 %3825
      %3827 = vrot.lane.b32.xlu0 %v3822, 110
      %v3828 = vpop.permute.xlu0 %3827
      %3831 = vst.msk [vmem:[%s333 + $0x130] sm:$0xff] %vm1101, %v3826
      %3832 = vst.msk [vmem:[%s333 + $0x138] sm:$0xff] %vm1101, %v3828
      %v3833 = vld [vmem:[%s6 + $0x130] sm:$0xff]
      %v3834 = vld [vmem:[%s6 + $0x138] sm:$0xff]
      %3837 = vrot.lane.b32.xlu0 %v3833, 46
      %v3838 = vpop.permute.xlu0 %3837
      %3839 = vrot.lane.b32.xlu0 %v3834, 46
      %v3840 = vpop.permute.xlu0 %3839
      %v3843 = vmul.f32 %v3461, %v3838
      %v3844 = vmul.f32 %v3462, %v3840
      %3845 = vrot.lane.b32.xlu0 %v3833, 48
      %v3846 = vpop.permute.xlu0 %3845
      %3847 = vrot.lane.b32.xlu0 %v3834, 48
      %v3848 = vpop.permute.xlu0 %3847
      %v3851 = vadd.f32 %v3843, %v3846
      %v3852 = vadd.f32 %v3844, %v3848
      %v3853 = vmul.f32 %v3484, %v3846
      %v3854 = vmul.f32 %v3486, %v3848
      %v3855 = vmul.f32 %v3853, 0.5
      %v3856 = vmul.f32 %v3854, 0.5
      %3859 = vrot.lane.b32.xlu0 %v3855, 126
      %v3860 = vpop.permute.xlu0 %3859
      %3861 = vrot.lane.b32.xlu0 %v3856, 126
      %v3862 = vpop.permute.xlu0 %3861
      %v3865 = vsub.f32 %v3851, %v3860
      %v3866 = vsub.f32 %v3852, %v3862
      %v3867 = vadd.f32 %v3851, %v3860
      %v3868 = vadd.f32 %v3852, %v3862
      %3871 = vrot.lane.b32.xlu0 %v3865, 80
      %v3872 = vpop.permute.xlu0 %3871
      %3873 = vrot.lane.b32.xlu0 %v3866, 80
      %v3874 = vpop.permute.xlu0 %3873
      %3879 = vrot.lane.b32.xlu0 %v3867, 82
      %v3880 = vpop.permute.xlu0 %3879
      %3881 = vrot.lane.b32.xlu0 %v3868, 82
      %v3882 = vpop.permute.xlu0 %3881
      %v3885 = vsel %vm1542, %v3872, %v3880
      %v3886 = vsel %vm1542, %v3874, %v3882
      %3887 = vst.msk [vmem:[%s338 + $0x130] sm:$0xff] %vm1551, %v3885
      %3888 = vst.msk [vmem:[%s338 + $0x138] sm:$0xff] %vm1551, %v3886
      %vm3889 = vcmask 244928
      %v3890 = vsel %vm3889, %v3405, -inf
      %3891 = vmax.xlane.f32.xlu0 %v3890
      %v3892 = vpop.xlane.xlu0 %3891
      %v3893 = vsel %vm3889, %v3407, -inf
      %3894 = vmax.xlane.f32.xlu0 %v3893
      %v3895 = vpop.xlane.xlu0 %3894
      %v3896 = vsub.f32 %v3405, %v3892
      %v3897 = vsub.f32 %v3407, %v3895
      %v3898 = vmul.f32 %v3896, 1.442695
      %v3899 = vpow.pop %v3898
      %v3900 = vmul.f32 %v3897, 1.442695
      %v3901 = vpow.pop %v3900
      %3904 = vrot.lane.b32.xlu0 %v3899, 104
      %v3905 = vpop.permute.xlu0 %3904
      %3906 = vrot.lane.b32.xlu0 %v3901, 104
      %v3907 = vpop.permute.xlu0 %3906
      %v3910 = vsel %vm1101, %v3905, 0.0
      %3911 = vadd.xlane.f32.xlu0 %v3910
      %v3912 = vpop.xlane.xlu0 %3911
      %v3913 = vsel %vm1101, %v3907, 0.0
      %3914 = vadd.xlane.f32.xlu0 %v3913
      %v3915 = vpop.xlane.xlu0 %3914
      %v3916 = vrcp.pop %v3912
      %v3917 = vmul.f32 %v3912, %v3916
      %v3918 = vsub.f32 1.0, %v3917
      %v3919 = vmul.f32 %v3916, %v3918
      %v3920 = vadd.f32 %v3916, %v3919
      %vm3921 = vweird.f32 %v3912
      %vm3922 = vweird.f32 %v3916
      %vm3923 = vmor %vm3921, %vm3922
      %v3924 = vsel %vm3923, %v3916, %v3920
      %v3925 = vand.u32 2147483647, %v3912
      %vm3926 = vcmp.eq.f32.partialorder %v3925, 8.507059e+37
      %v3927 = vand.u32 %v3912, 2147483648
      %v3928 = vor.u32 1.1754944e-38, %v3927
      %v3929 = vsel %vm3926, %v3928, %v3924
      %v3930 = vrcp.pop %v3915
      %v3931 = vmul.f32 %v3915, %v3930
      %v3932 = vsub.f32 1.0, %v3931
      %v3933 = vmul.f32 %v3930, %v3932
      %v3934 = vadd.f32 %v3930, %v3933
      %vm3935 = vweird.f32 %v3915
      %vm3936 = vweird.f32 %v3930
      %vm3937 = vmor %vm3935, %vm3936
      %v3938 = vsel %vm3937, %v3930, %v3934
      %v3939 = vand.u32 2147483647, %v3915
      %vm3940 = vcmp.eq.f32.partialorder %v3939, 8.507059e+37
      %v3941 = vand.u32 %v3915, 2147483648
      %v3942 = vor.u32 1.1754944e-38, %v3941
      %v3943 = vsel %vm3940, %v3942, %v3938
      %v3944 = vmul.f32 %v3899, %v3929
      %v3945 = vmul.f32 %v3901, %v3943
      %3948 = vrot.lane.b32.xlu0 %v3944, 104
      %v3949 = vpop.permute.xlu0 %3948
      %3950 = vrot.lane.b32.xlu0 %v3945, 104
      %v3951 = vpop.permute.xlu0 %3950
      %3954 = vst.msk [vmem:[%s333 + $0x140] sm:$0xff] %vm1101, %v3949
      %3955 = vst.msk [vmem:[%s333 + $0x148] sm:$0xff] %vm1101, %v3951
      %v3956 = vld [vmem:[%s6 + $0x140] sm:$0xff]
      %v3957 = vld [vmem:[%s6 + $0x148] sm:$0xff]
      %3960 = vrot.lane.b32.xlu0 %v3956, 50
      %v3961 = vpop.permute.xlu0 %3960
      %3962 = vrot.lane.b32.xlu0 %v3957, 50
      %v3963 = vpop.permute.xlu0 %3962
      %v3966 = vmul.f32 %v3461, %v3961
      %v3967 = vmul.f32 %v3462, %v3963
      %3968 = vrot.lane.b32.xlu0 %v3956, 52
      %v3969 = vpop.permute.xlu0 %3968
      %3970 = vrot.lane.b32.xlu0 %v3957, 52
      %v3971 = vpop.permute.xlu0 %3970
      %v3974 = vadd.f32 %v3966, %v3969
      %v3975 = vadd.f32 %v3967, %v3971
      %v3976 = vmul.f32 %v3484, %v3969
      %v3977 = vmul.f32 %v3486, %v3971
      %v3978 = vmul.f32 %v3976, 0.5
      %v3979 = vmul.f32 %v3977, 0.5
      %3982 = vrot.lane.b32.xlu0 %v3978, 126
      %v3983 = vpop.permute.xlu0 %3982
      %3984 = vrot.lane.b32.xlu0 %v3979, 126
      %v3985 = vpop.permute.xlu0 %3984
      %v3988 = vsub.f32 %v3974, %v3983
      %v3989 = vsub.f32 %v3975, %v3985
      %v3990 = vadd.f32 %v3974, %v3983
      %v3991 = vadd.f32 %v3975, %v3985
      %3994 = vrot.lane.b32.xlu0 %v3988, 76
      %v3995 = vpop.permute.xlu0 %3994
      %3996 = vrot.lane.b32.xlu0 %v3989, 76
      %v3997 = vpop.permute.xlu0 %3996
      %4002 = vrot.lane.b32.xlu0 %v3990, 78
      %v4003 = vpop.permute.xlu0 %4002
      %4004 = vrot.lane.b32.xlu0 %v3991, 78
      %v4005 = vpop.permute.xlu0 %4004
      %v4008 = vsel %vm1542, %v3995, %v4003
      %v4009 = vsel %vm1542, %v3997, %v4005
      %4010 = vst.msk [vmem:[%s338 + $0x140] sm:$0xff] %vm1551, %v4008
      %4011 = vst.msk [vmem:[%s338 + $0x148] sm:$0xff] %vm1551, %v4009
      %vm4012 = vcmask 294128
      %v4013 = vsel %vm4012, %v3405, -inf
      %4014 = vmax.xlane.f32.xlu0 %v4013
      %v4015 = vpop.xlane.xlu0 %4014
      %v4016 = vsel %vm4012, %v3407, -inf
      %4017 = vmax.xlane.f32.xlu0 %v4016
      %v4018 = vpop.xlane.xlu0 %4017
      %v4019 = vsub.f32 %v3405, %v4015
      %v4020 = vsub.f32 %v3407, %v4018
      %v4021 = vmul.f32 %v4019, 1.442695
      %v4022 = vpow.pop %v4021
      %v4023 = vmul.f32 %v4020, 1.442695
      %v4024 = vpow.pop %v4023
      %4027 = vrot.lane.b32.xlu0 %v4022, 98
      %v4028 = vpop.permute.xlu0 %4027
      %4029 = vrot.lane.b32.xlu0 %v4024, 98
      %v4030 = vpop.permute.xlu0 %4029
      %v4033 = vsel %vm1101, %v4028, 0.0
      %4034 = vadd.xlane.f32.xlu0 %v4033
      %v4035 = vpop.xlane.xlu0 %4034
      %v4036 = vsel %vm1101, %v4030, 0.0
      %4037 = vadd.xlane.f32.xlu0 %v4036
      %v4038 = vpop.xlane.xlu0 %4037
      %v4039 = vrcp.pop %v4035
      %v4040 = vmul.f32 %v4035, %v4039
      %v4041 = vsub.f32 1.0, %v4040
      %v4042 = vmul.f32 %v4039, %v4041
      %v4043 = vadd.f32 %v4039, %v4042
      %vm4044 = vweird.f32 %v4035
      %vm4045 = vweird.f32 %v4039
      %vm4046 = vmor %vm4044, %vm4045
      %v4047 = vsel %vm4046, %v4039, %v4043
      %v4048 = vand.u32 2147483647, %v4035
      %vm4049 = vcmp.eq.f32.partialorder %v4048, 8.507059e+37
      %v4050 = vand.u32 %v4035, 2147483648
      %v4051 = vor.u32 1.1754944e-38, %v4050
      %v4052 = vsel %vm4049, %v4051, %v4047
      %v4053 = vrcp.pop %v4038
      %v4054 = vmul.f32 %v4038, %v4053
      %v4055 = vsub.f32 1.0, %v4054
      %v4056 = vmul.f32 %v4053, %v4055
      %v4057 = vadd.f32 %v4053, %v4056
      %vm4058 = vweird.f32 %v4038
      %vm4059 = vweird.f32 %v4053
      %vm4060 = vmor %vm4058, %vm4059
      %v4061 = vsel %vm4060, %v4053, %v4057
      %v4062 = vand.u32 2147483647, %v4038
      %vm4063 = vcmp.eq.f32.partialorder %v4062, 8.507059e+37
      %v4064 = vand.u32 %v4038, 2147483648
      %v4065 = vor.u32 1.1754944e-38, %v4064
      %v4066 = vsel %vm4063, %v4065, %v4061
      %v4067 = vmul.f32 %v4022, %v4052
      %v4068 = vmul.f32 %v4024, %v4066
      %4071 = vrot.lane.b32.xlu0 %v4067, 98
      %v4072 = vpop.permute.xlu0 %4071
      %4073 = vrot.lane.b32.xlu0 %v4068, 98
      %v4074 = vpop.permute.xlu0 %4073
      %4077 = vst.msk [vmem:[%s333 + $0x150] sm:$0xff] %vm1101, %v4072
      %4078 = vst.msk [vmem:[%s333 + $0x158] sm:$0xff] %vm1101, %v4074
      %v4079 = vld [vmem:[%s6 + $0x150] sm:$0xff]
      %v4080 = vld [vmem:[%s6 + $0x158] sm:$0xff]
      %4083 = vrot.lane.b32.xlu0 %v4079, 54
      %v4084 = vpop.permute.xlu0 %4083
      %4085 = vrot.lane.b32.xlu0 %v4080, 54
      %v4086 = vpop.permute.xlu0 %4085
      %v4089 = vmul.f32 %v3461, %v4084
      %v4090 = vmul.f32 %v3462, %v4086
      %4091 = vrot.lane.b32.xlu0 %v4079, 56
      %v4092 = vpop.permute.xlu0 %4091
      %4093 = vrot.lane.b32.xlu0 %v4080, 56
      %v4094 = vpop.permute.xlu0 %4093
      %v4097 = vadd.f32 %v4089, %v4092
      %v4098 = vadd.f32 %v4090, %v4094
      %v4099 = vmul.f32 %v3484, %v4092
      %v4100 = vmul.f32 %v3486, %v4094
      %v4101 = vmul.f32 %v4099, 0.5
      %v4102 = vmul.f32 %v4100, 0.5
      %4105 = vrot.lane.b32.xlu0 %v4101, 126
      %v4106 = vpop.permute.xlu0 %4105
      %4107 = vrot.lane.b32.xlu0 %v4102, 126
      %v4108 = vpop.permute.xlu0 %4107
      %v4111 = vsub.f32 %v4097, %v4106
      %v4112 = vsub.f32 %v4098, %v4108
      %v4113 = vadd.f32 %v4097, %v4106
      %v4114 = vadd.f32 %v4098, %v4108
      %4117 = vrot.lane.b32.xlu0 %v4111, 72
      %v4118 = vpop.permute.xlu0 %4117
      %4119 = vrot.lane.b32.xlu0 %v4112, 72
      %v4120 = vpop.permute.xlu0 %4119
      %4125 = vrot.lane.b32.xlu0 %v4113, 74
      %v4126 = vpop.permute.xlu0 %4125
      %4127 = vrot.lane.b32.xlu0 %v4114, 74
      %v4128 = vpop.permute.xlu0 %4127
      %v4131 = vsel %vm1542, %v4118, %v4126
      %v4132 = vsel %vm1542, %v4120, %v4128
      %4133 = vst.msk [vmem:[%s338 + $0x150] sm:$0xff] %vm1551, %v4131
      %4134 = vst.msk [vmem:[%s338 + $0x158] sm:$0xff] %vm1551, %v4132
      %p4135 = scmp.lt.s32.totalorder %s20, 1
      %s4136 = scalar_select %p4135, %s20, 1
      %s4137 = smul.addr %s4136, 44
      %s4138 = smul.addr %s4137, 8
      %s4139 = scalar_lea.vmem %s7, %s4138
      %p4140 = scmp.lt.s32.totalorder %s20, 1
      %s4141 = scalar_select %p4140, %s20, 1
      %s4142 = smul.addr %s4141, 44
      %s4143 = smul.addr %s4142, 8
      %s4144 = scalar_lea.vmem %s8, %s4143
      // Predicated region
      $region49: #{ssd_head_forward.1} parent=47 // pred_check
        %p4145 = pneg %p195
      $region50: #{ssd_head_forward.1} parent=47 // pred_check_branch
        %4147 = sbr.rel (%p4145) target = $region52
      $region51: #{ssd_head_forward.1} parent=47 // pred_region
        _
      $region52: #{ssd_head_forward.1} parent=47 // pred_fallthru
        _
      // Predicated region
      $region53: #{ssd_head_forward.1} parent=47 // pred_check
        %p4148 = pneg %p221
      $region54: #{ssd_head_forward.1} parent=47 // pred_check_branch
        %4150 = sbr.rel (%p4148) target = $region56
      $region55: #{ssd_head_forward.1} parent=47 // pred_region
        _
      $region56: #{ssd_head_forward.1} parent=47 // pred_fallthru
        _
    $region48: #{ssd_head_forward.1} parent=5 // pred_fallthru
      _
    %p4151 = scmp.le.s32.totalorder 2, %s15
    // Predicated region
    $region57: #{ssd_head_forward.1} parent=5 // pred_check
      %p4152 = pneg %p4151
    $region58: #{ssd_head_forward.1} parent=5 // pred_check_branch
      %4154 = sbr.rel (%p4152) target = $region60
    $region59: #{ssd_head_forward.1} parent=5 // pred_region
      %s4155 = ssub.s32 %s15, 2
      // Predicated region
      $region61: #{ssd_head_forward.1} parent=59 // pred_check
        %p4156 = pneg %p201
      $region62: #{ssd_head_forward.1} parent=59 // pred_check_branch
        %4158 = sbr.rel (%p4156) target = $region64
      $region63: #{ssd_head_forward.1} parent=59 // pred_region
        %p4159 = scmp.lt.s32.totalorder %s21, 1
        %s4160 = scalar_select %p4159, %s21, 1
        %s4161 = smul.addr %s4160, 44
        %s4162 = smul.addr %s4161, 8
        %s4163 = scalar_lea.vmem %s7, %s4162
      $region64: #{ssd_head_forward.1} parent=59 // pred_fallthru
        _
      // Predicated region
      $region65: #{ssd_head_forward.1} parent=59 // pred_check
        %p4164 = pneg %p227
      $region66: #{ssd_head_forward.1} parent=59 // pred_check_branch
        %4166 = sbr.rel (%p4164) target = $region68
      $region67: #{ssd_head_forward.1} parent=59 // pred_region
        %p4167 = scmp.lt.s32.totalorder %s21, 1
        %s4168 = scalar_select %p4167, %s21, 1
        %s4169 = smul.addr %s4168, 44
        %s4170 = smul.addr %s4169, 8
        %s4171 = scalar_lea.vmem %s8, %s4170
      $region68: #{ssd_head_forward.1} parent=59 // pred_fallthru
        _
    $region60: #{ssd_head_forward.1} parent=5 // pred_fallthru
      _
  $region6: #{ssd_head_forward.1} parent=0 // loop_footer
    %s19 = sadd.s32 1, %s15
  $region7: #{ssd_head_forward.1} parent=0 // loop_footer_branch
    %14 = sbr.rel target = $region3
  $region8: #{ssd_head_forward.1} parent=0 // loop_exit
    _

</llo_original>
